<compile_context>
chip_gen: v7x
topology: tpu7x:2x2x1
jax: 0.10.0
libtpu: 0.0.40
codegen_flags: <defaults>
</compile_context>

<pallas_src>
import numpy as np

import jax
import jax.numpy as jnp
from jax import lax
from jax.experimental import pallas as pl
from jax.experimental.pallas import tpu as pltpu

KH = 4                      # conv kernel height == in_dim == input H
KW_MAX = 13                 # widest branch kernel width (branches kw = 2..13)
N_BRANCH = 12
OUT_CH = 3
COUT = N_BRANCH * OUT_CH    # 36 concatenated channels per layer
CHF = COUT * KH             # 144 folded (channel, height) rows
PADW = 6                    # 'same' padding of the widest (kw=13) branch
POOL = 25                   # MaxPool2d window along width (out_max)
MXU_DTYPE = jnp.bfloat16    # matmul operand dtype (accumulation stays f32)


# ----------------------------- in-kernel helpers -----------------------------

def _shift_lanes(x, t):
    """Circular shift along the last (lane) axis: result[..., q] = x[..., (q + t) % L]."""
    length = x.shape[-1]
    t = t % length
    if t == 0:
        return x
    return jnp.concatenate([x[..., t:], x[..., :t]], axis=-1)


def _sliding_max(y, w):
    """Sliding max over a window of w along lanes: out[..., q] = max(y[..., q:q+w])."""
    m = y
    span = 1
    while span * 2 <= w:
        m = jnp.maximum(m, _shift_lanes(m, span))
        span *= 2
    if span < w:  # overlapping final window (valid for max)
        m = jnp.maximum(m, _shift_lanes(m, w - span))
    return m


def _layer(xf, w_eff, bias, g4, e4):
    """One Inp_Layer2_12 on a framed, (channel, height)-folded input.

    xf    : (Cin*KH, B*F) bf16; per-sample columns [b*F+6, b*F+6+Win) valid, zeros elsewhere.
    w_eff : (CHF, KW_MAX*Cin*KH) bf16 packed 12-branch conv (height folded into channels).
    bias  : (CHF, 1) f32.   g4: (KH, CHF) f32 / e4: (CHF, KH) f32 h-group sum / expand.
    Returns (CHF, B*F) f32 = conv + bias + ReLU + MaxPool(1,POOL) + F.normalize; valid
    columns are [b*F+6, b*F+6+Win-POOL+1).
    """
    # Width-only im2col: 13 lane shifts stacked on the sublane axis (centered, offset dw-6).
    patches = jnp.concatenate([_shift_lanes(xf, dw - PADW) for dw in range(KW_MAX)], axis=0)
    z = jnp.dot(w_eff, patches, preferred_element_type=jnp.float32) + bias      # (CHF, M)
    y = jnp.maximum(z, 0.0)                                                     # ReLU
    y = _sliding_max(y, POOL)                                                   # MaxPool (1,25)
    # F.normalize over the 36 channels per (h, w): rows r = c*KH + h -> group by r % KH.
    ss = jnp.dot(g4, y * y, preferred_element_type=jnp.float32)                 # (KH, M)
    scale = jnp.dot(e4, lax.rsqrt(jnp.maximum(ss, 1e-24)),
                    preferred_element_type=jnp.float32)                         # (CHF, M)
    return y * scale


def _model_kernel(x_ref, w1_ref, b1_ref, w2_ref, b2_ref, g4_ref, e4_ref, o_ref):
    # x_ref : (B, 4, W)  f32      w*_ref: packed bf16 weights      b*_ref: (144, 1) f32
    # g4/e4 : normalize group matrices                             o_ref : (B, 144, W2) f32
    B, H, W = x_ref.shape
    W1 = W - (POOL - 1)
    W2 = W1 - (POOL - 1)
    F1 = W + 2 * PADW
    F2 = W1 + 2 * PADW

    # ---- layer 1: frame the input block as (4, B*F1) bf16 (6 zero cols either side/sample) ----
    zpad1 = jnp.zeros((H, PADW), MXU_DTYPE)
    pieces = []
    for b in range(B):
        pieces += [zpad1, x_ref[b].astype(MXU_DTYPE), zpad1]
    xf1 = jnp.concatenate(pieces, axis=1)                                       # (4, B*F1)

    a1 = _layer(xf1, w1_ref[...], b1_ref[...], g4_ref[...], e4_ref[...])        # (144, B*F1)

    # ---- layer 2: re-frame only the valid W1 columns per sample, bf16 before im2col ----
    a1b = a1.astype(MXU_DTYPE)
    zpad2 = jnp.zeros((CHF, PADW), MXU_DTYPE)
    pieces = []
    for b in range(B):
        s = b * F1 + PADW
        pieces += [zpad2, a1b[:, s:s + W1], zpad2]
    xf2 = jnp.concatenate(pieces, axis=1)                                       # (144, B*F2)

    a2 = _layer(xf2, w2_ref[...], b2_ref[...], g4_ref[...], e4_ref[...])        # (144, B*F2)

    # ---- emit (B, 144, W2); rows are (channel, h), so the wrapper reshape == NCHW flatten ----
    for b in range(B):
        s = b * F2 + PADW
        o_ref[b] = a2[:, s:s + W2]


# ------------------------------- host-side packing --------------------------------

def init_branch_params(key, in_ch):
    """12 Conv2d(in_ch, 3, (4, kw)) branches, kw = 2..13, PyTorch-style uniform init."""
    branches = []
    for b in range(N_BRANCH):
        kw = b + 2
        key, k_w, k_b = jax.random.split(key, 3)
        fan_in = in_ch * KH * kw
        bound = 1.0 / np.sqrt(fan_in)
        w = jax.random.uniform(k_w, (OUT_CH, in_ch, KH, kw), jnp.float32, -bound, bound)
        bias = jax.random.uniform(k_b, (OUT_CH,), jnp.float32, -bound, bound)
        branches.append((w, bias))
    return branches


def fold_layer_params(branches, in_ch):
    """Pack the 12 branches into one width-only conv over (channel, height)-folded rows.

    Output row ro = (branch*3 + oc)*KH + h; rhs row k = dw*(in_ch*KH) + ci*KH + hi.
    The conv output at (h, w) reads folded input row (ci, hi) at width (w + dw - 6), which
    reproduces torch 'same' padding: height pad (1, 2), width pad ((kw-1)//2, extra right).
    """
    cinf = in_ch * KH
    w_eff = np.zeros((CHF, KW_MAX * cinf), np.float32)
    b_eff = np.zeros((CHF, 1), np.float32)
    rows_per_branch = OUT_CH * KH
    for bidx in range(N_BRANCH):
        kw = bidx + 2
        lp = (kw - 1) // 2
        w, bias = branches[bidx]
        w = np.asarray(w)                                # (3, in_ch, 4, kw)
        t = np.zeros((OUT_CH, KH, KW_MAX, in_ch, KH), np.float32)   # (oc, h, dw, ci, hi)
        for h in range(KH):
            for dh in range(KH):
                hi = h + dh - 1                          # height 'same' pad = (1, 2)
                if 0 <= hi < KH:
                    t[:, h, PADW - lp:PADW - lp + kw, :, hi] = np.transpose(
                        w[:, :, dh, :], (0, 2, 1))
        rows = slice(bidx * rows_per_branch, (bidx + 1) * rows_per_branch)
        w_eff[rows, :] = t.reshape(rows_per_branch, KW_MAX * cinf)
        b_eff[rows, 0] = np.repeat(np.asarray(bias), KH)
    return jnp.asarray(w_eff), jnp.asarray(b_eff)


def group_matrices():
    """(4,144) h-group sum matrix and its (144,4) expansion (rows r belong to group r % 4)."""
    r = np.arange(CHF)
    g4 = (r[None, :] % KH == np.arange(KH)[:, None]).astype(np.float32)
    return jnp.asarray(g4), jnp.asarray(g4.T)


# ------------------------------- forward wrapper --------------------------------

def inp_model_2(x_nchw, packed1, packed2, *, block_batch=8):
    """Forward pass of Inp_Model_2: (N, 1, 4, W) -> (N, 36*4*(W-48))."""
    N, C, H, W = x_nchw.shape
    if C != 1 or H != KH:
        # TODO(synk): the height-folded kernel assumes the Inp_Model_2 configuration
        # (single input channel, H == in_dim == 4).
        raise ValueError("expected input of shape (N, 1, 4, W)")
    W1 = W - (POOL - 1)
    W2 = W1 - (POOL - 1)
    if W2 <= 0:
        raise ValueError(f"W must be >= {2 * (POOL - 1) + 1} so both maxpools are valid")

    w1_eff, b1 = packed1
    w2_eff, b2 = packed2
    g4, e4 = group_matrices()

    B = max(1, min(block_batch, N))
    n_blocks = pl.cdiv(N, B)
    n_pad = n_blocks * B
    x = x_nchw.reshape(N, H, W)                          # C == 1: free reshape
    if n_pad != N:
        x = jnp.concatenate([x, jnp.zeros((n_pad - N, H, W), x.dtype)], axis=0)

    out = pl.pallas_call(
        _model_kernel,
        out_shape=jax.ShapeDtypeStruct((n_pad, CHF, W2), jnp.float32),
        grid=(n_blocks,),
        in_specs=[
            pl.BlockSpec((B, H, W), lambda n: (n, 0, 0)),
            pl.BlockSpec(w1_eff.shape, lambda n: (0, 0)),
            pl.BlockSpec(b1.shape, lambda n: (0, 0)),
            pl.BlockSpec(w2_eff.shape, lambda n: (0, 0)),
            pl.BlockSpec(b2.shape, lambda n: (0, 0)),
            pl.BlockSpec(g4.shape, lambda n: (0, 0)),
            pl.BlockSpec(e4.shape, lambda n: (0, 0)),
        ],
        out_specs=pl.BlockSpec((B, CHF, W2), lambda n: (n, 0, 0)),
        compiler_params=pltpu.CompilerParams(
            dimension_semantics=("parallel",),   # batch blocks split across TCs on v7x
        ),
    )(x, w1_eff.astype(MXU_DTYPE), b1, w2_eff.astype(MXU_DTYPE), b2, g4, e4)

    # Rows are ordered (channel, h), so this reshape IS nn.Flatten on NCHW (no transpose).
    return out[:N].reshape(N, COUT * KH * W2)


# ------------------------------- pure-JAX reference --------------------------------

def reference_forward(x_nchw, branches1, branches2):
    """Float32 re-implementation of the PyTorch module (12 separate 'same' convs per layer)."""
    def layer(x, branches):
        outs = []
        for w, bias in branches:
            kw = w.shape[-1]
            lp = (kw - 1) // 2
            y = lax.conv_general_dilated(
                x, w, window_strides=(1, 1),
                padding=((1, 2), (lp, kw - 1 - lp)),
                dimension_numbers=("NCHW", "OIHW", "NCHW"),
                precision=lax.Precision.HIGHEST)
            y = jnp.maximum(y + bias.reshape(1, OUT_CH, 1, 1), 0.0)
            y = lax.reduce_window(y, -jnp.inf, lax.max,
                                  (1, 1, 1, POOL), (1, 1, 1, 1), "VALID")
            outs.append(y)
        y = jnp.concatenate(outs, axis=1)
        norm = jnp.sqrt(jnp.sum(y * y, axis=1, keepdims=True))
        return y / jnp.maximum(norm, 1e-12)

    y = layer(x_nchw, branches1)
    y = layer(y, branches2)
    return y.reshape(y.shape[0], -1)


if __name__ == "__main__":
    key = jax.random.PRNGKey(0)
    kx, k1, k2 = jax.random.split(key, 3)
    N, W = 4, 56                                   # H = in_dim = 4; W >= 49 so both pools are valid
    x = jax.random.normal(kx, (N, 1, KH, W), dtype=jnp.float32)   # NCHW, like PyTorch

    branches1 = init_branch_params(k1, 1)          # Inp_Layer2_12(1, 3, 4, 25)
    branches2 = init_branch_params(k2, COUT)       # Inp_Layer2_12(36, 3, 4, 25)
    packed1 = fold_layer_params(branches1, 1)
    packed2 = fold_layer_params(branches2, COUT)

    fwd = jax.jit(inp_model_2, static_argnames=("block_batch",))
    out = jax.block_until_ready(fwd(x, packed1, packed2, block_batch=2))

    W2 = W - 2 * (POOL - 1)
    assert out.shape == (N, COUT * KH * W2), out.shape
    assert bool(jnp.all(jnp.isfinite(out)))

    # Validate against the f32 torch-faithful reference (bf16 matmul operands => small tolerance).
    ref = reference_forward(x, branches1, branches2)
    assert ref.shape == out.shape
    max_err = float(jnp.max(jnp.abs(out - ref)))
    assert max_err < 0.08, f"max abs error vs reference: {max_err}"

    print("KERNEL_OK")
</pallas_src>

<mosaic_0001>
module attributes {stable_mosaic.version = 11 : i64} {
  func.func @_model_kernel(%arg0: i32, %arg1: memref<2x4x56xf32, #tpu.memory_space<vmem>>, %arg2: memref<144x52xbf16, #tpu.memory_space<vmem>>, %arg3: memref<144x1xf32, #tpu.memory_space<vmem>>, %arg4: memref<144x1872xbf16, #tpu.memory_space<vmem>>, %arg5: memref<144x1xf32, #tpu.memory_space<vmem>>, %arg6: memref<4x144xf32, #tpu.memory_space<vmem>>, %arg7: memref<144x4xf32, #tpu.memory_space<vmem>>, %arg8: memref<2x144x8xf32, #tpu.memory_space<vmem>>) attributes {dimension_semantics = [#tpu.dimension_semantics<parallel>], iteration_bounds = array<i64: 2>, scalar_prefetch = 0 : i64, scratch_operands = 0 : i64, tpu.core_type = #tpu.core_type<tc>, window_params = [{transform_indices = @transform_0, window_bounds = array<i64: 2, 4, 56>}, {pipeline_mode = #tpu.pipeline_mode<synchronous>, transform_indices = @transform_1, window_bounds = array<i64: 144, 52>}, {pipeline_mode = #tpu.pipeline_mode<synchronous>, transform_indices = @transform_2, window_bounds = array<i64: 144, 1>}, {pipeline_mode = #tpu.pipeline_mode<synchronous>, transform_indices = @transform_3, window_bounds = array<i64: 144, 1872>}, {pipeline_mode = #tpu.pipeline_mode<synchronous>, transform_indices = @transform_4, window_bounds = array<i64: 144, 1>}, {pipeline_mode = #tpu.pipeline_mode<synchronous>, transform_indices = @transform_5, window_bounds = array<i64: 4, 144>}, {pipeline_mode = #tpu.pipeline_mode<synchronous>, transform_indices = @transform_6, window_bounds = array<i64: 144, 4>}, {transform_indices = @transform_7, window_bounds = array<i64: 2, 144, 8>}]} {
    %cst = arith.constant 0.000000e+00 : bf16
    %0 = vector.broadcast %cst : bf16 to vector<4x6xbf16>
    %c0 = arith.constant 0 : index
    %c0_0 = arith.constant 0 : index
    %c0_1 = arith.constant 0 : index
    %1 = vector.load %arg1[%c0, %c0_0, %c0_1] : memref<2x4x56xf32, #tpu.memory_space<vmem>>, vector<1x4x56xf32>
    %2 = vector.shape_cast %1 : vector<1x4x56xf32> to vector<4x56xf32>
    %3 = arith.truncf %2 : vector<4x56xf32> to vector<4x56xbf16>
    %c1 = arith.constant 1 : index
    %c0_2 = arith.constant 0 : index
    %c0_3 = arith.constant 0 : index
    %4 = vector.load %arg1[%c1, %c0_2, %c0_3] : memref<2x4x56xf32, #tpu.memory_space<vmem>>, vector<1x4x56xf32>
    %5 = vector.shape_cast %4 : vector<1x4x56xf32> to vector<4x56xf32>
    %6 = arith.truncf %5 : vector<4x56xf32> to vector<4x56xbf16>
    %7 = tpu.concatenate %0, %3, %0, %0, %6, %0 in 1 : vector<4x6xbf16>, vector<4x56xbf16>, vector<4x6xbf16>, vector<4x6xbf16>, vector<4x56xbf16>, vector<4x6xbf16> -> vector<4x136xbf16>
    %c0_4 = arith.constant 0 : index
    %c0_5 = arith.constant 0 : index
    %8 = vector.load %arg2[%c0_4, %c0_5] : memref<144x52xbf16, #tpu.memory_space<vmem>>, vector<144x52xbf16>
    %c0_6 = arith.constant 0 : index
    %c0_7 = arith.constant 0 : index
    %9 = vector.load %arg3[%c0_6, %c0_7] : memref<144x1xf32, #tpu.memory_space<vmem>>, vector<144x1xf32>
    %c0_8 = arith.constant 0 : index
    %c0_9 = arith.constant 0 : index
    %10 = vector.load %arg6[%c0_8, %c0_9] : memref<4x144xf32, #tpu.memory_space<vmem>>, vector<4x144xf32>
    %c0_10 = arith.constant 0 : index
    %c0_11 = arith.constant 0 : index
    %11 = vector.load %arg7[%c0_10, %c0_11] : memref<144x4xf32, #tpu.memory_space<vmem>>, vector<144x4xf32>
    %12 = vector.extract_strided_slice %7 {offsets = [0, 130], sizes = [4, 6], strides = [1, 1]} : vector<4x136xbf16> to vector<4x6xbf16>
    %13 = vector.extract_strided_slice %7 {offsets = [0, 0], sizes = [4, 130], strides = [1, 1]} : vector<4x136xbf16> to vector<4x130xbf16>
    %14 = tpu.concatenate %12, %13 in 1 : vector<4x6xbf16>, vector<4x130xbf16> -> vector<4x136xbf16>
    %15 = vector.extract_strided_slice %7 {offsets = [0, 131], sizes = [4, 5], strides = [1, 1]} : vector<4x136xbf16> to vector<4x5xbf16>
    %16 = vector.extract_strided_slice %7 {offsets = [0, 0], sizes = [4, 131], strides = [1, 1]} : vector<4x136xbf16> to vector<4x131xbf16>
    %17 = tpu.concatenate %15, %16 in 1 : vector<4x5xbf16>, vector<4x131xbf16> -> vector<4x136xbf16>
    %18 = vector.extract_strided_slice %7 {offsets = [0, 132], sizes = [4, 4], strides = [1, 1]} : vector<4x136xbf16> to vector<4x4xbf16>
    %19 = vector.extract_strided_slice %7 {offsets = [0, 0], sizes = [4, 132], strides = [1, 1]} : vector<4x136xbf16> to vector<4x132xbf16>
    %20 = tpu.concatenate %18, %19 in 1 : vector<4x4xbf16>, vector<4x132xbf16> -> vector<4x136xbf16>
    %21 = vector.extract_strided_slice %7 {offsets = [0, 133], sizes = [4, 3], strides = [1, 1]} : vector<4x136xbf16> to vector<4x3xbf16>
    %22 = vector.extract_strided_slice %7 {offsets = [0, 0], sizes = [4, 133], strides = [1, 1]} : vector<4x136xbf16> to vector<4x133xbf16>
    %23 = tpu.concatenate %21, %22 in 1 : vector<4x3xbf16>, vector<4x133xbf16> -> vector<4x136xbf16>
    %24 = vector.extract_strided_slice %7 {offsets = [0, 134], sizes = [4, 2], strides = [1, 1]} : vector<4x136xbf16> to vector<4x2xbf16>
    %25 = vector.extract_strided_slice %7 {offsets = [0, 0], sizes = [4, 134], strides = [1, 1]} : vector<4x136xbf16> to vector<4x134xbf16>
    %26 = tpu.concatenate %24, %25 in 1 : vector<4x2xbf16>, vector<4x134xbf16> -> vector<4x136xbf16>
    %27 = vector.extract_strided_slice %7 {offsets = [0, 135], sizes = [4, 1], strides = [1, 1]} : vector<4x136xbf16> to vector<4x1xbf16>
    %28 = vector.extract_strided_slice %7 {offsets = [0, 0], sizes = [4, 135], strides = [1, 1]} : vector<4x136xbf16> to vector<4x135xbf16>
    %29 = tpu.concatenate %27, %28 in 1 : vector<4x1xbf16>, vector<4x135xbf16> -> vector<4x136xbf16>
    %30 = vector.extract_strided_slice %7 {offsets = [0, 1], sizes = [4, 135], strides = [1, 1]} : vector<4x136xbf16> to vector<4x135xbf16>
    %31 = vector.extract_strided_slice %7 {offsets = [0, 0], sizes = [4, 1], strides = [1, 1]} : vector<4x136xbf16> to vector<4x1xbf16>
    %32 = tpu.concatenate %30, %31 in 1 : vector<4x135xbf16>, vector<4x1xbf16> -> vector<4x136xbf16>
    %33 = vector.extract_strided_slice %7 {offsets = [0, 2], sizes = [4, 134], strides = [1, 1]} : vector<4x136xbf16> to vector<4x134xbf16>
    %34 = vector.extract_strided_slice %7 {offsets = [0, 0], sizes = [4, 2], strides = [1, 1]} : vector<4x136xbf16> to vector<4x2xbf16>
    %35 = tpu.concatenate %33, %34 in 1 : vector<4x134xbf16>, vector<4x2xbf16> -> vector<4x136xbf16>
    %36 = vector.extract_strided_slice %7 {offsets = [0, 3], sizes = [4, 133], strides = [1, 1]} : vector<4x136xbf16> to vector<4x133xbf16>
    %37 = vector.extract_strided_slice %7 {offsets = [0, 0], sizes = [4, 3], strides = [1, 1]} : vector<4x136xbf16> to vector<4x3xbf16>
    %38 = tpu.concatenate %36, %37 in 1 : vector<4x133xbf16>, vector<4x3xbf16> -> vector<4x136xbf16>
    %39 = vector.extract_strided_slice %7 {offsets = [0, 4], sizes = [4, 132], strides = [1, 1]} : vector<4x136xbf16> to vector<4x132xbf16>
    %40 = vector.extract_strided_slice %7 {offsets = [0, 0], sizes = [4, 4], strides = [1, 1]} : vector<4x136xbf16> to vector<4x4xbf16>
    %41 = tpu.concatenate %39, %40 in 1 : vector<4x132xbf16>, vector<4x4xbf16> -> vector<4x136xbf16>
    %42 = vector.extract_strided_slice %7 {offsets = [0, 5], sizes = [4, 131], strides = [1, 1]} : vector<4x136xbf16> to vector<4x131xbf16>
    %43 = vector.extract_strided_slice %7 {offsets = [0, 0], sizes = [4, 5], strides = [1, 1]} : vector<4x136xbf16> to vector<4x5xbf16>
    %44 = tpu.concatenate %42, %43 in 1 : vector<4x131xbf16>, vector<4x5xbf16> -> vector<4x136xbf16>
    %45 = vector.extract_strided_slice %7 {offsets = [0, 6], sizes = [4, 130], strides = [1, 1]} : vector<4x136xbf16> to vector<4x130xbf16>
    %46 = vector.extract_strided_slice %7 {offsets = [0, 0], sizes = [4, 6], strides = [1, 1]} : vector<4x136xbf16> to vector<4x6xbf16>
    %47 = tpu.concatenate %45, %46 in 1 : vector<4x130xbf16>, vector<4x6xbf16> -> vector<4x136xbf16>
    %48 = tpu.concatenate %14, %17, %20, %23, %26, %29, %7, %32, %35, %38, %41, %44, %47 in 0 : vector<4x136xbf16>, vector<4x136xbf16>, vector<4x136xbf16>, vector<4x136xbf16>, vector<4x136xbf16>, vector<4x136xbf16>, vector<4x136xbf16>, vector<4x136xbf16>, vector<4x136xbf16>, vector<4x136xbf16>, vector<4x136xbf16>, vector<4x136xbf16>, vector<4x136xbf16> -> vector<52x136xbf16>
    %cst_12 = arith.constant dense<0.000000e+00> : vector<144x136xf32>
    %49 = tpu.matmul %8, %48, %cst_12 {dimension_numbers = #tpu.dot_dimension_numbers<[1], [0], [0], [1], [0, 0, 1, 1], [], []>} : vector<144x52xbf16>, vector<52x136xbf16>, vector<144x136xf32> -> vector<144x136xf32>
    %50 = vector.broadcast %9 : vector<144x1xf32> to vector<144x136xf32>
    %51 = arith.addf %49, %50 : vector<144x136xf32>
    %cst_13 = arith.constant 0.000000e+00 : f32
    %52 = vector.broadcast %cst_13 : f32 to vector<144x136xf32>
    %53 = arith.maximumf %51, %52 : vector<144x136xf32>
    %54 = vector.extract_strided_slice %53 {offsets = [0, 1], sizes = [144, 135], strides = [1, 1]} : vector<144x136xf32> to vector<144x135xf32>
    %55 = vector.extract_strided_slice %53 {offsets = [0, 0], sizes = [144, 1], strides = [1, 1]} : vector<144x136xf32> to vector<144x1xf32>
    %56 = tpu.concatenate %54, %55 in 1 : vector<144x135xf32>, vector<144x1xf32> -> vector<144x136xf32>
    %57 = arith.maximumf %53, %56 : vector<144x136xf32>
    %58 = vector.extract_strided_slice %57 {offsets = [0, 2], sizes = [144, 134], strides = [1, 1]} : vector<144x136xf32> to vector<144x134xf32>
    %59 = vector.extract_strided_slice %57 {offsets = [0, 0], sizes = [144, 2], strides = [1, 1]} : vector<144x136xf32> to vector<144x2xf32>
    %60 = tpu.concatenate %58, %59 in 1 : vector<144x134xf32>, vector<144x2xf32> -> vector<144x136xf32>
    %61 = arith.maximumf %57, %60 : vector<144x136xf32>
    %62 = vector.extract_strided_slice %61 {offsets = [0, 4], sizes = [144, 132], strides = [1, 1]} : vector<144x136xf32> to vector<144x132xf32>
    %63 = vector.extract_strided_slice %61 {offsets = [0, 0], sizes = [144, 4], strides = [1, 1]} : vector<144x136xf32> to vector<144x4xf32>
    %64 = tpu.concatenate %62, %63 in 1 : vector<144x132xf32>, vector<144x4xf32> -> vector<144x136xf32>
    %65 = arith.maximumf %61, %64 : vector<144x136xf32>
    %66 = vector.extract_strided_slice %65 {offsets = [0, 8], sizes = [144, 128], strides = [1, 1]} : vector<144x136xf32> to vector<144x128xf32>
    %67 = vector.extract_strided_slice %65 {offsets = [0, 0], sizes = [144, 8], strides = [1, 1]} : vector<144x136xf32> to vector<144x8xf32>
    %68 = tpu.concatenate %66, %67 in 1 : vector<144x128xf32>, vector<144x8xf32> -> vector<144x136xf32>
    %69 = arith.maximumf %65, %68 : vector<144x136xf32>
    %70 = vector.extract_strided_slice %69 {offsets = [0, 9], sizes = [144, 127], strides = [1, 1]} : vector<144x136xf32> to vector<144x127xf32>
    %71 = vector.extract_strided_slice %69 {offsets = [0, 0], sizes = [144, 9], strides = [1, 1]} : vector<144x136xf32> to vector<144x9xf32>
    %72 = tpu.concatenate %70, %71 in 1 : vector<144x127xf32>, vector<144x9xf32> -> vector<144x136xf32>
    %73 = arith.maximumf %69, %72 : vector<144x136xf32>
    %74 = arith.mulf %73, %73 : vector<144x136xf32>
    %cst_14 = arith.constant dense<0.000000e+00> : vector<4x136xf32>
    %75 = tpu.matmul %10, %74, %cst_14 {dimension_numbers = #tpu.dot_dimension_numbers<[1], [0], [0], [1], [0, 0, 1, 1], [], []>} : vector<4x144xf32>, vector<144x136xf32>, vector<4x136xf32> -> vector<4x136xf32>
    %cst_15 = arith.constant 1.000000e-24 : f32
    %76 = vector.broadcast %cst_15 : f32 to vector<4x136xf32>
    %77 = arith.maximumf %75, %76 : vector<4x136xf32>
    %78 = math.rsqrt %77 : vector<4x136xf32>
    %cst_16 = arith.constant dense<0.000000e+00> : vector<144x136xf32>
    %79 = tpu.matmul %11, %78, %cst_16 {dimension_numbers = #tpu.dot_dimension_numbers<[1], [0], [0], [1], [0, 0, 1, 1], [], []>} : vector<144x4xf32>, vector<4x136xf32>, vector<144x136xf32> -> vector<144x136xf32>
    %80 = arith.mulf %73, %79 : vector<144x136xf32>
    %81 = arith.truncf %80 : vector<144x136xf32> to vector<144x136xbf16>
    %cst_17 = arith.constant 0.000000e+00 : bf16
    %82 = vector.broadcast %cst_17 : bf16 to vector<144x6xbf16>
    %83 = vector.extract_strided_slice %81 {offsets = [0, 6], sizes = [144, 32], strides = [1, 1]} : vector<144x136xbf16> to vector<144x32xbf16>
    %84 = vector.extract_strided_slice %81 {offsets = [0, 74], sizes = [144, 32], strides = [1, 1]} : vector<144x136xbf16> to vector<144x32xbf16>
    %85 = tpu.concatenate %82, %83, %82, %82, %84, %82 in 1 : vector<144x6xbf16>, vector<144x32xbf16>, vector<144x6xbf16>, vector<144x6xbf16>, vector<144x32xbf16>, vector<144x6xbf16> -> vector<144x88xbf16>
    %c0_18 = arith.constant 0 : index
    %c0_19 = arith.constant 0 : index
    %86 = vector.load %arg4[%c0_18, %c0_19] : memref<144x1872xbf16, #tpu.memory_space<vmem>>, vector<144x1872xbf16>
    %c0_20 = arith.constant 0 : index
    %c0_21 = arith.constant 0 : index
    %87 = vector.load %arg5[%c0_20, %c0_21] : memref<144x1xf32, #tpu.memory_space<vmem>>, vector<144x1xf32>
    %c0_22 = arith.constant 0 : index
    %c0_23 = arith.constant 0 : index
    %88 = vector.load %arg6[%c0_22, %c0_23] : memref<4x144xf32, #tpu.memory_space<vmem>>, vector<4x144xf32>
    %c0_24 = arith.constant 0 : index
    %c0_25 = arith.constant 0 : index
    %89 = vector.load %arg7[%c0_24, %c0_25] : memref<144x4xf32, #tpu.memory_space<vmem>>, vector<144x4xf32>
    %90 = vector.extract_strided_slice %85 {offsets = [0, 82], sizes = [144, 6], strides = [1, 1]} : vector<144x88xbf16> to vector<144x6xbf16>
    %91 = vector.extract_strided_slice %85 {offsets = [0, 0], sizes = [144, 82], strides = [1, 1]} : vector<144x88xbf16> to vector<144x82xbf16>
    %92 = tpu.concatenate %90, %91 in 1 : vector<144x6xbf16>, vector<144x82xbf16> -> vector<144x88xbf16>
    %93 = vector.extract_strided_slice %85 {offsets = [0, 83], sizes = [144, 5], strides = [1, 1]} : vector<144x88xbf16> to vector<144x5xbf16>
    %94 = vector.extract_strided_slice %85 {offsets = [0, 0], sizes = [144, 83], strides = [1, 1]} : vector<144x88xbf16> to vector<144x83xbf16>
    %95 = tpu.concatenate %93, %94 in 1 : vector<144x5xbf16>, vector<144x83xbf16> -> vector<144x88xbf16>
    %96 = vector.extract_strided_slice %85 {offsets = [0, 84], sizes = [144, 4], strides = [1, 1]} : vector<144x88xbf16> to vector<144x4xbf16>
    %97 = vector.extract_strided_slice %85 {offsets = [0, 0], sizes = [144, 84], strides = [1, 1]} : vector<144x88xbf16> to vector<144x84xbf16>
    %98 = tpu.concatenate %96, %97 in 1 : vector<144x4xbf16>, vector<144x84xbf16> -> vector<144x88xbf16>
    %99 = vector.extract_strided_slice %85 {offsets = [0, 85], sizes = [144, 3], strides = [1, 1]} : vector<144x88xbf16> to vector<144x3xbf16>
    %100 = vector.extract_strided_slice %85 {offsets = [0, 0], sizes = [144, 85], strides = [1, 1]} : vector<144x88xbf16> to vector<144x85xbf16>
    %101 = tpu.concatenate %99, %100 in 1 : vector<144x3xbf16>, vector<144x85xbf16> -> vector<144x88xbf16>
    %102 = vector.extract_strided_slice %85 {offsets = [0, 86], sizes = [144, 2], strides = [1, 1]} : vector<144x88xbf16> to vector<144x2xbf16>
    %103 = vector.extract_strided_slice %85 {offsets = [0, 0], sizes = [144, 86], strides = [1, 1]} : vector<144x88xbf16> to vector<144x86xbf16>
    %104 = tpu.concatenate %102, %103 in 1 : vector<144x2xbf16>, vector<144x86xbf16> -> vector<144x88xbf16>
    %105 = vector.extract_strided_slice %85 {offsets = [0, 87], sizes = [144, 1], strides = [1, 1]} : vector<144x88xbf16> to vector<144x1xbf16>
    %106 = vector.extract_strided_slice %85 {offsets = [0, 0], sizes = [144, 87], strides = [1, 1]} : vector<144x88xbf16> to vector<144x87xbf16>
    %107 = tpu.concatenate %105, %106 in 1 : vector<144x1xbf16>, vector<144x87xbf16> -> vector<144x88xbf16>
    %108 = vector.extract_strided_slice %85 {offsets = [0, 1], sizes = [144, 87], strides = [1, 1]} : vector<144x88xbf16> to vector<144x87xbf16>
    %109 = vector.extract_strided_slice %85 {offsets = [0, 0], sizes = [144, 1], strides = [1, 1]} : vector<144x88xbf16> to vector<144x1xbf16>
    %110 = tpu.concatenate %108, %109 in 1 : vector<144x87xbf16>, vector<144x1xbf16> -> vector<144x88xbf16>
    %111 = vector.extract_strided_slice %85 {offsets = [0, 2], sizes = [144, 86], strides = [1, 1]} : vector<144x88xbf16> to vector<144x86xbf16>
    %112 = vector.extract_strided_slice %85 {offsets = [0, 0], sizes = [144, 2], strides = [1, 1]} : vector<144x88xbf16> to vector<144x2xbf16>
    %113 = tpu.concatenate %111, %112 in 1 : vector<144x86xbf16>, vector<144x2xbf16> -> vector<144x88xbf16>
    %114 = vector.extract_strided_slice %85 {offsets = [0, 3], sizes = [144, 85], strides = [1, 1]} : vector<144x88xbf16> to vector<144x85xbf16>
    %115 = vector.extract_strided_slice %85 {offsets = [0, 0], sizes = [144, 3], strides = [1, 1]} : vector<144x88xbf16> to vector<144x3xbf16>
    %116 = tpu.concatenate %114, %115 in 1 : vector<144x85xbf16>, vector<144x3xbf16> -> vector<144x88xbf16>
    %117 = vector.extract_strided_slice %85 {offsets = [0, 4], sizes = [144, 84], strides = [1, 1]} : vector<144x88xbf16> to vector<144x84xbf16>
    %118 = vector.extract_strided_slice %85 {offsets = [0, 0], sizes = [144, 4], strides = [1, 1]} : vector<144x88xbf16> to vector<144x4xbf16>
    %119 = tpu.concatenate %117, %118 in 1 : vector<144x84xbf16>, vector<144x4xbf16> -> vector<144x88xbf16>
    %120 = vector.extract_strided_slice %85 {offsets = [0, 5], sizes = [144, 83], strides = [1, 1]} : vector<144x88xbf16> to vector<144x83xbf16>
    %121 = vector.extract_strided_slice %85 {offsets = [0, 0], sizes = [144, 5], strides = [1, 1]} : vector<144x88xbf16> to vector<144x5xbf16>
    %122 = tpu.concatenate %120, %121 in 1 : vector<144x83xbf16>, vector<144x5xbf16> -> vector<144x88xbf16>
    %123 = vector.extract_strided_slice %85 {offsets = [0, 6], sizes = [144, 82], strides = [1, 1]} : vector<144x88xbf16> to vector<144x82xbf16>
    %124 = vector.extract_strided_slice %85 {offsets = [0, 0], sizes = [144, 6], strides = [1, 1]} : vector<144x88xbf16> to vector<144x6xbf16>
    %125 = tpu.concatenate %123, %124 in 1 : vector<144x82xbf16>, vector<144x6xbf16> -> vector<144x88xbf16>
    %126 = tpu.concatenate %92, %95, %98, %101, %104, %107, %85, %110, %113, %116, %119, %122, %125 in 0 : vector<144x88xbf16>, vector<144x88xbf16>, vector<144x88xbf16>, vector<144x88xbf16>, vector<144x88xbf16>, vector<144x88xbf16>, vector<144x88xbf16>, vector<144x88xbf16>, vector<144x88xbf16>, vector<144x88xbf16>, vector<144x88xbf16>, vector<144x88xbf16>, vector<144x88xbf16> -> vector<1872x88xbf16>
    %cst_26 = arith.constant dense<0.000000e+00> : vector<144x88xf32>
    %127 = tpu.matmul %86, %126, %cst_26 {dimension_numbers = #tpu.dot_dimension_numbers<[1], [0], [0], [1], [0, 0, 1, 1], [], []>} : vector<144x1872xbf16>, vector<1872x88xbf16>, vector<144x88xf32> -> vector<144x88xf32>
    %128 = vector.broadcast %87 : vector<144x1xf32> to vector<144x88xf32>
    %129 = arith.addf %127, %128 : vector<144x88xf32>
    %cst_27 = arith.constant 0.000000e+00 : f32
    %130 = vector.broadcast %cst_27 : f32 to vector<144x88xf32>
    %131 = arith.maximumf %129, %130 : vector<144x88xf32>
    %132 = vector.extract_strided_slice %131 {offsets = [0, 1], sizes = [144, 87], strides = [1, 1]} : vector<144x88xf32> to vector<144x87xf32>
    %133 = vector.extract_strided_slice %131 {offsets = [0, 0], sizes = [144, 1], strides = [1, 1]} : vector<144x88xf32> to vector<144x1xf32>
    %134 = tpu.concatenate %132, %133 in 1 : vector<144x87xf32>, vector<144x1xf32> -> vector<144x88xf32>
    %135 = arith.maximumf %131, %134 : vector<144x88xf32>
    %136 = vector.extract_strided_slice %135 {offsets = [0, 2], sizes = [144, 86], strides = [1, 1]} : vector<144x88xf32> to vector<144x86xf32>
    %137 = vector.extract_strided_slice %135 {offsets = [0, 0], sizes = [144, 2], strides = [1, 1]} : vector<144x88xf32> to vector<144x2xf32>
    %138 = tpu.concatenate %136, %137 in 1 : vector<144x86xf32>, vector<144x2xf32> -> vector<144x88xf32>
    %139 = arith.maximumf %135, %138 : vector<144x88xf32>
    %140 = vector.extract_strided_slice %139 {offsets = [0, 4], sizes = [144, 84], strides = [1, 1]} : vector<144x88xf32> to vector<144x84xf32>
    %141 = vector.extract_strided_slice %139 {offsets = [0, 0], sizes = [144, 4], strides = [1, 1]} : vector<144x88xf32> to vector<144x4xf32>
    %142 = tpu.concatenate %140, %141 in 1 : vector<144x84xf32>, vector<144x4xf32> -> vector<144x88xf32>
    %143 = arith.maximumf %139, %142 : vector<144x88xf32>
    %144 = vector.extract_strided_slice %143 {offsets = [0, 8], sizes = [144, 80], strides = [1, 1]} : vector<144x88xf32> to vector<144x80xf32>
    %145 = vector.extract_strided_slice %143 {offsets = [0, 0], sizes = [144, 8], strides = [1, 1]} : vector<144x88xf32> to vector<144x8xf32>
    %146 = tpu.concatenate %144, %145 in 1 : vector<144x80xf32>, vector<144x8xf32> -> vector<144x88xf32>
    %147 = arith.maximumf %143, %146 : vector<144x88xf32>
    %148 = vector.extract_strided_slice %147 {offsets = [0, 9], sizes = [144, 79], strides = [1, 1]} : vector<144x88xf32> to vector<144x79xf32>
    %149 = vector.extract_strided_slice %147 {offsets = [0, 0], sizes = [144, 9], strides = [1, 1]} : vector<144x88xf32> to vector<144x9xf32>
    %150 = tpu.concatenate %148, %149 in 1 : vector<144x79xf32>, vector<144x9xf32> -> vector<144x88xf32>
    %151 = arith.maximumf %147, %150 : vector<144x88xf32>
    %152 = arith.mulf %151, %151 : vector<144x88xf32>
    %cst_28 = arith.constant dense<0.000000e+00> : vector<4x88xf32>
    %153 = tpu.matmul %88, %152, %cst_28 {dimension_numbers = #tpu.dot_dimension_numbers<[1], [0], [0], [1], [0, 0, 1, 1], [], []>} : vector<4x144xf32>, vector<144x88xf32>, vector<4x88xf32> -> vector<4x88xf32>
    %cst_29 = arith.constant 1.000000e-24 : f32
    %154 = vector.broadcast %cst_29 : f32 to vector<4x88xf32>
    %155 = arith.maximumf %153, %154 : vector<4x88xf32>
    %156 = math.rsqrt %155 : vector<4x88xf32>
    %cst_30 = arith.constant dense<0.000000e+00> : vector<144x88xf32>
    %157 = tpu.matmul %89, %156, %cst_30 {dimension_numbers = #tpu.dot_dimension_numbers<[1], [0], [0], [1], [0, 0, 1, 1], [], []>} : vector<144x4xf32>, vector<4x88xf32>, vector<144x88xf32> -> vector<144x88xf32>
    %158 = arith.mulf %151, %157 : vector<144x88xf32>
    %159 = vector.extract_strided_slice %158 {offsets = [0, 6], sizes = [144, 8], strides = [1, 1]} : vector<144x88xf32> to vector<144x8xf32>
    %c0_31 = arith.constant 0 : index
    %c0_32 = arith.constant 0 : index
    %c0_33 = arith.constant 0 : index
    %160 = vector.load %arg8[%c0_31, %c0_32, %c0_33] : memref<2x144x8xf32, #tpu.memory_space<vmem>>, vector<1x144x8xf32>
    %161 = vector.shape_cast %160 : vector<1x144x8xf32> to vector<144x8xf32>
    %162 = vector.shape_cast %159 : vector<144x8xf32> to vector<1x144x8xf32>
    tpu.vector_store %arg8[%c0_31, %c0_32, %c0_33], %162 {strides = array<i32>} : memref<2x144x8xf32, #tpu.memory_space<vmem>>, vector<1x144x8xf32>,
    %163 = vector.extract_strided_slice %158 {offsets = [0, 50], sizes = [144, 8], strides = [1, 1]} : vector<144x88xf32> to vector<144x8xf32>
    %c1_34 = arith.constant 1 : index
    %c0_35 = arith.constant 0 : index
    %c0_36 = arith.constant 0 : index
    %164 = vector.load %arg8[%c1_34, %c0_35, %c0_36] : memref<2x144x8xf32, #tpu.memory_space<vmem>>, vector<1x144x8xf32>
    %165 = vector.shape_cast %164 : vector<1x144x8xf32> to vector<144x8xf32>
    %166 = vector.shape_cast %163 : vector<144x8xf32> to vector<1x144x8xf32>
    tpu.vector_store %arg8[%c1_34, %c0_35, %c0_36], %166 {strides = array<i32>} : memref<2x144x8xf32, #tpu.memory_space<vmem>>, vector<1x144x8xf32>,
    return
  }
  func.func @transform_0(%arg0: i32) -> (i32, i32, i32) {
    %c0_i32 = arith.constant 0 : i32
    %c0_i32_0 = arith.constant 0 : i32
    %c0_i32_1 = arith.constant 0 : i32
    return %arg0, %c0_i32, %c0_i32_0 : i32, i32, i32
  }
  func.func @transform_1(%arg0: i32) -> (i32, i32) {
    %c0_i32 = arith.constant 0 : i32
    %c0_i32_0 = arith.constant 0 : i32
    %c0_i32_1 = arith.constant 0 : i32
    return %c0_i32, %c0_i32_0 : i32, i32
  }
  func.func @transform_2(%arg0: i32) -> (i32, i32) {
    %c0_i32 = arith.constant 0 : i32
    %c0_i32_0 = arith.constant 0 : i32
    %c0_i32_1 = arith.constant 0 : i32
    return %c0_i32, %c0_i32_0 : i32, i32
  }
  func.func @transform_3(%arg0: i32) -> (i32, i32) {
    %c0_i32 = arith.constant 0 : i32
    %c0_i32_0 = arith.constant 0 : i32
    %c0_i32_1 = arith.constant 0 : i32
    return %c0_i32, %c0_i32_0 : i32, i32
  }
  func.func @transform_4(%arg0: i32) -> (i32, i32) {
    %c0_i32 = arith.constant 0 : i32
    %c0_i32_0 = arith.constant 0 : i32
    %c0_i32_1 = arith.constant 0 : i32
    return %c0_i32, %c0_i32_0 : i32, i32
  }
  func.func @transform_5(%arg0: i32) -> (i32, i32) {
    %c0_i32 = arith.constant 0 : i32
    %c0_i32_0 = arith.constant 0 : i32
    %c0_i32_1 = arith.constant 0 : i32
    return %c0_i32, %c0_i32_0 : i32, i32
  }
  func.func @transform_6(%arg0: i32) -> (i32, i32) {
    %c0_i32 = arith.constant 0 : i32
    %c0_i32_0 = arith.constant 0 : i32
    %c0_i32_1 = arith.constant 0 : i32
    return %c0_i32, %c0_i32_0 : i32, i32
  }
  func.func @transform_7(%arg0: i32) -> (i32, i32, i32) {
    %c0_i32 = arith.constant 0 : i32
    %c0_i32_0 = arith.constant 0 : i32
    %c0_i32_1 = arith.constant 0 : i32
    return %arg0, %c0_i32, %c0_i32_0 : i32, i32, i32
  }
}

</mosaic_0001>

<llo_original>
// kernel: inp_model_2.1
$region0: #{inp_model_2.1}
  #allocation0 [shape = 'u32[]', space=smem, size = 0x4, offset = 0x4, fixed_abs, tag = 'smem constant byte address 0x4 - core index']
  #allocation1 [shape = 'u32[144,128]{1,0:T(1,128)}', space=vmem, size = 0x12000, scoped, tag = 'internal scratch']
  %s0 = inlined_call_operand.vmem [shape: f32[4,4,56], index: 0, kind: input, shape index: {}]
  %s1 = inlined_call_operand.vmem [shape: bf16[144,52], index: 1, kind: input, shape index: {}]
  %s2 = inlined_call_operand.vmem [shape: f32[144,1], index: 2, kind: input, shape index: {}]
  %s3 = inlined_call_operand.vmem [shape: bf16[144,1872], index: 3, kind: input, shape index: {}]
  %s4 = inlined_call_operand.vmem [shape: f32[144,1], index: 4, kind: input, shape index: {}]
  %s5 = inlined_call_operand.vmem [shape: f32[4,144], index: 5, kind: input, shape index: {}]
  %s6 = inlined_call_operand.vmem [shape: f32[144,4], index: 6, kind: input, shape index: {}]
  %s7 = inlined_call_operand.vmem [shape: f32[4,144,8], index: 7, kind: output, shape index: {}]
  %s8 = sld [smem:[#allocation0]]
  $region61: #{inp_model_2.1} parent=0
    _
  %s10 = ssub.s32 1, %s8
  %s11 = scalar_select 0, %s10, %s8
  loop: start=0, step=1, limit=4
  $region2: #{inp_model_2.1} parent=0 // loop_pre_header
    _
  $region3: #{inp_model_2.1} parent=0 // loop_header
    %s13 = sphi 0, %s17
    %p14 = scmp.ge.s32.totalorder %s13, 4
    %s23 = sphi 0, %s25
    %s26 = sphi 0, %s23
    %s27 = sphi 0, %s26
    %s43 = sphi 0, %s27
    %s47 = sphi 0, %s47
    %s49 = sphi 0, %s47
    %s50 = sphi 0, %s49
    %s64 = sphi 0, %s50
    %s68 = sphi 0, %s68
    %s70 = sphi 0, %s68
    %s71 = sphi 0, %s70
    %s85 = sphi 0, %s71
    %s89 = sphi 0, %s89
    %s91 = sphi 0, %s89
    %s92 = sphi 0, %s91
    %s106 = sphi 0, %s92
    %s110 = sphi 0, %s110
    %s112 = sphi 0, %s110
    %s113 = sphi 0, %s112
    %s127 = sphi 0, %s113
    %s131 = sphi 0, %s131
    %s133 = sphi 0, %s131
    %s134 = sphi 0, %s133
    %s148 = sphi 0, %s134
    %s152 = sphi 0, %s152
    %s154 = sphi 0, %s152
    %s155 = sphi 0, %s154
    %s169 = sphi 0, %s155
    %s175 = sphi 0, %s177
    %s178 = sphi 0, %s175
    %s179 = sphi 0, %s178
    %s195 = sphi 0, %s179
  $region4: #{inp_model_2.1} parent=0 // loop_header_branch
    %16 = sbr.rel (%p14) target = $region8
  $region5: #{inp_model_2.1} parent=0 // loop_body
    %s18 = ssub.s32 %s13, 1
    %s19 = ssub.s32 %s13, 2
    %s20 = sadd.s32 %s13, 1
    %s21 = ssub.s32 %s13, %s20
    %p22 = scmp.eq.s32.totalorder %s21, 0
    %s24 = sadd.s32 %s23, 1
    %s25 = scalar_select %p22, %s23, %s24
    %p28 = pneg %p22
    %p29 = scmp.eq.s32.totalorder %s13, 1
    %p30 = por %p28, %p29
    %p31 = scmp.ne.s32.totalorder %s23, %s26
    %p32 = scmp.eq.s32.totalorder %s13, 0
    %p33 = por %p31, %p32
    %p34 = scmp.ne.s32.totalorder %s23, %s26
    %p35 = scmp.eq.s32.totalorder %s18, 1
    %p36 = por %p34, %p35
    %p37 = scmp.ne.s32.totalorder %s26, %s27
    %p38 = scmp.eq.s32.totalorder %s18, 0
    %p39 = por %p37, %p38
    %p40 = scmp.ne.s32.totalorder %s26, %s27
    %p41 = scmp.eq.s32.totalorder %s19, 1
    %p42 = por %p40, %p41
    %p44 = scmp.ne.s32.totalorder %s27, %s43
    %p45 = scmp.eq.s32.totalorder %s19, 0
    %p46 = por %p44, %p45
    %s48 = sadd.s32 %s47, 1
    %p51 = scmp.eq.s32.totalorder %s13, 1
    %p52 = scmp.ne.s32.totalorder %s47, %s49
    %p53 = scmp.eq.s32.totalorder %s13, 0
    %p54 = por %p52, %p53
    %p55 = scmp.ne.s32.totalorder %s47, %s49
    %p56 = scmp.eq.s32.totalorder %s18, 1
    %p57 = por %p55, %p56
    %p58 = scmp.ne.s32.totalorder %s49, %s50
    %p59 = scmp.eq.s32.totalorder %s18, 0
    %p60 = por %p58, %p59
    %p61 = scmp.ne.s32.totalorder %s49, %s50
    %p62 = scmp.eq.s32.totalorder %s19, 1
    %p63 = por %p61, %p62
    %p65 = scmp.ne.s32.totalorder %s50, %s64
    %p66 = scmp.eq.s32.totalorder %s19, 0
    %p67 = por %p65, %p66
    %s69 = sadd.s32 %s68, 1
    %p72 = scmp.eq.s32.totalorder %s13, 1
    %p73 = scmp.ne.s32.totalorder %s68, %s70
    %p74 = scmp.eq.s32.totalorder %s13, 0
    %p75 = por %p73, %p74
    %p76 = scmp.ne.s32.totalorder %s68, %s70
    %p77 = scmp.eq.s32.totalorder %s18, 1
    %p78 = por %p76, %p77
    %p79 = scmp.ne.s32.totalorder %s70, %s71
    %p80 = scmp.eq.s32.totalorder %s18, 0
    %p81 = por %p79, %p80
    %p82 = scmp.ne.s32.totalorder %s70, %s71
    %p83 = scmp.eq.s32.totalorder %s19, 1
    %p84 = por %p82, %p83
    %p86 = scmp.ne.s32.totalorder %s71, %s85
    %p87 = scmp.eq.s32.totalorder %s19, 0
    %p88 = por %p86, %p87
    %s90 = sadd.s32 %s89, 1
    %p93 = scmp.eq.s32.totalorder %s13, 1
    %p94 = scmp.ne.s32.totalorder %s89, %s91
    %p95 = scmp.eq.s32.totalorder %s13, 0
    %p96 = por %p94, %p95
    %p97 = scmp.ne.s32.totalorder %s89, %s91
    %p98 = scmp.eq.s32.totalorder %s18, 1
    %p99 = por %p97, %p98
    %p100 = scmp.ne.s32.totalorder %s91, %s92
    %p101 = scmp.eq.s32.totalorder %s18, 0
    %p102 = por %p100, %p101
    %p103 = scmp.ne.s32.totalorder %s91, %s92
    %p104 = scmp.eq.s32.totalorder %s19, 1
    %p105 = por %p103, %p104
    %p107 = scmp.ne.s32.totalorder %s92, %s106
    %p108 = scmp.eq.s32.totalorder %s19, 0
    %p109 = por %p107, %p108
    %s111 = sadd.s32 %s110, 1
    %p114 = scmp.eq.s32.totalorder %s13, 1
    %p115 = scmp.ne.s32.totalorder %s110, %s112
    %p116 = scmp.eq.s32.totalorder %s13, 0
    %p117 = por %p115, %p116
    %p118 = scmp.ne.s32.totalorder %s110, %s112
    %p119 = scmp.eq.s32.totalorder %s18, 1
    %p120 = por %p118, %p119
    %p121 = scmp.ne.s32.totalorder %s112, %s113
    %p122 = scmp.eq.s32.totalorder %s18, 0
    %p123 = por %p121, %p122
    %p124 = scmp.ne.s32.totalorder %s112, %s113
    %p125 = scmp.eq.s32.totalorder %s19, 1
    %p126 = por %p124, %p125
    %p128 = scmp.ne.s32.totalorder %s113, %s127
    %p129 = scmp.eq.s32.totalorder %s19, 0
    %p130 = por %p128, %p129
    %s132 = sadd.s32 %s131, 1
    %p135 = scmp.eq.s32.totalorder %s13, 1
    %p136 = scmp.ne.s32.totalorder %s131, %s133
    %p137 = scmp.eq.s32.totalorder %s13, 0
    %p138 = por %p136, %p137
    %p139 = scmp.ne.s32.totalorder %s131, %s133
    %p140 = scmp.eq.s32.totalorder %s18, 1
    %p141 = por %p139, %p140
    %p142 = scmp.ne.s32.totalorder %s133, %s134
    %p143 = scmp.eq.s32.totalorder %s18, 0
    %p144 = por %p142, %p143
    %p145 = scmp.ne.s32.totalorder %s133, %s134
    %p146 = scmp.eq.s32.totalorder %s19, 1
    %p147 = por %p145, %p146
    %p149 = scmp.ne.s32.totalorder %s134, %s148
    %p150 = scmp.eq.s32.totalorder %s19, 0
    %p151 = por %p149, %p150
    %s153 = sadd.s32 %s152, 1
    %p156 = scmp.eq.s32.totalorder %s13, 1
    %p157 = scmp.ne.s32.totalorder %s152, %s154
    %p158 = scmp.eq.s32.totalorder %s13, 0
    %p159 = por %p157, %p158
    %p160 = scmp.ne.s32.totalorder %s152, %s154
    %p161 = scmp.eq.s32.totalorder %s18, 1
    %p162 = por %p160, %p161
    %p163 = scmp.ne.s32.totalorder %s154, %s155
    %p164 = scmp.eq.s32.totalorder %s18, 0
    %p165 = por %p163, %p164
    %p166 = scmp.ne.s32.totalorder %s154, %s155
    %p167 = scmp.eq.s32.totalorder %s19, 1
    %p168 = por %p166, %p167
    %p170 = scmp.ne.s32.totalorder %s155, %s169
    %p171 = scmp.eq.s32.totalorder %s19, 0
    %p172 = por %p170, %p171
    %s173 = ssub.s32 %s13, %s20
    %p174 = scmp.eq.s32.totalorder %s173, 0
    %s176 = sadd.s32 %s175, 1
    %s177 = scalar_select %p174, %s175, %s176
    %p180 = pneg %p174
    %p181 = scmp.eq.s32.totalorder %s13, 1
    %p182 = por %p180, %p181
    %p183 = scmp.ne.s32.totalorder %s175, %s178
    %p184 = scmp.eq.s32.totalorder %s13, 0
    %p185 = por %p183, %p184
    %p186 = scmp.ne.s32.totalorder %s175, %s178
    %p187 = scmp.eq.s32.totalorder %s18, 1
    %p188 = por %p186, %p187
    %p189 = scmp.ne.s32.totalorder %s178, %s179
    %p190 = scmp.eq.s32.totalorder %s18, 0
    %p191 = por %p189, %p190
    %p192 = scmp.ne.s32.totalorder %s178, %s179
    %p193 = scmp.eq.s32.totalorder %s19, 1
    %p194 = por %p192, %p193
    %p196 = scmp.ne.s32.totalorder %s179, %s195
    %p197 = scmp.eq.s32.totalorder %s19, 0
    %p198 = por %p196, %p197
    %p199 = scmp.le.s32.totalorder 1, %s13
    %p200 = scmp.lt.s32.totalorder %s13, 3
    %p201 = pnand %p199, %p200
    %p202 = pneg %p201
    // Predicated region
    $region9: #{inp_model_2.1} parent=5 // pred_check
      _
    $region10: #{inp_model_2.1} parent=5 // pred_check_branch
      %204 = sbr.rel (%p201) target = $region12
    $region11: #{inp_model_2.1} parent=5 // pred_region
      %s205 = ssub.s32 %s13, 1
      // Predicated region
      $region13: #{inp_model_2.1} parent=11 // pred_check
        %p206 = pneg %p60
      $region14: #{inp_model_2.1} parent=11 // pred_check_branch
        %208 = sbr.rel (%p206) target = $region16
      $region15: #{inp_model_2.1} parent=11 // pred_region
        _
      $region16: #{inp_model_2.1} parent=11 // pred_fallthru
        _
      // Predicated region
      $region17: #{inp_model_2.1} parent=11 // pred_check
        %p209 = pneg %p81
      $region18: #{inp_model_2.1} parent=11 // pred_check_branch
        %211 = sbr.rel (%p209) target = $region20
      $region19: #{inp_model_2.1} parent=11 // pred_region
        _
      $region20: #{inp_model_2.1} parent=11 // pred_fallthru
        _
      // Predicated region
      $region21: #{inp_model_2.1} parent=11 // pred_check
        %p212 = pneg %p102
      $region22: #{inp_model_2.1} parent=11 // pred_check_branch
        %214 = sbr.rel (%p212) target = $region24
      $region23: #{inp_model_2.1} parent=11 // pred_region
        _
      $region24: #{inp_model_2.1} parent=11 // pred_fallthru
        _
      // Predicated region
      $region25: #{inp_model_2.1} parent=11 // pred_check
        %p215 = pneg %p123
      $region26: #{inp_model_2.1} parent=11 // pred_check_branch
        %217 = sbr.rel (%p215) target = $region28
      $region27: #{inp_model_2.1} parent=11 // pred_region
        _
      $region28: #{inp_model_2.1} parent=11 // pred_fallthru
        _
      // Predicated region
      $region29: #{inp_model_2.1} parent=11 // pred_check
        %p218 = pneg %p144
      $region30: #{inp_model_2.1} parent=11 // pred_check_branch
        %220 = sbr.rel (%p218) target = $region32
      $region31: #{inp_model_2.1} parent=11 // pred_region
        _
      $region32: #{inp_model_2.1} parent=11 // pred_fallthru
        _
      // Predicated region
      $region33: #{inp_model_2.1} parent=11 // pred_check
        %p221 = pneg %p165
      $region34: #{inp_model_2.1} parent=11 // pred_check_branch
        %223 = sbr.rel (%p221) target = $region36
      $region35: #{inp_model_2.1} parent=11 // pred_region
        _
      $region36: #{inp_model_2.1} parent=11 // pred_fallthru
        _
    $region12: #{inp_model_2.1} parent=5 // pred_fallthru
      _
    %p224 = scmp.lt.s32.totalorder %s13, 2
    // Predicated region
    $region37: #{inp_model_2.1} parent=5 // pred_check
      %p225 = pneg %p224
    $region38: #{inp_model_2.1} parent=5 // pred_check_branch
      %227 = sbr.rel (%p225) target = $region40
    $region39: #{inp_model_2.1} parent=5 // pred_region
      // Predicated region
      $region41: #{inp_model_2.1} parent=39 // pred_check
        %p228 = pneg %p33
      $region42: #{inp_model_2.1} parent=39 // pred_check_branch
        %230 = sbr.rel (%p228) target = $region44
      $region43: #{inp_model_2.1} parent=39 // pred_region
        %s231 = smul.u32 2, %s13
        %p232 = scmp.lt.s32.totalorder %s231, 3
        %s233 = scalar_select %p232, %s231, 3
        %s234 = smul.addr %s233, 4
        %s235 = scalar_lea.vmem %s0, %s234
        %s236 = smul.u32 2, %s13
      $region44: #{inp_model_2.1} parent=39 // pred_fallthru
        _
    $region40: #{inp_model_2.1} parent=5 // pred_fallthru
      _
    %p237 = scmp.le.s32.totalorder 1, %s13
    %p238 = scmp.lt.s32.totalorder %s13, 3
    %p239 = pnand %p237, %p238
    %p240 = pneg %p239
    // Predicated region
    $region45: #{inp_model_2.1} parent=5 // pred_check
      _
    $region46: #{inp_model_2.1} parent=5 // pred_check_branch
      %242 = sbr.rel (%p239) target = $region48
    $region47: #{inp_model_2.1} parent=5 // pred_region
      %s243 = ssub.s32 %s13, 1
      %s244 = smul.u32 2, %s18
      %p245 = scmp.lt.s32.totalorder %s244, 3
      %s246 = scalar_select %p245, %s244, 3
      %s247 = smul.addr %s246, 4
      %s248 = scalar_lea.vmem %s0, %s247
      %p249 = pneg %p39
      %p250 = pneg %p36
      %p251 = pneg %p60
      %p252 = pneg %p57
      %p253 = pneg %p81
      %p254 = pneg %p78
      %p255 = pneg %p102
      %p256 = pneg %p99
      %p257 = pneg %p123
      %p258 = pneg %p120
      %p259 = pneg %p144
      %p260 = pneg %p141
      %p261 = pneg %p165
      %p262 = pneg %p162
      %p263 = pneg %p191
      %p264 = pneg %p188
      %s265 = smul.u32 2, %s18
      %p266 = scmp.lt.s32.totalorder %s265, 3
      %s267 = scalar_select %p266, %s265, 3
      %s268 = smul.addr %s267, 18
      %s269 = smul.addr %s268, 8
      %s270 = scalar_lea.vmem %s7, %s269
      %s271 = smul.u32 2, %s18
      %p272 = scmp.lt.s32.totalorder %s271, 3
      %s273 = scalar_select %p272, %s271, 3
      %s274 = smul.addr %s273, 4
      %s275 = scalar_lea.vmem %s0, %s274
      %s276 = smul.u32 2, %s18
      %s277 = smul.u32 2, %s18
      %p278 = scmp.lt.s32.totalorder %s277, 3
      %s279 = scalar_select %p278, %s277, 3
      %s280 = smul.addr %s279, 18
      %s281 = smul.addr %s280, 8
      %s282 = scalar_lea.vmem %s7, %s281
      %s283 = smul.u32 2, %s18
      %v285 = vld [vmem:[%s275] sm:$0xf]
      %v286 = vpack.c.bf16 %v285, %v285
      %s287 = scalar_lea.vmem %s275, 4
      %v288 = vld [vmem:[%s287] sm:$0xf]
      %v289 = vpack.c.bf16 %v288, %v288
      %291 = vrot.lane.b32.xlu0 %v286, 6
      %v292 = vpop.permute.xlu0 %291
      %294 = vrot.lane.b32.xlu0 %v289, 74
      %v295 = vpop.permute.xlu0 %294
      %vm296 = vcmask 48128
      %v299 = vsel %vm296, 0, %v292
      %vm300 = vcmask 506880
      %v301 = vsel %vm300, %v299, 0
      %vm302 = vcmask 556032
      %v303 = vsel %vm302, %v301, 0
      %vm304 = vcmask 605184
      %v306 = vsel %vm304, %v303, %v295
      %vm307 = vcmask 15360
      %v308 = vsel %vm307, %v295, 0
      %v309 = vld [vmem:[%s1] sm:$0xf]
      %v310 = vld [vmem:[%s1 + $0x4] sm:$0xf]
      %v311 = vld [vmem:[%s1 + $0x8] sm:$0xf]
      %v312 = vld [vmem:[%s1 + $0xc] sm:$0xf]
      %v313 = vld [vmem:[%s1 + $0x10] sm:$0xf]
      %v314 = vld [vmem:[%s1 + $0x14] sm:$0xf]
      %v315 = vld [vmem:[%s1 + $0x18] sm:$0xf]
      %v316 = vld [vmem:[%s1 + $0x1c] sm:$0xf]
      %v317 = vld [vmem:[%s1 + $0x20] sm:$0xf]
      %v318 = vld [vmem:[%s1 + $0x24] sm:$0xf]
      %v319 = vld [vmem:[%s1 + $0x28] sm:$0xf]
      %v320 = vld [vmem:[%s1 + $0x2c] sm:$0xf]
      %v321 = vld [vmem:[%s1 + $0x30] sm:$0xf]
      %v322 = vld [vmem:[%s1 + $0x34] sm:$0xf]
      %v323 = vld [vmem:[%s1 + $0x38] sm:$0xf]
      %v324 = vld [vmem:[%s1 + $0x3c] sm:$0xf]
      %v325 = vld [vmem:[%s1 + $0x40] sm:$0xf]
      %v326 = vld [vmem:[%s1 + $0x44] sm:$0xf]
      %v327 = vld [vmem:[%s2] sm:$0xff]
      %v328 = vld [vmem:[%s2 + $0x8] sm:$0xff]
      %v329 = vld [vmem:[%s2 + $0x10] sm:$0xff]
      %v330 = vld [vmem:[%s2 + $0x18] sm:$0xff]
      %v331 = vld [vmem:[%s2 + $0x20] sm:$0xff]
      %v332 = vld [vmem:[%s2 + $0x28] sm:$0xff]
      %v333 = vld [vmem:[%s2 + $0x30] sm:$0xff]
      %v334 = vld [vmem:[%s2 + $0x38] sm:$0xff]
      %v335 = vld [vmem:[%s2 + $0x40] sm:$0xff]
      %v336 = vld [vmem:[%s2 + $0x48] sm:$0xff]
      %v337 = vld [vmem:[%s2 + $0x50] sm:$0xff]
      %v338 = vld [vmem:[%s2 + $0x58] sm:$0xff]
      %v339 = vld [vmem:[%s2 + $0x60] sm:$0xff]
      %v340 = vld [vmem:[%s2 + $0x68] sm:$0xff]
      %v341 = vld [vmem:[%s2 + $0x70] sm:$0xff]
      %v342 = vld [vmem:[%s2 + $0x78] sm:$0xff]
      %v343 = vld [vmem:[%s2 + $0x80] sm:$0xff]
      %v344 = vld [vmem:[%s2 + $0x88] sm:$0xff]
      %v345 = vld [vmem:[%s5] sm:$0xff]
      %v346 = vld [vmem:[%s6] sm:$0xff]
      %v347 = vld [vmem:[%s6 + $0x8] sm:$0xff]
      %v348 = vld [vmem:[%s6 + $0x10] sm:$0xff]
      %v349 = vld [vmem:[%s6 + $0x18] sm:$0xff]
      %v350 = vld [vmem:[%s6 + $0x20] sm:$0xff]
      %v351 = vld [vmem:[%s6 + $0x28] sm:$0xff]
      %v352 = vld [vmem:[%s6 + $0x30] sm:$0xff]
      %v353 = vld [vmem:[%s6 + $0x38] sm:$0xff]
      %v354 = vld [vmem:[%s6 + $0x40] sm:$0xff]
      %v355 = vld [vmem:[%s6 + $0x48] sm:$0xff]
      %v356 = vld [vmem:[%s6 + $0x50] sm:$0xff]
      %v357 = vld [vmem:[%s6 + $0x58] sm:$0xff]
      %v358 = vld [vmem:[%s6 + $0x60] sm:$0xff]
      %v359 = vld [vmem:[%s6 + $0x68] sm:$0xff]
      %v360 = vld [vmem:[%s6 + $0x70] sm:$0xff]
      %v361 = vld [vmem:[%s6 + $0x78] sm:$0xff]
      %v362 = vld [vmem:[%s6 + $0x80] sm:$0xff]
      %v363 = vld [vmem:[%s6 + $0x88] sm:$0xff]
      %365 = vrot.lane.b32.xlu0 %v308, 126
      %v366 = vpop.permute.xlu0 %365
      %368 = vrot.lane.b32.xlu0 %v306, 6
      %v369 = vpop.permute.xlu0 %368
      %370 = vrot.lane.b32.xlu0 %v308, 6
      %v371 = vpop.permute.xlu0 %370
      %vm372 = vcmask 48128
      %v373 = vsel %vm372, %v369, %v371
      %v376 = vsel %vm296, %v366, %v369
      %377 = vrot.lane.b32.xlu0 %v308, 125
      %v378 = vpop.permute.xlu0 %377
      %379 = vrot.lane.b32.xlu0 %v306, 5
      %v380 = vpop.permute.xlu0 %379
      %381 = vrot.lane.b32.xlu0 %v308, 5
      %v382 = vpop.permute.xlu0 %381
      %vm383 = vcmask 39936
      %v384 = vsel %vm383, %v380, %v382
      %vm385 = vcmask 39936
      %v388 = vsel %vm385, %v378, %v380
      %389 = vrot.lane.b32.xlu0 %v308, 124
      %v390 = vpop.permute.xlu0 %389
      %391 = vrot.lane.b32.xlu0 %v306, 4
      %v392 = vpop.permute.xlu0 %391
      %393 = vrot.lane.b32.xlu0 %v308, 4
      %v394 = vpop.permute.xlu0 %393
      %vm395 = vcmask 31744
      %v396 = vsel %vm395, %v392, %v394
      %vm397 = vcmask 31744
      %v400 = vsel %vm397, %v390, %v392
      %401 = vrot.lane.b32.xlu0 %v308, 123
      %v402 = vpop.permute.xlu0 %401
      %403 = vrot.lane.b32.xlu0 %v306, 3
      %v404 = vpop.permute.xlu0 %403
      %405 = vrot.lane.b32.xlu0 %v308, 3
      %v406 = vpop.permute.xlu0 %405
      %vm407 = vcmask 23552
      %v408 = vsel %vm407, %v404, %v406
      %vm409 = vcmask 23552
      %v412 = vsel %vm409, %v402, %v404
      %413 = vrot.lane.b32.xlu0 %v308, 122
      %v414 = vpop.permute.xlu0 %413
      %415 = vrot.lane.b32.xlu0 %v306, 2
      %v416 = vpop.permute.xlu0 %415
      %417 = vrot.lane.b32.xlu0 %v308, 2
      %v418 = vpop.permute.xlu0 %417
      %vm419 = vcmask 15360
      %v420 = vsel %vm419, %v416, %v418
      %v423 = vsel %vm307, %v414, %v416
      %424 = vrot.lane.b32.xlu0 %v308, 121
      %v425 = vpop.permute.xlu0 %424
      %426 = vrot.lane.b32.xlu0 %v306, 1
      %v427 = vpop.permute.xlu0 %426
      %428 = vrot.lane.b32.xlu0 %v308, 1
      %v429 = vpop.permute.xlu0 %428
      %vm430 = vcmask 7168
      %v431 = vsel %vm430, %v427, %v429
      %vm432 = vcmask 7168
      %v435 = vsel %vm432, %v425, %v427
      %436 = vrot.lane.b32.xlu0 %v306, 127
      %v437 = vpop.permute.xlu0 %436
      %438 = vrot.lane.b32.xlu0 %v308, 127
      %v439 = vpop.permute.xlu0 %438
      %vm440 = vcmask 1039360
      %v441 = vsel %vm440, %v437, %v439
      %442 = vrot.lane.b32.xlu0 %v306, 7
      %v443 = vpop.permute.xlu0 %442
      %vm444 = vcmask 56320
      %v447 = vsel %vm444, %v439, %v443
      %448 = vrot.lane.b32.xlu0 %v306, 126
      %v449 = vpop.permute.xlu0 %448
      %vm450 = vcmask 1031168
      %v451 = vsel %vm450, %v449, %v366
      %452 = vrot.lane.b32.xlu0 %v306, 125
      %v453 = vpop.permute.xlu0 %452
      %vm454 = vcmask 1022976
      %v455 = vsel %vm454, %v453, %v378
      %456 = vrot.lane.b32.xlu0 %v306, 124
      %v457 = vpop.permute.xlu0 %456
      %vm458 = vcmask 1014784
      %v459 = vsel %vm458, %v457, %v390
      %460 = vrot.lane.b32.xlu0 %v306, 123
      %v461 = vpop.permute.xlu0 %460
      %vm462 = vcmask 1006592
      %v463 = vsel %vm462, %v461, %v402
      %464 = vrot.lane.b32.xlu0 %v306, 122
      %v465 = vpop.permute.xlu0 %464
      %vm466 = vcmask 998400
      %v467 = vsel %vm466, %v465, %v414
      %v469 = vrot.slane %v388, 6
      %v470 = vrot.slane %v384, 6
      %v472 = vrot.slane %v400, 4
      %v473 = vrot.slane %v396, 4
      %v475 = vrot.slane %v412, 2
      %v476 = vrot.slane %v408, 2
      %v478 = vrot.slane %v435, 6
      %v479 = vrot.slane %v431, 6
      %v480 = vrot.slane %v306, 4
      %v481 = vrot.slane %v308, 4
      %v483 = vrot.slane %v441, 2
      %v484 = vrot.slane %v447, 2
      %v485 = vrot.slane %v455, 6
      %v486 = vrot.slane %v459, 4
      %v487 = vrot.slane %v463, 2
      %vm488 = vcmask 1041408
      %v490 = vsel %vm488, %v376, %v469
      %v493 = vsel %vm488, %v373, %v470
      %vm494 = vcmask 1043456
      %v496 = vsel %vm494, %v490, %v472
      %v498 = vsel %vm494, %v493, %v473
      %vm499 = vcmask 1045504
      %v501 = vsel %vm499, %v496, %v475
      %v504 = vsel %vm499, %v498, %v476
      %v507 = vsel %vm488, %v423, %v478
      %v510 = vsel %vm488, %v420, %v479
      %v512 = vsel %vm494, %v507, %v480
      %v514 = vsel %vm494, %v510, %v481
      %v516 = vsel %vm499, %v512, %v483
      %v519 = vsel %vm499, %v514, %v484
      %v523 = vsel %vm488, %v451, %v485
      %v525 = vsel %vm494, %v523, %v486
      %v527 = vsel %vm499, %v525, %v487
      %530 = vset.pattern.permute.xlu0 0
      %531 = vperm.xlu0 %530, %v327
      %v532 = vpop.permute.xlu0 %531
      %535 = vset.pattern.permute.xlu0 0
      %536 = vperm.xlu0 %535, %v328
      %v537 = vpop.permute.xlu0 %536
      %540 = vset.pattern.permute.xlu0 0
      %541 = vperm.xlu0 %540, %v329
      %v542 = vpop.permute.xlu0 %541
      %545 = vset.pattern.permute.xlu0 0
      %546 = vperm.xlu0 %545, %v330
      %v547 = vpop.permute.xlu0 %546
      %550 = vset.pattern.permute.xlu0 0
      %551 = vperm.xlu0 %550, %v331
      %v552 = vpop.permute.xlu0 %551
      %555 = vset.pattern.permute.xlu0 0
      %556 = vperm.xlu0 %555, %v332
      %v557 = vpop.permute.xlu0 %556
      %560 = vset.pattern.permute.xlu0 0
      %561 = vperm.xlu0 %560, %v333
      %v562 = vpop.permute.xlu0 %561
      %565 = vset.pattern.permute.xlu0 0
      %566 = vperm.xlu0 %565, %v334
      %v567 = vpop.permute.xlu0 %566
      %570 = vset.pattern.permute.xlu0 0
      %571 = vperm.xlu0 %570, %v335
      %v572 = vpop.permute.xlu0 %571
      %575 = vset.pattern.permute.xlu0 0
      %576 = vperm.xlu0 %575, %v336
      %v577 = vpop.permute.xlu0 %576
      %580 = vset.pattern.permute.xlu0 0
      %581 = vperm.xlu0 %580, %v337
      %v582 = vpop.permute.xlu0 %581
      %585 = vset.pattern.permute.xlu0 0
      %586 = vperm.xlu0 %585, %v338
      %v587 = vpop.permute.xlu0 %586
      %590 = vset.pattern.permute.xlu0 0
      %591 = vperm.xlu0 %590, %v339
      %v592 = vpop.permute.xlu0 %591
      %595 = vset.pattern.permute.xlu0 0
      %596 = vperm.xlu0 %595, %v340
      %v597 = vpop.permute.xlu0 %596
      %600 = vset.pattern.permute.xlu0 0
      %601 = vperm.xlu0 %600, %v341
      %v602 = vpop.permute.xlu0 %601
      %605 = vset.pattern.permute.xlu0 0
      %606 = vperm.xlu0 %605, %v342
      %v607 = vpop.permute.xlu0 %606
      %610 = vset.pattern.permute.xlu0 0
      %611 = vperm.xlu0 %610, %v343
      %v612 = vpop.permute.xlu0 %611
      %615 = vset.pattern.permute.xlu0 0
      %616 = vperm.xlu0 %615, %v344
      %v617 = vpop.permute.xlu0 %616
      %v637 = vunpack.c.l.b16 %v309
      %v638 = vunpack.c.l.b16 %v310
      %v639 = vunpack.c.l.b16 %v311
      %v640 = vunpack.c.l.b16 %v312
      %v641 = vunpack.c.l.b16 %v313
      %v642 = vunpack.c.l.b16 %v314
      %v643 = vunpack.c.l.b16 %v315
      %v644 = vunpack.c.l.b16 %v316
      %v645 = vunpack.c.l.b16 %v317
      %v646 = vunpack.c.l.b16 %v318
      %v647 = vunpack.c.l.b16 %v319
      %v648 = vunpack.c.l.b16 %v320
      %v649 = vunpack.c.l.b16 %v321
      %v650 = vunpack.c.l.b16 %v322
      %v651 = vunpack.c.l.b16 %v323
      %v652 = vunpack.c.l.b16 %v324
      %v653 = vunpack.c.l.b16 %v325
      %v654 = vunpack.c.l.b16 %v326
      %v655 = vpack.c.b16 %v638, %v637
      %v656 = vpack.c.b16 %v640, %v639
      %v657 = vpack.c.b16 %v642, %v641
      %v658 = vpack.c.b16 %v644, %v643
      %v659 = vpack.c.b16 %v646, %v645
      %v660 = vpack.c.b16 %v648, %v647
      %v661 = vpack.c.b16 %v650, %v649
      %v662 = vpack.c.b16 %v652, %v651
      %v663 = vpack.c.b16 %v654, %v653
      %vm664 = vcmask 424960
      %v666 = vsel %vm664, %v655, 0
      %v669 = vsel %vm664, %v656, 0
      %v672 = vsel %vm664, %v657, 0
      %v675 = vsel %vm664, %v658, 0
      %v678 = vsel %vm664, %v659, 0
      %v681 = vsel %vm664, %v660, 0
      %v684 = vsel %vm664, %v661, 0
      %v687 = vsel %vm664, %v662, 0
      %v690 = vsel %vm664, %v663, 0
      %v693 = vsel %vm488, %v467, 0
      %v695 = vsel %vm488, %v423, 0
      %697 = vmatprep.subr.bf16.mxu0 %v504
      %698 = vmatpush1.bf16.msra.mxu0 %v501
      %699 = vmatprep.subr.bf16.mxu0 %v519
      %700 = vmatpush1.bf16.msra.mxu0 %v516
      %701 = vmatprep.subr.bf16.mxu0 %v501
      %702 = vmatpush1.bf16.msra.mxu0 %v527
      %703 = vmatprep.subr.bf16.mxu0 %v695
      %704 = vmatpush1.bf16.msra.mxu0 %v693
      %705 = vmatprep.subr.bf16.mxu0 0
      %706 = vmatpush1.bf16.msra.mxu0 0
      %707 = vmatprep.subr.bf16.mxu0 0
      %708 = vmatpush1.bf16.msra.mxu0 0
      %709 = vmatprep.subr.bf16.mxu0 0
      %710 = vmatpush1.bf16.msra.mxu0 0
      %711 = vmatprep.subr.bf16.mxu0 0
      %712 = vmatpush1.bf16.msra.mxu0 0
      %713 = vmatprep.subr.bf16.mxu0 0
      %714 = vmatpush1.bf16.msra.mxu0 0
      %715 = vmatprep.subr.bf16.mxu0 0
      %716 = vmatpush1.bf16.msra.mxu0 0
      %717 = vmatprep.subr.bf16.mxu0 0
      %718 = vmatpush1.bf16.msra.mxu0 0
      %719 = vmatprep.subr.bf16.mxu0 0
      %720 = vmatpush1.bf16.msra.mxu0 0
      %721 = vmatprep.subr.bf16.mxu0 0
      %722 = vmatpush1.bf16.msra.mxu0 0
      %723 = vmatprep.subr.bf16.mxu0 0
      %724 = vmatpush1.bf16.msra.mxu0 0
      %725 = vmatprep.subr.bf16.mxu0 0
      %726 = vmatpush1.bf16.msra.mxu0 0
      %727 = vmatprep.subr.bf16.mxu0 0
      %728 = vmatpush1.bf16.msra.mxu0 0
      %729 = vmatprep.mubr.bf16.mxu0 0
      %730 = vmatmul.mubr.bf16.gmra.mrb[0].mxu0 %v666
      %v731 = vpop.f32.mrb[0].mxu0
      %v732 = vadd.f32 %v532, %v731
      %v733 = vpop.f32.mrb[0].mxu0
      %v734 = vadd.f32 %v532, %v733
      %v735 = vpop.f32.mrb[0].mxu0
      %v736 = vadd.f32 %v537, %v735
      %v737 = vpop.f32.mrb[0].mxu0
      %v738 = vadd.f32 %v537, %v737
      %739 = vmatprep.mubr.bf16.mxu0 0
      %740 = vmatmul.mubr.bf16.gmra.mrb[0].mxu0 %v669
      %v741 = vpop.f32.mrb[0].mxu0
      %v742 = vadd.f32 %v542, %v741
      %v743 = vpop.f32.mrb[0].mxu0
      %v744 = vadd.f32 %v542, %v743
      %v745 = vpop.f32.mrb[0].mxu0
      %v746 = vadd.f32 %v547, %v745
      %v747 = vpop.f32.mrb[0].mxu0
      %v748 = vadd.f32 %v547, %v747
      %749 = vmatprep.mubr.bf16.mxu0 0
      %750 = vmatmul.mubr.bf16.gmra.mrb[0].mxu0 %v672
      %v751 = vpop.f32.mrb[0].mxu0
      %v752 = vadd.f32 %v552, %v751
      %v753 = vpop.f32.mrb[0].mxu0
      %v754 = vadd.f32 %v552, %v753
      %v755 = vpop.f32.mrb[0].mxu0
      %v756 = vadd.f32 %v557, %v755
      %v757 = vpop.f32.mrb[0].mxu0
      %v758 = vadd.f32 %v557, %v757
      %759 = vmatprep.mubr.bf16.mxu0 0
      %760 = vmatmul.mubr.bf16.gmra.mrb[0].mxu0 %v675
      %v761 = vpop.f32.mrb[0].mxu0
      %v762 = vadd.f32 %v562, %v761
      %v763 = vpop.f32.mrb[0].mxu0
      %v764 = vadd.f32 %v562, %v763
      %v765 = vpop.f32.mrb[0].mxu0
      %v766 = vadd.f32 %v567, %v765
      %v767 = vpop.f32.mrb[0].mxu0
      %v768 = vadd.f32 %v567, %v767
      %769 = vmatprep.mubr.bf16.mxu0 0
      %770 = vmatmul.mubr.bf16.gmra.mrb[0].mxu0 %v678
      %v771 = vpop.f32.mrb[0].mxu0
      %v772 = vadd.f32 %v572, %v771
      %v773 = vpop.f32.mrb[0].mxu0
      %v774 = vadd.f32 %v572, %v773
      %v775 = vpop.f32.mrb[0].mxu0
      %v776 = vadd.f32 %v577, %v775
      %v777 = vpop.f32.mrb[0].mxu0
      %v778 = vadd.f32 %v577, %v777
      %779 = vmatprep.mubr.bf16.mxu0 0
      %780 = vmatmul.mubr.bf16.gmra.mrb[0].mxu0 %v681
      %v781 = vpop.f32.mrb[0].mxu0
      %v782 = vadd.f32 %v582, %v781
      %v783 = vpop.f32.mrb[0].mxu0
      %v784 = vadd.f32 %v582, %v783
      %v785 = vpop.f32.mrb[0].mxu0
      %v786 = vadd.f32 %v587, %v785
      %v787 = vpop.f32.mrb[0].mxu0
      %v788 = vadd.f32 %v587, %v787
      %789 = vmatprep.mubr.bf16.mxu0 0
      %790 = vmatmul.mubr.bf16.gmra.mrb[0].mxu0 %v684
      %v791 = vpop.f32.mrb[0].mxu0
      %v792 = vadd.f32 %v592, %v791
      %v793 = vpop.f32.mrb[0].mxu0
      %v794 = vadd.f32 %v592, %v793
      %v795 = vpop.f32.mrb[0].mxu0
      %v796 = vadd.f32 %v597, %v795
      %v797 = vpop.f32.mrb[0].mxu0
      %v798 = vadd.f32 %v597, %v797
      %799 = vmatprep.mubr.bf16.mxu0 0
      %800 = vmatmul.mubr.bf16.gmra.mrb[0].mxu0 %v687
      %v801 = vpop.f32.mrb[0].mxu0
      %v802 = vadd.f32 %v602, %v801
      %v803 = vpop.f32.mrb[0].mxu0
      %v804 = vadd.f32 %v602, %v803
      %v805 = vpop.f32.mrb[0].mxu0
      %v806 = vadd.f32 %v607, %v805
      %v807 = vpop.f32.mrb[0].mxu0
      %v808 = vadd.f32 %v607, %v807
      %809 = vmatprep.mubr.bf16.mxu0 0
      %810 = vmatmul.mubr.bf16.gmra.mrb[0].mxu0 %v690
      %v811 = vpop.f32.mrb[0].mxu0
      %v812 = vadd.f32 %v612, %v811
      %v813 = vpop.f32.mrb[0].mxu0
      %v814 = vadd.f32 %v612, %v813
      %v815 = vpop.f32.mrb[0].mxu0
      %v816 = vadd.f32 %v617, %v815
      %v817 = vpop.f32.mrb[0].mxu0
      %v818 = vadd.f32 %v617, %v817
      %819 = vdwg.mxu0
      %v820 = vmax.f32 %v732, 0.0
      %v821 = vmax.f32 %v734, 0.0
      %v822 = vmax.f32 %v736, 0.0
      %v823 = vmax.f32 %v738, 0.0
      %v824 = vmax.f32 %v742, 0.0
      %v825 = vmax.f32 %v744, 0.0
      %v826 = vmax.f32 %v746, 0.0
      %v827 = vmax.f32 %v748, 0.0
      %v828 = vmax.f32 %v752, 0.0
      %v829 = vmax.f32 %v754, 0.0
      %v830 = vmax.f32 %v756, 0.0
      %v831 = vmax.f32 %v758, 0.0
      %v832 = vmax.f32 %v762, 0.0
      %v833 = vmax.f32 %v764, 0.0
      %v834 = vmax.f32 %v766, 0.0
      %v835 = vmax.f32 %v768, 0.0
      %v836 = vmax.f32 %v772, 0.0
      %v837 = vmax.f32 %v774, 0.0
      %v838 = vmax.f32 %v776, 0.0
      %v839 = vmax.f32 %v778, 0.0
      %v840 = vmax.f32 %v782, 0.0
      %v841 = vmax.f32 %v784, 0.0
      %v842 = vmax.f32 %v786, 0.0
      %v843 = vmax.f32 %v788, 0.0
      %v844 = vmax.f32 %v792, 0.0
      %v845 = vmax.f32 %v794, 0.0
      %v846 = vmax.f32 %v796, 0.0
      %v847 = vmax.f32 %v798, 0.0
      %v848 = vmax.f32 %v802, 0.0
      %v849 = vmax.f32 %v804, 0.0
      %v850 = vmax.f32 %v806, 0.0
      %v851 = vmax.f32 %v808, 0.0
      %v852 = vmax.f32 %v812, 0.0
      %v853 = vmax.f32 %v814, 0.0
      %v854 = vmax.f32 %v816, 0.0
      %v855 = vmax.f32 %v818, 0.0
      %892 = vrot.lane.b32.xlu0 %v820, 127
      %v893 = vpop.permute.xlu0 %892
      %894 = vrot.lane.b32.xlu0 %v821, 127
      %v895 = vpop.permute.xlu0 %894
      %896 = vrot.lane.b32.xlu0 %v822, 127
      %v897 = vpop.permute.xlu0 %896
      %898 = vrot.lane.b32.xlu0 %v823, 127
      %v899 = vpop.permute.xlu0 %898
      %900 = vrot.lane.b32.xlu0 %v824, 127
      %v901 = vpop.permute.xlu0 %900
      %902 = vrot.lane.b32.xlu0 %v825, 127
      %v903 = vpop.permute.xlu0 %902
      %904 = vrot.lane.b32.xlu0 %v826, 127
      %v905 = vpop.permute.xlu0 %904
      %906 = vrot.lane.b32.xlu0 %v827, 127
      %v907 = vpop.permute.xlu0 %906
      %908 = vrot.lane.b32.xlu0 %v828, 127
      %v909 = vpop.permute.xlu0 %908
      %910 = vrot.lane.b32.xlu0 %v829, 127
      %v911 = vpop.permute.xlu0 %910
      %912 = vrot.lane.b32.xlu0 %v830, 127
      %v913 = vpop.permute.xlu0 %912
      %914 = vrot.lane.b32.xlu0 %v831, 127
      %v915 = vpop.permute.xlu0 %914
      %916 = vrot.lane.b32.xlu0 %v832, 127
      %v917 = vpop.permute.xlu0 %916
      %918 = vrot.lane.b32.xlu0 %v833, 127
      %v919 = vpop.permute.xlu0 %918
      %920 = vrot.lane.b32.xlu0 %v834, 127
      %v921 = vpop.permute.xlu0 %920
      %922 = vrot.lane.b32.xlu0 %v835, 127
      %v923 = vpop.permute.xlu0 %922
      %924 = vrot.lane.b32.xlu0 %v836, 127
      %v925 = vpop.permute.xlu0 %924
      %926 = vrot.lane.b32.xlu0 %v837, 127
      %v927 = vpop.permute.xlu0 %926
      %928 = vrot.lane.b32.xlu0 %v838, 127
      %v929 = vpop.permute.xlu0 %928
      %930 = vrot.lane.b32.xlu0 %v839, 127
      %v931 = vpop.permute.xlu0 %930
      %932 = vrot.lane.b32.xlu0 %v840, 127
      %v933 = vpop.permute.xlu0 %932
      %934 = vrot.lane.b32.xlu0 %v841, 127
      %v935 = vpop.permute.xlu0 %934
      %936 = vrot.lane.b32.xlu0 %v842, 127
      %v937 = vpop.permute.xlu0 %936
      %938 = vrot.lane.b32.xlu0 %v843, 127
      %v939 = vpop.permute.xlu0 %938
      %940 = vrot.lane.b32.xlu0 %v844, 127
      %v941 = vpop.permute.xlu0 %940
      %942 = vrot.lane.b32.xlu0 %v845, 127
      %v943 = vpop.permute.xlu0 %942
      %944 = vrot.lane.b32.xlu0 %v846, 127
      %v945 = vpop.permute.xlu0 %944
      %946 = vrot.lane.b32.xlu0 %v847, 127
      %v947 = vpop.permute.xlu0 %946
      %948 = vrot.lane.b32.xlu0 %v848, 127
      %v949 = vpop.permute.xlu0 %948
      %950 = vrot.lane.b32.xlu0 %v849, 127
      %v951 = vpop.permute.xlu0 %950
      %952 = vrot.lane.b32.xlu0 %v850, 127
      %v953 = vpop.permute.xlu0 %952
      %954 = vrot.lane.b32.xlu0 %v851, 127
      %v955 = vpop.permute.xlu0 %954
      %956 = vrot.lane.b32.xlu0 %v852, 127
      %v957 = vpop.permute.xlu0 %956
      %958 = vrot.lane.b32.xlu0 %v853, 127
      %v959 = vpop.permute.xlu0 %958
      %960 = vrot.lane.b32.xlu0 %v854, 127
      %v961 = vpop.permute.xlu0 %960
      %962 = vrot.lane.b32.xlu0 %v855, 127
      %v963 = vpop.permute.xlu0 %962
      %vm964 = vcmask 1039360
      %v965 = vsel %vm964, %v893, %v895
      %v966 = vsel %vm964, %v897, %v899
      %v967 = vsel %vm964, %v901, %v903
      %v968 = vsel %vm964, %v905, %v907
      %v969 = vsel %vm964, %v909, %v911
      %v970 = vsel %vm964, %v913, %v915
      %v971 = vsel %vm964, %v917, %v919
      %v972 = vsel %vm964, %v921, %v923
      %v973 = vsel %vm964, %v925, %v927
      %v974 = vsel %vm964, %v929, %v931
      %v975 = vsel %vm964, %v933, %v935
      %v976 = vsel %vm964, %v937, %v939
      %v977 = vsel %vm964, %v941, %v943
      %v978 = vsel %vm964, %v945, %v947
      %v979 = vsel %vm964, %v949, %v951
      %v980 = vsel %vm964, %v953, %v955
      %v981 = vsel %vm964, %v957, %v959
      %v982 = vsel %vm964, %v961, %v963
      %1019 = vrot.lane.b32.xlu0 %v820, 7
      %v1020 = vpop.permute.xlu0 %1019
      %1021 = vrot.lane.b32.xlu0 %v822, 7
      %v1022 = vpop.permute.xlu0 %1021
      %1023 = vrot.lane.b32.xlu0 %v824, 7
      %v1024 = vpop.permute.xlu0 %1023
      %1025 = vrot.lane.b32.xlu0 %v826, 7
      %v1026 = vpop.permute.xlu0 %1025
      %1027 = vrot.lane.b32.xlu0 %v828, 7
      %v1028 = vpop.permute.xlu0 %1027
      %1029 = vrot.lane.b32.xlu0 %v830, 7
      %v1030 = vpop.permute.xlu0 %1029
      %1031 = vrot.lane.b32.xlu0 %v832, 7
      %v1032 = vpop.permute.xlu0 %1031
      %1033 = vrot.lane.b32.xlu0 %v834, 7
      %v1034 = vpop.permute.xlu0 %1033
      %1035 = vrot.lane.b32.xlu0 %v836, 7
      %v1036 = vpop.permute.xlu0 %1035
      %1037 = vrot.lane.b32.xlu0 %v838, 7
      %v1038 = vpop.permute.xlu0 %1037
      %1039 = vrot.lane.b32.xlu0 %v840, 7
      %v1040 = vpop.permute.xlu0 %1039
      %1041 = vrot.lane.b32.xlu0 %v842, 7
      %v1042 = vpop.permute.xlu0 %1041
      %1043 = vrot.lane.b32.xlu0 %v844, 7
      %v1044 = vpop.permute.xlu0 %1043
      %1045 = vrot.lane.b32.xlu0 %v846, 7
      %v1046 = vpop.permute.xlu0 %1045
      %1047 = vrot.lane.b32.xlu0 %v848, 7
      %v1048 = vpop.permute.xlu0 %1047
      %1049 = vrot.lane.b32.xlu0 %v850, 7
      %v1050 = vpop.permute.xlu0 %1049
      %1051 = vrot.lane.b32.xlu0 %v852, 7
      %v1052 = vpop.permute.xlu0 %1051
      %1053 = vrot.lane.b32.xlu0 %v854, 7
      %v1054 = vpop.permute.xlu0 %1053
      %v1073 = vsel %vm444, %v895, %v1020
      %v1074 = vsel %vm444, %v899, %v1022
      %v1075 = vsel %vm444, %v903, %v1024
      %v1076 = vsel %vm444, %v907, %v1026
      %v1077 = vsel %vm444, %v911, %v1028
      %v1078 = vsel %vm444, %v915, %v1030
      %v1079 = vsel %vm444, %v919, %v1032
      %v1080 = vsel %vm444, %v923, %v1034
      %v1081 = vsel %vm444, %v927, %v1036
      %v1082 = vsel %vm444, %v931, %v1038
      %v1083 = vsel %vm444, %v935, %v1040
      %v1084 = vsel %vm444, %v939, %v1042
      %v1085 = vsel %vm444, %v943, %v1044
      %v1086 = vsel %vm444, %v947, %v1046
      %v1087 = vsel %vm444, %v951, %v1048
      %v1088 = vsel %vm444, %v955, %v1050
      %v1089 = vsel %vm444, %v959, %v1052
      %v1090 = vsel %vm444, %v963, %v1054
      %v1091 = vmax.f32 %v820, %v965
      %v1092 = vmax.f32 %v821, %v1073
      %v1093 = vmax.f32 %v822, %v966
      %v1094 = vmax.f32 %v823, %v1074
      %v1095 = vmax.f32 %v824, %v967
      %v1096 = vmax.f32 %v825, %v1075
      %v1097 = vmax.f32 %v826, %v968
      %v1098 = vmax.f32 %v827, %v1076
      %v1099 = vmax.f32 %v828, %v969
      %v1100 = vmax.f32 %v829, %v1077
      %v1101 = vmax.f32 %v830, %v970
      %v1102 = vmax.f32 %v831, %v1078
      %v1103 = vmax.f32 %v832, %v971
      %v1104 = vmax.f32 %v833, %v1079
      %v1105 = vmax.f32 %v834, %v972
      %v1106 = vmax.f32 %v835, %v1080
      %v1107 = vmax.f32 %v836, %v973
      %v1108 = vmax.f32 %v837, %v1081
      %v1109 = vmax.f32 %v838, %v974
      %v1110 = vmax.f32 %v839, %v1082
      %v1111 = vmax.f32 %v840, %v975
      %v1112 = vmax.f32 %v841, %v1083
      %v1113 = vmax.f32 %v842, %v976
      %v1114 = vmax.f32 %v843, %v1084
      %v1115 = vmax.f32 %v844, %v977
      %v1116 = vmax.f32 %v845, %v1085
      %v1117 = vmax.f32 %v846, %v978
      %v1118 = vmax.f32 %v847, %v1086
      %v1119 = vmax.f32 %v848, %v979
      %v1120 = vmax.f32 %v849, %v1087
      %v1121 = vmax.f32 %v850, %v980
      %v1122 = vmax.f32 %v851, %v1088
      %v1123 = vmax.f32 %v852, %v981
      %v1124 = vmax.f32 %v853, %v1089
      %v1125 = vmax.f32 %v854, %v982
      %v1126 = vmax.f32 %v855, %v1090
      %1163 = vrot.lane.b32.xlu0 %v1091, 126
      %v1164 = vpop.permute.xlu0 %1163
      %1165 = vrot.lane.b32.xlu0 %v1092, 126
      %v1166 = vpop.permute.xlu0 %1165
      %1167 = vrot.lane.b32.xlu0 %v1093, 126
      %v1168 = vpop.permute.xlu0 %1167
      %1169 = vrot.lane.b32.xlu0 %v1094, 126
      %v1170 = vpop.permute.xlu0 %1169
      %1171 = vrot.lane.b32.xlu0 %v1095, 126
      %v1172 = vpop.permute.xlu0 %1171
      %1173 = vrot.lane.b32.xlu0 %v1096, 126
      %v1174 = vpop.permute.xlu0 %1173
      %1175 = vrot.lane.b32.xlu0 %v1097, 126
      %v1176 = vpop.permute.xlu0 %1175
      %1177 = vrot.lane.b32.xlu0 %v1098, 126
      %v1178 = vpop.permute.xlu0 %1177
      %1179 = vrot.lane.b32.xlu0 %v1099, 126
      %v1180 = vpop.permute.xlu0 %1179
      %1181 = vrot.lane.b32.xlu0 %v1100, 126
      %v1182 = vpop.permute.xlu0 %1181
      %1183 = vrot.lane.b32.xlu0 %v1101, 126
      %v1184 = vpop.permute.xlu0 %1183
      %1185 = vrot.lane.b32.xlu0 %v1102, 126
      %v1186 = vpop.permute.xlu0 %1185
      %1187 = vrot.lane.b32.xlu0 %v1103, 126
      %v1188 = vpop.permute.xlu0 %1187
      %1189 = vrot.lane.b32.xlu0 %v1104, 126
      %v1190 = vpop.permute.xlu0 %1189
      %1191 = vrot.lane.b32.xlu0 %v1105, 126
      %v1192 = vpop.permute.xlu0 %1191
      %1193 = vrot.lane.b32.xlu0 %v1106, 126
      %v1194 = vpop.permute.xlu0 %1193
      %1195 = vrot.lane.b32.xlu0 %v1107, 126
      %v1196 = vpop.permute.xlu0 %1195
      %1197 = vrot.lane.b32.xlu0 %v1108, 126
      %v1198 = vpop.permute.xlu0 %1197
      %1199 = vrot.lane.b32.xlu0 %v1109, 126
      %v1200 = vpop.permute.xlu0 %1199
      %1201 = vrot.lane.b32.xlu0 %v1110, 126
      %v1202 = vpop.permute.xlu0 %1201
      %1203 = vrot.lane.b32.xlu0 %v1111, 126
      %v1204 = vpop.permute.xlu0 %1203
      %1205 = vrot.lane.b32.xlu0 %v1112, 126
      %v1206 = vpop.permute.xlu0 %1205
      %1207 = vrot.lane.b32.xlu0 %v1113, 126
      %v1208 = vpop.permute.xlu0 %1207
      %1209 = vrot.lane.b32.xlu0 %v1114, 126
      %v1210 = vpop.permute.xlu0 %1209
      %1211 = vrot.lane.b32.xlu0 %v1115, 126
      %v1212 = vpop.permute.xlu0 %1211
      %1213 = vrot.lane.b32.xlu0 %v1116, 126
      %v1214 = vpop.permute.xlu0 %1213
      %1215 = vrot.lane.b32.xlu0 %v1117, 126
      %v1216 = vpop.permute.xlu0 %1215
      %1217 = vrot.lane.b32.xlu0 %v1118, 126
      %v1218 = vpop.permute.xlu0 %1217
      %1219 = vrot.lane.b32.xlu0 %v1119, 126
      %v1220 = vpop.permute.xlu0 %1219
      %1221 = vrot.lane.b32.xlu0 %v1120, 126
      %v1222 = vpop.permute.xlu0 %1221
      %1223 = vrot.lane.b32.xlu0 %v1121, 126
      %v1224 = vpop.permute.xlu0 %1223
      %1225 = vrot.lane.b32.xlu0 %v1122, 126
      %v1226 = vpop.permute.xlu0 %1225
      %1227 = vrot.lane.b32.xlu0 %v1123, 126
      %v1228 = vpop.permute.xlu0 %1227
      %1229 = vrot.lane.b32.xlu0 %v1124, 126
      %v1230 = vpop.permute.xlu0 %1229
      %1231 = vrot.lane.b32.xlu0 %v1125, 126
      %v1232 = vpop.permute.xlu0 %1231
      %1233 = vrot.lane.b32.xlu0 %v1126, 126
      %v1234 = vpop.permute.xlu0 %1233
      %vm1235 = vcmask 1031168
      %v1236 = vsel %vm1235, %v1164, %v1166
      %v1237 = vsel %vm1235, %v1168, %v1170
      %v1238 = vsel %vm1235, %v1172, %v1174
      %v1239 = vsel %vm1235, %v1176, %v1178
      %v1240 = vsel %vm1235, %v1180, %v1182
      %v1241 = vsel %vm1235, %v1184, %v1186
      %v1242 = vsel %vm1235, %v1188, %v1190
      %v1243 = vsel %vm1235, %v1192, %v1194
      %v1244 = vsel %vm1235, %v1196, %v1198
      %v1245 = vsel %vm1235, %v1200, %v1202
      %v1246 = vsel %vm1235, %v1204, %v1206
      %v1247 = vsel %vm1235, %v1208, %v1210
      %v1248 = vsel %vm1235, %v1212, %v1214
      %v1249 = vsel %vm1235, %v1216, %v1218
      %v1250 = vsel %vm1235, %v1220, %v1222
      %v1251 = vsel %vm1235, %v1224, %v1226
      %v1252 = vsel %vm1235, %v1228, %v1230
      %v1253 = vsel %vm1235, %v1232, %v1234
      %1290 = vrot.lane.b32.xlu0 %v1091, 6
      %v1291 = vpop.permute.xlu0 %1290
      %1292 = vrot.lane.b32.xlu0 %v1093, 6
      %v1293 = vpop.permute.xlu0 %1292
      %1294 = vrot.lane.b32.xlu0 %v1095, 6
      %v1295 = vpop.permute.xlu0 %1294
      %1296 = vrot.lane.b32.xlu0 %v1097, 6
      %v1297 = vpop.permute.xlu0 %1296
      %1298 = vrot.lane.b32.xlu0 %v1099, 6
      %v1299 = vpop.permute.xlu0 %1298
      %1300 = vrot.lane.b32.xlu0 %v1101, 6
      %v1301 = vpop.permute.xlu0 %1300
      %1302 = vrot.lane.b32.xlu0 %v1103, 6
      %v1303 = vpop.permute.xlu0 %1302
      %1304 = vrot.lane.b32.xlu0 %v1105, 6
      %v1305 = vpop.permute.xlu0 %1304
      %1306 = vrot.lane.b32.xlu0 %v1107, 6
      %v1307 = vpop.permute.xlu0 %1306
      %1308 = vrot.lane.b32.xlu0 %v1109, 6
      %v1309 = vpop.permute.xlu0 %1308
      %1310 = vrot.lane.b32.xlu0 %v1111, 6
      %v1311 = vpop.permute.xlu0 %1310
      %1312 = vrot.lane.b32.xlu0 %v1113, 6
      %v1313 = vpop.permute.xlu0 %1312
      %1314 = vrot.lane.b32.xlu0 %v1115, 6
      %v1315 = vpop.permute.xlu0 %1314
      %1316 = vrot.lane.b32.xlu0 %v1117, 6
      %v1317 = vpop.permute.xlu0 %1316
      %1318 = vrot.lane.b32.xlu0 %v1119, 6
      %v1319 = vpop.permute.xlu0 %1318
      %1320 = vrot.lane.b32.xlu0 %v1121, 6
      %v1321 = vpop.permute.xlu0 %1320
      %1322 = vrot.lane.b32.xlu0 %v1123, 6
      %v1323 = vpop.permute.xlu0 %1322
      %1324 = vrot.lane.b32.xlu0 %v1125, 6
      %v1325 = vpop.permute.xlu0 %1324
      %v1344 = vsel %vm296, %v1166, %v1291
      %v1345 = vsel %vm296, %v1170, %v1293
      %v1346 = vsel %vm296, %v1174, %v1295
      %v1347 = vsel %vm296, %v1178, %v1297
      %v1348 = vsel %vm296, %v1182, %v1299
      %v1349 = vsel %vm296, %v1186, %v1301
      %v1350 = vsel %vm296, %v1190, %v1303
      %v1351 = vsel %vm296, %v1194, %v1305
      %v1352 = vsel %vm296, %v1198, %v1307
      %v1353 = vsel %vm296, %v1202, %v1309
      %v1354 = vsel %vm296, %v1206, %v1311
      %v1355 = vsel %vm296, %v1210, %v1313
      %v1356 = vsel %vm296, %v1214, %v1315
      %v1357 = vsel %vm296, %v1218, %v1317
      %v1358 = vsel %vm296, %v1222, %v1319
      %v1359 = vsel %vm296, %v1226, %v1321
      %v1360 = vsel %vm296, %v1230, %v1323
      %v1361 = vsel %vm296, %v1234, %v1325
      %v1362 = vmax.f32 %v1091, %v1236
      %v1363 = vmax.f32 %v1092, %v1344
      %v1364 = vmax.f32 %v1093, %v1237
      %v1365 = vmax.f32 %v1094, %v1345
      %v1366 = vmax.f32 %v1095, %v1238
      %v1367 = vmax.f32 %v1096, %v1346
      %v1368 = vmax.f32 %v1097, %v1239
      %v1369 = vmax.f32 %v1098, %v1347
      %v1370 = vmax.f32 %v1099, %v1240
      %v1371 = vmax.f32 %v1100, %v1348
      %v1372 = vmax.f32 %v1101, %v1241
      %v1373 = vmax.f32 %v1102, %v1349
      %v1374 = vmax.f32 %v1103, %v1242
      %v1375 = vmax.f32 %v1104, %v1350
      %v1376 = vmax.f32 %v1105, %v1243
      %v1377 = vmax.f32 %v1106, %v1351
      %v1378 = vmax.f32 %v1107, %v1244
      %v1379 = vmax.f32 %v1108, %v1352
      %v1380 = vmax.f32 %v1109, %v1245
      %v1381 = vmax.f32 %v1110, %v1353
      %v1382 = vmax.f32 %v1111, %v1246
      %v1383 = vmax.f32 %v1112, %v1354
      %v1384 = vmax.f32 %v1113, %v1247
      %v1385 = vmax.f32 %v1114, %v1355
      %v1386 = vmax.f32 %v1115, %v1248
      %v1387 = vmax.f32 %v1116, %v1356
      %v1388 = vmax.f32 %v1117, %v1249
      %v1389 = vmax.f32 %v1118, %v1357
      %v1390 = vmax.f32 %v1119, %v1250
      %v1391 = vmax.f32 %v1120, %v1358
      %v1392 = vmax.f32 %v1121, %v1251
      %v1393 = vmax.f32 %v1122, %v1359
      %v1394 = vmax.f32 %v1123, %v1252
      %v1395 = vmax.f32 %v1124, %v1360
      %v1396 = vmax.f32 %v1125, %v1253
      %v1397 = vmax.f32 %v1126, %v1361
      %1434 = vrot.lane.b32.xlu0 %v1362, 124
      %v1435 = vpop.permute.xlu0 %1434
      %1436 = vrot.lane.b32.xlu0 %v1363, 124
      %v1437 = vpop.permute.xlu0 %1436
      %1438 = vrot.lane.b32.xlu0 %v1364, 124
      %v1439 = vpop.permute.xlu0 %1438
      %1440 = vrot.lane.b32.xlu0 %v1365, 124
      %v1441 = vpop.permute.xlu0 %1440
      %1442 = vrot.lane.b32.xlu0 %v1366, 124
      %v1443 = vpop.permute.xlu0 %1442
      %1444 = vrot.lane.b32.xlu0 %v1367, 124
      %v1445 = vpop.permute.xlu0 %1444
      %1446 = vrot.lane.b32.xlu0 %v1368, 124
      %v1447 = vpop.permute.xlu0 %1446
      %1448 = vrot.lane.b32.xlu0 %v1369, 124
      %v1449 = vpop.permute.xlu0 %1448
      %1450 = vrot.lane.b32.xlu0 %v1370, 124
      %v1451 = vpop.permute.xlu0 %1450
      %1452 = vrot.lane.b32.xlu0 %v1371, 124
      %v1453 = vpop.permute.xlu0 %1452
      %1454 = vrot.lane.b32.xlu0 %v1372, 124
      %v1455 = vpop.permute.xlu0 %1454
      %1456 = vrot.lane.b32.xlu0 %v1373, 124
      %v1457 = vpop.permute.xlu0 %1456
      %1458 = vrot.lane.b32.xlu0 %v1374, 124
      %v1459 = vpop.permute.xlu0 %1458
      %1460 = vrot.lane.b32.xlu0 %v1375, 124
      %v1461 = vpop.permute.xlu0 %1460
      %1462 = vrot.lane.b32.xlu0 %v1376, 124
      %v1463 = vpop.permute.xlu0 %1462
      %1464 = vrot.lane.b32.xlu0 %v1377, 124
      %v1465 = vpop.permute.xlu0 %1464
      %1466 = vrot.lane.b32.xlu0 %v1378, 124
      %v1467 = vpop.permute.xlu0 %1466
      %1468 = vrot.lane.b32.xlu0 %v1379, 124
      %v1469 = vpop.permute.xlu0 %1468
      %1470 = vrot.lane.b32.xlu0 %v1380, 124
      %v1471 = vpop.permute.xlu0 %1470
      %1472 = vrot.lane.b32.xlu0 %v1381, 124
      %v1473 = vpop.permute.xlu0 %1472
      %1474 = vrot.lane.b32.xlu0 %v1382, 124
      %v1475 = vpop.permute.xlu0 %1474
      %1476 = vrot.lane.b32.xlu0 %v1383, 124
      %v1477 = vpop.permute.xlu0 %1476
      %1478 = vrot.lane.b32.xlu0 %v1384, 124
      %v1479 = vpop.permute.xlu0 %1478
      %1480 = vrot.lane.b32.xlu0 %v1385, 124
      %v1481 = vpop.permute.xlu0 %1480
      %1482 = vrot.lane.b32.xlu0 %v1386, 124
      %v1483 = vpop.permute.xlu0 %1482
      %1484 = vrot.lane.b32.xlu0 %v1387, 124
      %v1485 = vpop.permute.xlu0 %1484
      %1486 = vrot.lane.b32.xlu0 %v1388, 124
      %v1487 = vpop.permute.xlu0 %1486
      %1488 = vrot.lane.b32.xlu0 %v1389, 124
      %v1489 = vpop.permute.xlu0 %1488
      %1490 = vrot.lane.b32.xlu0 %v1390, 124
      %v1491 = vpop.permute.xlu0 %1490
      %1492 = vrot.lane.b32.xlu0 %v1391, 124
      %v1493 = vpop.permute.xlu0 %1492
      %1494 = vrot.lane.b32.xlu0 %v1392, 124
      %v1495 = vpop.permute.xlu0 %1494
      %1496 = vrot.lane.b32.xlu0 %v1393, 124
      %v1497 = vpop.permute.xlu0 %1496
      %1498 = vrot.lane.b32.xlu0 %v1394, 124
      %v1499 = vpop.permute.xlu0 %1498
      %1500 = vrot.lane.b32.xlu0 %v1395, 124
      %v1501 = vpop.permute.xlu0 %1500
      %1502 = vrot.lane.b32.xlu0 %v1396, 124
      %v1503 = vpop.permute.xlu0 %1502
      %1504 = vrot.lane.b32.xlu0 %v1397, 124
      %v1505 = vpop.permute.xlu0 %1504
      %vm1506 = vcmask 1014784
      %v1507 = vsel %vm1506, %v1435, %v1437
      %v1508 = vsel %vm1506, %v1439, %v1441
      %v1509 = vsel %vm1506, %v1443, %v1445
      %v1510 = vsel %vm1506, %v1447, %v1449
      %v1511 = vsel %vm1506, %v1451, %v1453
      %v1512 = vsel %vm1506, %v1455, %v1457
      %v1513 = vsel %vm1506, %v1459, %v1461
      %v1514 = vsel %vm1506, %v1463, %v1465
      %v1515 = vsel %vm1506, %v1467, %v1469
      %v1516 = vsel %vm1506, %v1471, %v1473
      %v1517 = vsel %vm1506, %v1475, %v1477
      %v1518 = vsel %vm1506, %v1479, %v1481
      %v1519 = vsel %vm1506, %v1483, %v1485
      %v1520 = vsel %vm1506, %v1487, %v1489
      %v1521 = vsel %vm1506, %v1491, %v1493
      %v1522 = vsel %vm1506, %v1495, %v1497
      %v1523 = vsel %vm1506, %v1499, %v1501
      %v1524 = vsel %vm1506, %v1503, %v1505
      %1561 = vrot.lane.b32.xlu0 %v1362, 4
      %v1562 = vpop.permute.xlu0 %1561
      %1563 = vrot.lane.b32.xlu0 %v1364, 4
      %v1564 = vpop.permute.xlu0 %1563
      %1565 = vrot.lane.b32.xlu0 %v1366, 4
      %v1566 = vpop.permute.xlu0 %1565
      %1567 = vrot.lane.b32.xlu0 %v1368, 4
      %v1568 = vpop.permute.xlu0 %1567
      %1569 = vrot.lane.b32.xlu0 %v1370, 4
      %v1570 = vpop.permute.xlu0 %1569
      %1571 = vrot.lane.b32.xlu0 %v1372, 4
      %v1572 = vpop.permute.xlu0 %1571
      %1573 = vrot.lane.b32.xlu0 %v1374, 4
      %v1574 = vpop.permute.xlu0 %1573
      %1575 = vrot.lane.b32.xlu0 %v1376, 4
      %v1576 = vpop.permute.xlu0 %1575
      %1577 = vrot.lane.b32.xlu0 %v1378, 4
      %v1578 = vpop.permute.xlu0 %1577
      %1579 = vrot.lane.b32.xlu0 %v1380, 4
      %v1580 = vpop.permute.xlu0 %1579
      %1581 = vrot.lane.b32.xlu0 %v1382, 4
      %v1582 = vpop.permute.xlu0 %1581
      %1583 = vrot.lane.b32.xlu0 %v1384, 4
      %v1584 = vpop.permute.xlu0 %1583
      %1585 = vrot.lane.b32.xlu0 %v1386, 4
      %v1586 = vpop.permute.xlu0 %1585
      %1587 = vrot.lane.b32.xlu0 %v1388, 4
      %v1588 = vpop.permute.xlu0 %1587
      %1589 = vrot.lane.b32.xlu0 %v1390, 4
      %v1590 = vpop.permute.xlu0 %1589
      %1591 = vrot.lane.b32.xlu0 %v1392, 4
      %v1592 = vpop.permute.xlu0 %1591
      %1593 = vrot.lane.b32.xlu0 %v1394, 4
      %v1594 = vpop.permute.xlu0 %1593
      %1595 = vrot.lane.b32.xlu0 %v1396, 4
      %v1596 = vpop.permute.xlu0 %1595
      %v1615 = vsel %vm397, %v1437, %v1562
      %v1616 = vsel %vm397, %v1441, %v1564
      %v1617 = vsel %vm397, %v1445, %v1566
      %v1618 = vsel %vm397, %v1449, %v1568
      %v1619 = vsel %vm397, %v1453, %v1570
      %v1620 = vsel %vm397, %v1457, %v1572
      %v1621 = vsel %vm397, %v1461, %v1574
      %v1622 = vsel %vm397, %v1465, %v1576
      %v1623 = vsel %vm397, %v1469, %v1578
      %v1624 = vsel %vm397, %v1473, %v1580
      %v1625 = vsel %vm397, %v1477, %v1582
      %v1626 = vsel %vm397, %v1481, %v1584
      %v1627 = vsel %vm397, %v1485, %v1586
      %v1628 = vsel %vm397, %v1489, %v1588
      %v1629 = vsel %vm397, %v1493, %v1590
      %v1630 = vsel %vm397, %v1497, %v1592
      %v1631 = vsel %vm397, %v1501, %v1594
      %v1632 = vsel %vm397, %v1505, %v1596
      %v1633 = vmax.f32 %v1362, %v1507
      %v1634 = vmax.f32 %v1363, %v1615
      %v1635 = vmax.f32 %v1364, %v1508
      %v1636 = vmax.f32 %v1365, %v1616
      %v1637 = vmax.f32 %v1366, %v1509
      %v1638 = vmax.f32 %v1367, %v1617
      %v1639 = vmax.f32 %v1368, %v1510
      %v1640 = vmax.f32 %v1369, %v1618
      %v1641 = vmax.f32 %v1370, %v1511
      %v1642 = vmax.f32 %v1371, %v1619
      %v1643 = vmax.f32 %v1372, %v1512
      %v1644 = vmax.f32 %v1373, %v1620
      %v1645 = vmax.f32 %v1374, %v1513
      %v1646 = vmax.f32 %v1375, %v1621
      %v1647 = vmax.f32 %v1376, %v1514
      %v1648 = vmax.f32 %v1377, %v1622
      %v1649 = vmax.f32 %v1378, %v1515
      %v1650 = vmax.f32 %v1379, %v1623
      %v1651 = vmax.f32 %v1380, %v1516
      %v1652 = vmax.f32 %v1381, %v1624
      %v1653 = vmax.f32 %v1382, %v1517
      %v1654 = vmax.f32 %v1383, %v1625
      %v1655 = vmax.f32 %v1384, %v1518
      %v1656 = vmax.f32 %v1385, %v1626
      %v1657 = vmax.f32 %v1386, %v1519
      %v1658 = vmax.f32 %v1387, %v1627
      %v1659 = vmax.f32 %v1388, %v1520
      %v1660 = vmax.f32 %v1389, %v1628
      %v1661 = vmax.f32 %v1390, %v1521
      %v1662 = vmax.f32 %v1391, %v1629
      %v1663 = vmax.f32 %v1392, %v1522
      %v1664 = vmax.f32 %v1393, %v1630
      %v1665 = vmax.f32 %v1394, %v1523
      %v1666 = vmax.f32 %v1395, %v1631
      %v1667 = vmax.f32 %v1396, %v1524
      %v1668 = vmax.f32 %v1397, %v1632
      %1705 = vrot.lane.b32.xlu0 %v1633, 120
      %v1706 = vpop.permute.xlu0 %1705
      %1707 = vrot.lane.b32.xlu0 %v1634, 120
      %v1708 = vpop.permute.xlu0 %1707
      %1709 = vrot.lane.b32.xlu0 %v1635, 120
      %v1710 = vpop.permute.xlu0 %1709
      %1711 = vrot.lane.b32.xlu0 %v1636, 120
      %v1712 = vpop.permute.xlu0 %1711
      %1713 = vrot.lane.b32.xlu0 %v1637, 120
      %v1714 = vpop.permute.xlu0 %1713
      %1715 = vrot.lane.b32.xlu0 %v1638, 120
      %v1716 = vpop.permute.xlu0 %1715
      %1717 = vrot.lane.b32.xlu0 %v1639, 120
      %v1718 = vpop.permute.xlu0 %1717
      %1719 = vrot.lane.b32.xlu0 %v1640, 120
      %v1720 = vpop.permute.xlu0 %1719
      %1721 = vrot.lane.b32.xlu0 %v1641, 120
      %v1722 = vpop.permute.xlu0 %1721
      %1723 = vrot.lane.b32.xlu0 %v1642, 120
      %v1724 = vpop.permute.xlu0 %1723
      %1725 = vrot.lane.b32.xlu0 %v1643, 120
      %v1726 = vpop.permute.xlu0 %1725
      %1727 = vrot.lane.b32.xlu0 %v1644, 120
      %v1728 = vpop.permute.xlu0 %1727
      %1729 = vrot.lane.b32.xlu0 %v1645, 120
      %v1730 = vpop.permute.xlu0 %1729
      %1731 = vrot.lane.b32.xlu0 %v1646, 120
      %v1732 = vpop.permute.xlu0 %1731
      %1733 = vrot.lane.b32.xlu0 %v1647, 120
      %v1734 = vpop.permute.xlu0 %1733
      %1735 = vrot.lane.b32.xlu0 %v1648, 120
      %v1736 = vpop.permute.xlu0 %1735
      %1737 = vrot.lane.b32.xlu0 %v1649, 120
      %v1738 = vpop.permute.xlu0 %1737
      %1739 = vrot.lane.b32.xlu0 %v1650, 120
      %v1740 = vpop.permute.xlu0 %1739
      %1741 = vrot.lane.b32.xlu0 %v1651, 120
      %v1742 = vpop.permute.xlu0 %1741
      %1743 = vrot.lane.b32.xlu0 %v1652, 120
      %v1744 = vpop.permute.xlu0 %1743
      %1745 = vrot.lane.b32.xlu0 %v1653, 120
      %v1746 = vpop.permute.xlu0 %1745
      %1747 = vrot.lane.b32.xlu0 %v1654, 120
      %v1748 = vpop.permute.xlu0 %1747
      %1749 = vrot.lane.b32.xlu0 %v1655, 120
      %v1750 = vpop.permute.xlu0 %1749
      %1751 = vrot.lane.b32.xlu0 %v1656, 120
      %v1752 = vpop.permute.xlu0 %1751
      %1753 = vrot.lane.b32.xlu0 %v1657, 120
      %v1754 = vpop.permute.xlu0 %1753
      %1755 = vrot.lane.b32.xlu0 %v1658, 120
      %v1756 = vpop.permute.xlu0 %1755
      %1757 = vrot.lane.b32.xlu0 %v1659, 120
      %v1758 = vpop.permute.xlu0 %1757
      %1759 = vrot.lane.b32.xlu0 %v1660, 120
      %v1760 = vpop.permute.xlu0 %1759
      %1761 = vrot.lane.b32.xlu0 %v1661, 120
      %v1762 = vpop.permute.xlu0 %1761
      %1763 = vrot.lane.b32.xlu0 %v1662, 120
      %v1764 = vpop.permute.xlu0 %1763
      %1765 = vrot.lane.b32.xlu0 %v1663, 120
      %v1766 = vpop.permute.xlu0 %1765
      %1767 = vrot.lane.b32.xlu0 %v1664, 120
      %v1768 = vpop.permute.xlu0 %1767
      %1769 = vrot.lane.b32.xlu0 %v1665, 120
      %v1770 = vpop.permute.xlu0 %1769
      %1771 = vrot.lane.b32.xlu0 %v1666, 120
      %v1772 = vpop.permute.xlu0 %1771
      %1773 = vrot.lane.b32.xlu0 %v1667, 120
      %v1774 = vpop.permute.xlu0 %1773
      %1775 = vrot.lane.b32.xlu0 %v1668, 120
      %v1776 = vpop.permute.xlu0 %1775
      %vm1777 = vcmask 982016
      %v1778 = vsel %vm1777, %v1706, %v1708
      %v1779 = vsel %vm1777, %v1710, %v1712
      %v1780 = vsel %vm1777, %v1714, %v1716
      %v1781 = vsel %vm1777, %v1718, %v1720
      %v1782 = vsel %vm1777, %v1722, %v1724
      %v1783 = vsel %vm1777, %v1726, %v1728
      %v1784 = vsel %vm1777, %v1730, %v1732
      %v1785 = vsel %vm1777, %v1734, %v1736
      %v1786 = vsel %vm1777, %v1738, %v1740
      %v1787 = vsel %vm1777, %v1742, %v1744
      %v1788 = vsel %vm1777, %v1746, %v1748
      %v1789 = vsel %vm1777, %v1750, %v1752
      %v1790 = vsel %vm1777, %v1754, %v1756
      %v1791 = vsel %vm1777, %v1758, %v1760
      %v1792 = vsel %vm1777, %v1762, %v1764
      %v1793 = vsel %vm1777, %v1766, %v1768
      %v1794 = vsel %vm1777, %v1770, %v1772
      %v1795 = vsel %vm1777, %v1774, %v1776
      %v1814 = vmax.f32 %v1633, %v1778
      %v1815 = vmax.f32 %v1634, %v1633
      %v1816 = vmax.f32 %v1635, %v1779
      %v1817 = vmax.f32 %v1636, %v1635
      %v1818 = vmax.f32 %v1637, %v1780
      %v1819 = vmax.f32 %v1638, %v1637
      %v1820 = vmax.f32 %v1639, %v1781
      %v1821 = vmax.f32 %v1640, %v1639
      %v1822 = vmax.f32 %v1641, %v1782
      %v1823 = vmax.f32 %v1642, %v1641
      %v1824 = vmax.f32 %v1643, %v1783
      %v1825 = vmax.f32 %v1644, %v1643
      %v1826 = vmax.f32 %v1645, %v1784
      %v1827 = vmax.f32 %v1646, %v1645
      %v1828 = vmax.f32 %v1647, %v1785
      %v1829 = vmax.f32 %v1648, %v1647
      %v1830 = vmax.f32 %v1649, %v1786
      %v1831 = vmax.f32 %v1650, %v1649
      %v1832 = vmax.f32 %v1651, %v1787
      %v1833 = vmax.f32 %v1652, %v1651
      %v1834 = vmax.f32 %v1653, %v1788
      %v1835 = vmax.f32 %v1654, %v1653
      %v1836 = vmax.f32 %v1655, %v1789
      %v1837 = vmax.f32 %v1656, %v1655
      %v1838 = vmax.f32 %v1657, %v1790
      %v1839 = vmax.f32 %v1658, %v1657
      %v1840 = vmax.f32 %v1659, %v1791
      %v1841 = vmax.f32 %v1660, %v1659
      %v1842 = vmax.f32 %v1661, %v1792
      %v1843 = vmax.f32 %v1662, %v1661
      %v1844 = vmax.f32 %v1663, %v1793
      %v1845 = vmax.f32 %v1664, %v1663
      %v1846 = vmax.f32 %v1665, %v1794
      %v1847 = vmax.f32 %v1666, %v1665
      %v1848 = vmax.f32 %v1667, %v1795
      %v1849 = vmax.f32 %v1668, %v1667
      %1886 = vrot.lane.b32.xlu0 %v1814, 119
      %v1887 = vpop.permute.xlu0 %1886
      %1888 = vrot.lane.b32.xlu0 %v1815, 119
      %v1889 = vpop.permute.xlu0 %1888
      %1890 = vrot.lane.b32.xlu0 %v1816, 119
      %v1891 = vpop.permute.xlu0 %1890
      %1892 = vrot.lane.b32.xlu0 %v1817, 119
      %v1893 = vpop.permute.xlu0 %1892
      %1894 = vrot.lane.b32.xlu0 %v1818, 119
      %v1895 = vpop.permute.xlu0 %1894
      %1896 = vrot.lane.b32.xlu0 %v1819, 119
      %v1897 = vpop.permute.xlu0 %1896
      %1898 = vrot.lane.b32.xlu0 %v1820, 119
      %v1899 = vpop.permute.xlu0 %1898
      %1900 = vrot.lane.b32.xlu0 %v1821, 119
      %v1901 = vpop.permute.xlu0 %1900
      %1902 = vrot.lane.b32.xlu0 %v1822, 119
      %v1903 = vpop.permute.xlu0 %1902
      %1904 = vrot.lane.b32.xlu0 %v1823, 119
      %v1905 = vpop.permute.xlu0 %1904
      %1906 = vrot.lane.b32.xlu0 %v1824, 119
      %v1907 = vpop.permute.xlu0 %1906
      %1908 = vrot.lane.b32.xlu0 %v1825, 119
      %v1909 = vpop.permute.xlu0 %1908
      %1910 = vrot.lane.b32.xlu0 %v1826, 119
      %v1911 = vpop.permute.xlu0 %1910
      %1912 = vrot.lane.b32.xlu0 %v1827, 119
      %v1913 = vpop.permute.xlu0 %1912
      %1914 = vrot.lane.b32.xlu0 %v1828, 119
      %v1915 = vpop.permute.xlu0 %1914
      %1916 = vrot.lane.b32.xlu0 %v1829, 119
      %v1917 = vpop.permute.xlu0 %1916
      %1918 = vrot.lane.b32.xlu0 %v1830, 119
      %v1919 = vpop.permute.xlu0 %1918
      %1920 = vrot.lane.b32.xlu0 %v1831, 119
      %v1921 = vpop.permute.xlu0 %1920
      %1922 = vrot.lane.b32.xlu0 %v1832, 119
      %v1923 = vpop.permute.xlu0 %1922
      %1924 = vrot.lane.b32.xlu0 %v1833, 119
      %v1925 = vpop.permute.xlu0 %1924
      %1926 = vrot.lane.b32.xlu0 %v1834, 119
      %v1927 = vpop.permute.xlu0 %1926
      %1928 = vrot.lane.b32.xlu0 %v1835, 119
      %v1929 = vpop.permute.xlu0 %1928
      %1930 = vrot.lane.b32.xlu0 %v1836, 119
      %v1931 = vpop.permute.xlu0 %1930
      %1932 = vrot.lane.b32.xlu0 %v1837, 119
      %v1933 = vpop.permute.xlu0 %1932
      %1934 = vrot.lane.b32.xlu0 %v1838, 119
      %v1935 = vpop.permute.xlu0 %1934
      %1936 = vrot.lane.b32.xlu0 %v1839, 119
      %v1937 = vpop.permute.xlu0 %1936
      %1938 = vrot.lane.b32.xlu0 %v1840, 119
      %v1939 = vpop.permute.xlu0 %1938
      %1940 = vrot.lane.b32.xlu0 %v1841, 119
      %v1941 = vpop.permute.xlu0 %1940
      %1942 = vrot.lane.b32.xlu0 %v1842, 119
      %v1943 = vpop.permute.xlu0 %1942
      %1944 = vrot.lane.b32.xlu0 %v1843, 119
      %v1945 = vpop.permute.xlu0 %1944
      %1946 = vrot.lane.b32.xlu0 %v1844, 119
      %v1947 = vpop.permute.xlu0 %1946
      %1948 = vrot.lane.b32.xlu0 %v1845, 119
      %v1949 = vpop.permute.xlu0 %1948
      %1950 = vrot.lane.b32.xlu0 %v1846, 119
      %v1951 = vpop.permute.xlu0 %1950
      %1952 = vrot.lane.b32.xlu0 %v1847, 119
      %v1953 = vpop.permute.xlu0 %1952
      %1954 = vrot.lane.b32.xlu0 %v1848, 119
      %v1955 = vpop.permute.xlu0 %1954
      %1956 = vrot.lane.b32.xlu0 %v1849, 119
      %v1957 = vpop.permute.xlu0 %1956
      %vm1958 = vcmask 973824
      %v1959 = vsel %vm1958, %v1887, %v1889
      %v1960 = vsel %vm1958, %v1891, %v1893
      %v1961 = vsel %vm1958, %v1895, %v1897
      %v1962 = vsel %vm1958, %v1899, %v1901
      %v1963 = vsel %vm1958, %v1903, %v1905
      %v1964 = vsel %vm1958, %v1907, %v1909
      %v1965 = vsel %vm1958, %v1911, %v1913
      %v1966 = vsel %vm1958, %v1915, %v1917
      %v1967 = vsel %vm1958, %v1919, %v1921
      %v1968 = vsel %vm1958, %v1923, %v1925
      %v1969 = vsel %vm1958, %v1927, %v1929
      %v1970 = vsel %vm1958, %v1931, %v1933
      %v1971 = vsel %vm1958, %v1935, %v1937
      %v1972 = vsel %vm1958, %v1939, %v1941
      %v1973 = vsel %vm1958, %v1943, %v1945
      %v1974 = vsel %vm1958, %v1947, %v1949
      %v1975 = vsel %vm1958, %v1951, %v1953
      %v1976 = vsel %vm1958, %v1955, %v1957
      %1995 = vrot.lane.b32.xlu0 %v1814, 127
      %v1996 = vpop.permute.xlu0 %1995
      %1997 = vrot.lane.b32.xlu0 %v1816, 127
      %v1998 = vpop.permute.xlu0 %1997
      %1999 = vrot.lane.b32.xlu0 %v1818, 127
      %v2000 = vpop.permute.xlu0 %1999
      %2001 = vrot.lane.b32.xlu0 %v1820, 127
      %v2002 = vpop.permute.xlu0 %2001
      %2003 = vrot.lane.b32.xlu0 %v1822, 127
      %v2004 = vpop.permute.xlu0 %2003
      %2005 = vrot.lane.b32.xlu0 %v1824, 127
      %v2006 = vpop.permute.xlu0 %2005
      %2007 = vrot.lane.b32.xlu0 %v1826, 127
      %v2008 = vpop.permute.xlu0 %2007
      %2009 = vrot.lane.b32.xlu0 %v1828, 127
      %v2010 = vpop.permute.xlu0 %2009
      %2011 = vrot.lane.b32.xlu0 %v1830, 127
      %v2012 = vpop.permute.xlu0 %2011
      %2013 = vrot.lane.b32.xlu0 %v1832, 127
      %v2014 = vpop.permute.xlu0 %2013
      %2015 = vrot.lane.b32.xlu0 %v1834, 127
      %v2016 = vpop.permute.xlu0 %2015
      %2017 = vrot.lane.b32.xlu0 %v1836, 127
      %v2018 = vpop.permute.xlu0 %2017
      %2019 = vrot.lane.b32.xlu0 %v1838, 127
      %v2020 = vpop.permute.xlu0 %2019
      %2021 = vrot.lane.b32.xlu0 %v1840, 127
      %v2022 = vpop.permute.xlu0 %2021
      %2023 = vrot.lane.b32.xlu0 %v1842, 127
      %v2024 = vpop.permute.xlu0 %2023
      %2025 = vrot.lane.b32.xlu0 %v1844, 127
      %v2026 = vpop.permute.xlu0 %2025
      %2027 = vrot.lane.b32.xlu0 %v1846, 127
      %v2028 = vpop.permute.xlu0 %2027
      %2029 = vrot.lane.b32.xlu0 %v1848, 127
      %v2030 = vpop.permute.xlu0 %2029
      %v2049 = vsel %vm964, %v1959, %v1996
      %v2050 = vsel %vm964, %v1960, %v1998
      %v2051 = vsel %vm964, %v1961, %v2000
      %v2052 = vsel %vm964, %v1962, %v2002
      %v2053 = vsel %vm964, %v1963, %v2004
      %v2054 = vsel %vm964, %v1964, %v2006
      %v2055 = vsel %vm964, %v1965, %v2008
      %v2056 = vsel %vm964, %v1966, %v2010
      %v2057 = vsel %vm964, %v1967, %v2012
      %v2058 = vsel %vm964, %v1968, %v2014
      %v2059 = vsel %vm964, %v1969, %v2016
      %v2060 = vsel %vm964, %v1970, %v2018
      %v2061 = vsel %vm964, %v1971, %v2020
      %v2062 = vsel %vm964, %v1972, %v2022
      %v2063 = vsel %vm964, %v1973, %v2024
      %v2064 = vsel %vm964, %v1974, %v2026
      %v2065 = vsel %vm964, %v1975, %v2028
      %v2066 = vsel %vm964, %v1976, %v2030
      %v2067 = vmax.f32 %v1814, %v2049
      %v2068 = vmax.f32 %v1815, %v1996
      %v2069 = vmax.f32 %v1816, %v2050
      %v2070 = vmax.f32 %v1817, %v1998
      %v2071 = vmax.f32 %v1818, %v2051
      %v2072 = vmax.f32 %v1819, %v2000
      %v2073 = vmax.f32 %v1820, %v2052
      %v2074 = vmax.f32 %v1821, %v2002
      %v2075 = vmax.f32 %v1822, %v2053
      %v2076 = vmax.f32 %v1823, %v2004
      %v2077 = vmax.f32 %v1824, %v2054
      %v2078 = vmax.f32 %v1825, %v2006
      %v2079 = vmax.f32 %v1826, %v2055
      %v2080 = vmax.f32 %v1827, %v2008
      %v2081 = vmax.f32 %v1828, %v2056
      %v2082 = vmax.f32 %v1829, %v2010
      %v2083 = vmax.f32 %v1830, %v2057
      %v2084 = vmax.f32 %v1831, %v2012
      %v2085 = vmax.f32 %v1832, %v2058
      %v2086 = vmax.f32 %v1833, %v2014
      %v2087 = vmax.f32 %v1834, %v2059
      %v2088 = vmax.f32 %v1835, %v2016
      %v2089 = vmax.f32 %v1836, %v2060
      %v2090 = vmax.f32 %v1837, %v2018
      %v2091 = vmax.f32 %v1838, %v2061
      %v2092 = vmax.f32 %v1839, %v2020
      %v2093 = vmax.f32 %v1840, %v2062
      %v2094 = vmax.f32 %v1841, %v2022
      %v2095 = vmax.f32 %v1842, %v2063
      %v2096 = vmax.f32 %v1843, %v2024
      %v2097 = vmax.f32 %v1844, %v2064
      %v2098 = vmax.f32 %v1845, %v2026
      %v2099 = vmax.f32 %v1846, %v2065
      %v2100 = vmax.f32 %v1847, %v2028
      %v2101 = vmax.f32 %v1848, %v2066
      %v2102 = vmax.f32 %v1849, %v2030
      %v2103 = vmul.f32 %v2067, %v2067
      %v2104 = vmul.f32 %v2068, %v2068
      %v2105 = vmul.f32 %v2069, %v2069
      %v2106 = vmul.f32 %v2070, %v2070
      %v2107 = vmul.f32 %v2071, %v2071
      %v2108 = vmul.f32 %v2072, %v2072
      %v2109 = vmul.f32 %v2073, %v2073
      %v2110 = vmul.f32 %v2074, %v2074
      %v2111 = vmul.f32 %v2075, %v2075
      %v2112 = vmul.f32 %v2076, %v2076
      %v2113 = vmul.f32 %v2077, %v2077
      %v2114 = vmul.f32 %v2078, %v2078
      %v2115 = vmul.f32 %v2079, %v2079
      %v2116 = vmul.f32 %v2080, %v2080
      %v2117 = vmul.f32 %v2081, %v2081
      %v2118 = vmul.f32 %v2082, %v2082
      %v2119 = vmul.f32 %v2083, %v2083
      %v2120 = vmul.f32 %v2084, %v2084
      %v2121 = vmul.f32 %v2085, %v2085
      %v2122 = vmul.f32 %v2086, %v2086
      %v2123 = vmul.f32 %v2087, %v2087
      %v2124 = vmul.f32 %v2088, %v2088
      %v2125 = vmul.f32 %v2089, %v2089
      %v2126 = vmul.f32 %v2090, %v2090
      %v2127 = vmul.f32 %v2091, %v2091
      %v2128 = vmul.f32 %v2092, %v2092
      %v2129 = vmul.f32 %v2093, %v2093
      %v2130 = vmul.f32 %v2094, %v2094
      %v2131 = vmul.f32 %v2095, %v2095
      %v2132 = vmul.f32 %v2096, %v2096
      %v2133 = vmul.f32 %v2097, %v2097
      %v2134 = vmul.f32 %v2098, %v2098
      %v2135 = vmul.f32 %v2099, %v2099
      %v2136 = vmul.f32 %v2100, %v2100
      %v2137 = vmul.f32 %v2101, %v2101
      %v2138 = vmul.f32 %v2102, %v2102
      %v2140 = vcombine.high %v345, %v345
      %vm2141 = vcmask 130048
      %v2142 = vsel %vm2141, %v2140, 0
      %2144 = vmatprep.subr.mxu0 %v2104
      %2145 = vmatpush1.msra.mxu0 %v2103
      %2146 = vmatprep.subr.mxu0 %v2106
      %2147 = vmatpush1.msra.mxu0 %v2105
      %2148 = vmatprep.subr.mxu0 %v2108
      %2149 = vmatpush1.msra.mxu0 %v2107
      %2150 = vmatprep.subr.mxu0 %v2110
      %2151 = vmatpush1.msra.mxu0 %v2109
      %2152 = vmatprep.subr.mxu0 %v2112
      %2153 = vmatpush1.msra.mxu0 %v2111
      %2154 = vmatprep.subr.mxu0 %v2114
      %2155 = vmatpush1.msra.mxu0 %v2113
      %2156 = vmatprep.subr.mxu0 %v2116
      %2157 = vmatpush1.msra.mxu0 %v2115
      %2158 = vmatprep.subr.mxu0 %v2118
      %2159 = vmatpush1.msra.mxu0 %v2117
      %2160 = vmatprep.subr.mxu0 %v2120
      %2161 = vmatpush1.msra.mxu0 %v2119
      %2162 = vmatprep.subr.mxu0 %v2122
      %2163 = vmatpush1.msra.mxu0 %v2121
      %2164 = vmatprep.subr.mxu0 %v2124
      %2165 = vmatpush1.msra.mxu0 %v2123
      %2166 = vmatprep.subr.mxu0 %v2126
      %2167 = vmatpush1.msra.mxu0 %v2125
      %2168 = vmatprep.subr.mxu0 %v2128
      %2169 = vmatpush1.msra.mxu0 %v2127
      %2170 = vmatprep.subr.mxu0 %v2130
      %2171 = vmatpush1.msra.mxu0 %v2129
      %2172 = vmatprep.subr.mxu0 %v2132
      %2173 = vmatpush1.msra.mxu0 %v2131
      %2174 = vmatprep.subr.mxu0 %v2134
      %2175 = vmatpush1.msra.mxu0 %v2133
      %2176 = vmatprep.subr.mxu0 %v2136
      %2177 = vmatpush1.msra.mxu0 %v2135
      %2178 = vmatprep.subr.mxu0 %v2138
      %2179 = vmatpush1.msra.mxu0 %v2137
      %2180 = vmatprep.subr.mxu0 0.0
      %2181 = vmatpush1.msra.mxu0 0.0
      %2182 = vmatprep.subr.mxu0 0.0
      %2183 = vmatpush1.msra.mxu0 0.0
      %2184 = vmatprep.subr.mxu0 0.0
      %2185 = vmatpush1.msra.mxu0 0.0
      %2186 = vmatprep.subr.mxu0 0.0
      %2187 = vmatpush1.msra.mxu0 0.0
      %2188 = vmatprep.subr.mxu0 0.0
      %2189 = vmatpush1.msra.mxu0 0.0
      %2190 = vmatprep.subr.mxu0 0.0
      %2191 = vmatpush1.msra.mxu0 0.0
      %2192 = vmatprep.subr.mxu0 0.0
      %2193 = vmatpush1.msra.mxu0 0.0
      %2194 = vmatprep.subr.mxu0 0.0
      %2195 = vmatpush1.msra.mxu0 0.0
      %2196 = vmatprep.subr.mxu0 0.0
      %2197 = vmatpush1.msra.mxu0 0.0
      %2198 = vmatprep.subr.mxu0 0.0
      %2199 = vmatpush1.msra.mxu0 0.0
      %2200 = vmatprep.subr.mxu0 0.0
      %2201 = vmatpush1.msra.mxu0 0.0
      %2202 = vmatprep.subr.mxu0 0.0
      %2203 = vmatpush1.msra.mxu0 0.0
      %2204 = vmatprep.subr.mxu0 0.0
      %2205 = vmatpush1.msra.mxu0 0.0
      %2206 = vmatprep.subr.mxu0 0.0
      %2207 = vmatpush1.msra.mxu0 0.0
      %2208 = vmatprep.mubr.f32.mxu0 %v2142
      %2209 = vmatmul.mubr.f32.gmra.mrb[0].mxu0 %v345
      %v2210 = vpop.f32.mrb[0].mxu0
      %v2211 = vadd.f32 0.0, %v2210
      %v2212 = vpop.f32.mrb[0].mxu0
      %v2213 = vadd.f32 0.0, %v2212
      %2214 = vdwg.mxu0
      %v2215 = vmax.f32 %v2211, 1e-24
      %v2216 = vmax.f32 %v2213, 1e-24
      %v2217 = vrsqrt.pop %v2215
      %v2218 = vrsqrt.pop %v2216
      %v2220 = vsel %vm397, %v346, 0
      %v2223 = vsel %vm397, %v347, 0
      %v2226 = vsel %vm397, %v348, 0
      %v2229 = vsel %vm397, %v349, 0
      %v2232 = vsel %vm397, %v350, 0
      %v2235 = vsel %vm397, %v351, 0
      %v2238 = vsel %vm397, %v352, 0
      %v2241 = vsel %vm397, %v353, 0
      %v2244 = vsel %vm397, %v354, 0
      %v2247 = vsel %vm397, %v355, 0
      %v2250 = vsel %vm397, %v356, 0
      %v2253 = vsel %vm397, %v357, 0
      %v2256 = vsel %vm397, %v358, 0
      %v2259 = vsel %vm397, %v359, 0
      %v2262 = vsel %vm397, %v360, 0
      %v2265 = vsel %vm397, %v361, 0
      %v2268 = vsel %vm397, %v362, 0
      %v2271 = vsel %vm397, %v363, 0
      %v2274 = vsel %vm494, %v2217, 0
      %v2277 = vsel %vm494, %v2218, 0
      %2279 = vmatprep.subr.mxu0 %v2277
      %2280 = vmatpush1.msra.mxu0 %v2274
      %2281 = vmatprep.subr.mxu0 0.0
      %2282 = vmatpush1.msra.mxu0 0.0
      %2283 = vmatprep.subr.mxu0 0.0
      %2284 = vmatpush1.msra.mxu0 0.0
      %2285 = vmatprep.subr.mxu0 0.0
      %2286 = vmatpush1.msra.mxu0 0.0
      %2287 = vmatprep.subr.mxu0 0.0
      %2288 = vmatpush1.msra.mxu0 0.0
      %2289 = vmatprep.subr.mxu0 0.0
      %2290 = vmatpush1.msra.mxu0 0.0
      %2291 = vmatprep.subr.mxu0 0.0
      %2292 = vmatpush1.msra.mxu0 0.0
      %2293 = vmatprep.subr.mxu0 0.0
      %2294 = vmatpush1.msra.mxu0 0.0
      %2295 = vmatprep.subr.mxu0 0.0
      %2296 = vmatpush1.msra.mxu0 0.0
      %2297 = vmatprep.subr.mxu0 0.0
      %2298 = vmatpush1.msra.mxu0 0.0
      %2299 = vmatprep.subr.mxu0 0.0
      %2300 = vmatpush1.msra.mxu0 0.0
      %2301 = vmatprep.subr.mxu0 0.0
      %2302 = vmatpush1.msra.mxu0 0.0
      %2303 = vmatprep.subr.mxu0 0.0
      %2304 = vmatpush1.msra.mxu0 0.0
      %2305 = vmatprep.subr.mxu0 0.0
      %2306 = vmatpush1.msra.mxu0 0.0
      %2307 = vmatprep.subr.mxu0 0.0
      %2308 = vmatpush1.msra.mxu0 0.0
      %2309 = vmatprep.subr.mxu0 0.0
      %2310 = vmatpush1.msra.mxu0 0.0
      %2311 = vmatprep.subr.mxu0 0.0
      %2312 = vmatpush1.msra.mxu0 0.0
      %2313 = vmatprep.subr.mxu0 0.0
      %2314 = vmatpush1.msra.mxu0 0.0
      %2315 = vmatprep.subr.mxu0 0.0
      %2316 = vmatpush1.msra.mxu0 0.0
      %2317 = vmatprep.subr.mxu0 0.0
      %2318 = vmatpush1.msra.mxu0 0.0
      %2319 = vmatprep.subr.mxu0 0.0
      %2320 = vmatpush1.msra.mxu0 0.0
      %2321 = vmatprep.subr.mxu0 0.0
      %2322 = vmatpush1.msra.mxu0 0.0
      %2323 = vmatprep.subr.mxu0 0.0
      %2324 = vmatpush1.msra.mxu0 0.0
      %2325 = vmatprep.subr.mxu0 0.0
      %2326 = vmatpush1.msra.mxu0 0.0
      %2327 = vmatprep.subr.mxu0 0.0
      %2328 = vmatpush1.msra.mxu0 0.0
      %2329 = vmatprep.subr.mxu0 0.0
      %2330 = vmatpush1.msra.mxu0 0.0
      %2331 = vmatprep.subr.mxu0 0.0
      %2332 = vmatpush1.msra.mxu0 0.0
      %2333 = vmatprep.subr.mxu0 0.0
      %2334 = vmatpush1.msra.mxu0 0.0
      %2335 = vmatprep.subr.mxu0 0.0
      %2336 = vmatpush1.msra.mxu0 0.0
      %2337 = vmatprep.subr.mxu0 0.0
      %2338 = vmatpush1.msra.mxu0 0.0
      %2339 = vmatprep.subr.mxu0 0.0
      %2340 = vmatpush1.msra.mxu0 0.0
      %2341 = vmatprep.subr.mxu0 0.0
      %2342 = vmatpush1.msra.mxu0 0.0
      %2343 = vmatprep.mubr.f32.mxu0 0.0
      %2344 = vmatmul.mubr.f32.gmra.mrb[0].mxu0 %v2220
      %v2345 = vpop.f32.mrb[0].mxu0
      %v2346 = vadd.f32 0.0, %v2345
      %v2347 = vpop.f32.mrb[0].mxu0
      %2348 = vmatprep.mubr.f32.mxu0 0.0
      %2349 = vmatmul.mubr.f32.gmra.mrb[0].mxu0 %v2223
      %v2350 = vpop.f32.mrb[0].mxu0
      %v2351 = vadd.f32 0.0, %v2350
      %v2352 = vpop.f32.mrb[0].mxu0
      %2353 = vmatprep.mubr.f32.mxu0 0.0
      %2354 = vmatmul.mubr.f32.gmra.mrb[0].mxu0 %v2226
      %v2355 = vpop.f32.mrb[0].mxu0
      %v2356 = vadd.f32 0.0, %v2355
      %v2357 = vpop.f32.mrb[0].mxu0
      %2358 = vmatprep.mubr.f32.mxu0 0.0
      %2359 = vmatmul.mubr.f32.gmra.mrb[0].mxu0 %v2229
      %v2360 = vpop.f32.mrb[0].mxu0
      %v2361 = vadd.f32 0.0, %v2360
      %v2362 = vpop.f32.mrb[0].mxu0
      %2363 = vmatprep.mubr.f32.mxu0 0.0
      %2364 = vmatmul.mubr.f32.gmra.mrb[0].mxu0 %v2232
      %v2365 = vpop.f32.mrb[0].mxu0
      %v2366 = vadd.f32 0.0, %v2365
      %v2367 = vpop.f32.mrb[0].mxu0
      %2368 = vmatprep.mubr.f32.mxu0 0.0
      %2369 = vmatmul.mubr.f32.gmra.mrb[0].mxu0 %v2235
      %v2370 = vpop.f32.mrb[0].mxu0
      %v2371 = vadd.f32 0.0, %v2370
      %v2372 = vpop.f32.mrb[0].mxu0
      %2373 = vmatprep.mubr.f32.mxu0 0.0
      %2374 = vmatmul.mubr.f32.gmra.mrb[0].mxu0 %v2238
      %v2375 = vpop.f32.mrb[0].mxu0
      %v2376 = vadd.f32 0.0, %v2375
      %v2377 = vpop.f32.mrb[0].mxu0
      %2378 = vmatprep.mubr.f32.mxu0 0.0
      %2379 = vmatmul.mubr.f32.gmra.mrb[0].mxu0 %v2241
      %v2380 = vpop.f32.mrb[0].mxu0
      %v2381 = vadd.f32 0.0, %v2380
      %v2382 = vpop.f32.mrb[0].mxu0
      %2383 = vmatprep.mubr.f32.mxu0 0.0
      %2384 = vmatmul.mubr.f32.gmra.mrb[0].mxu0 %v2244
      %v2385 = vpop.f32.mrb[0].mxu0
      %v2386 = vadd.f32 0.0, %v2385
      %v2387 = vpop.f32.mrb[0].mxu0
      %2388 = vmatprep.mubr.f32.mxu0 0.0
      %2389 = vmatmul.mubr.f32.gmra.mrb[0].mxu0 %v2247
      %v2390 = vpop.f32.mrb[0].mxu0
      %v2391 = vadd.f32 0.0, %v2390
      %v2392 = vpop.f32.mrb[0].mxu0
      %2393 = vmatprep.mubr.f32.mxu0 0.0
      %2394 = vmatmul.mubr.f32.gmra.mrb[0].mxu0 %v2250
      %v2395 = vpop.f32.mrb[0].mxu0
      %v2396 = vadd.f32 0.0, %v2395
      %v2397 = vpop.f32.mrb[0].mxu0
      %2398 = vmatprep.mubr.f32.mxu0 0.0
      %2399 = vmatmul.mubr.f32.gmra.mrb[0].mxu0 %v2253
      %v2400 = vpop.f32.mrb[0].mxu0
      %v2401 = vadd.f32 0.0, %v2400
      %v2402 = vpop.f32.mrb[0].mxu0
      %2403 = vmatprep.mubr.f32.mxu0 0.0
      %2404 = vmatmul.mubr.f32.gmra.mrb[0].mxu0 %v2256
      %v2405 = vpop.f32.mrb[0].mxu0
      %v2406 = vadd.f32 0.0, %v2405
      %v2407 = vpop.f32.mrb[0].mxu0
      %2408 = vmatprep.mubr.f32.mxu0 0.0
      %2409 = vmatmul.mubr.f32.gmra.mrb[0].mxu0 %v2259
      %v2410 = vpop.f32.mrb[0].mxu0
      %v2411 = vadd.f32 0.0, %v2410
      %v2412 = vpop.f32.mrb[0].mxu0
      %2413 = vmatprep.mubr.f32.mxu0 0.0
      %2414 = vmatmul.mubr.f32.gmra.mrb[0].mxu0 %v2262
      %v2415 = vpop.f32.mrb[0].mxu0
      %v2416 = vadd.f32 0.0, %v2415
      %v2417 = vpop.f32.mrb[0].mxu0
      %2418 = vmatprep.mubr.f32.mxu0 0.0
      %2419 = vmatmul.mubr.f32.gmra.mrb[0].mxu0 %v2265
      %v2420 = vpop.f32.mrb[0].mxu0
      %v2421 = vadd.f32 0.0, %v2420
      %v2422 = vpop.f32.mrb[0].mxu0
      %2423 = vmatprep.mubr.f32.mxu0 0.0
      %2424 = vmatmul.mubr.f32.gmra.mrb[0].mxu0 %v2268
      %v2425 = vpop.f32.mrb[0].mxu0
      %v2426 = vadd.f32 0.0, %v2425
      %v2427 = vpop.f32.mrb[0].mxu0
      %2428 = vmatprep.mubr.f32.mxu0 0.0
      %2429 = vmatmul.mubr.f32.gmra.mrb[0].mxu0 %v2271
      %v2430 = vpop.f32.mrb[0].mxu0
      %v2431 = vadd.f32 0.0, %v2430
      %v2432 = vpop.f32.mrb[0].mxu0
      %2433 = vdwg.mxu0
      %v2434 = vmul.f32 %v2067, %v2346
      %v2435 = vmul.f32 %v2069, %v2351
      %v2436 = vmul.f32 %v2071, %v2356
      %v2437 = vmul.f32 %v2073, %v2361
      %v2438 = vmul.f32 %v2075, %v2366
      %v2439 = vmul.f32 %v2077, %v2371
      %v2440 = vmul.f32 %v2079, %v2376
      %v2441 = vmul.f32 %v2081, %v2381
      %v2442 = vmul.f32 %v2083, %v2386
      %v2443 = vmul.f32 %v2085, %v2391
      %v2444 = vmul.f32 %v2087, %v2396
      %v2445 = vmul.f32 %v2089, %v2401
      %v2446 = vmul.f32 %v2091, %v2406
      %v2447 = vmul.f32 %v2093, %v2411
      %v2448 = vmul.f32 %v2095, %v2416
      %v2449 = vmul.f32 %v2097, %v2421
      %v2450 = vmul.f32 %v2099, %v2426
      %v2451 = vmul.f32 %v2101, %v2431
      %v2452 = vpack.c.bf16 %v2435, %v2434
      %v2453 = vpack.c.bf16 %v2437, %v2436
      %v2454 = vpack.c.bf16 %v2439, %v2438
      %v2455 = vpack.c.bf16 %v2441, %v2440
      %v2456 = vpack.c.bf16 %v2443, %v2442
      %v2457 = vpack.c.bf16 %v2445, %v2444
      %v2458 = vpack.c.bf16 %v2447, %v2446
      %v2459 = vpack.c.bf16 %v2449, %v2448
      %v2460 = vpack.c.bf16 %v2451, %v2450
      %2470 = vrot.lane.b32.xlu0 %v2452, 104
      %v2471 = vpop.permute.xlu0 %2470
      %2472 = vrot.lane.b32.xlu0 %v2453, 104
      %v2473 = vpop.permute.xlu0 %2472
      %2474 = vrot.lane.b32.xlu0 %v2454, 104
      %v2475 = vpop.permute.xlu0 %2474
      %2476 = vrot.lane.b32.xlu0 %v2455, 104
      %v2477 = vpop.permute.xlu0 %2476
      %2478 = vrot.lane.b32.xlu0 %v2456, 104
      %v2479 = vpop.permute.xlu0 %2478
      %2480 = vrot.lane.b32.xlu0 %v2457, 104
      %v2481 = vpop.permute.xlu0 %2480
      %2482 = vrot.lane.b32.xlu0 %v2458, 104
      %v2483 = vpop.permute.xlu0 %2482
      %2484 = vrot.lane.b32.xlu0 %v2459, 104
      %v2485 = vpop.permute.xlu0 %2484
      %2486 = vrot.lane.b32.xlu0 %v2460, 104
      %v2487 = vpop.permute.xlu0 %2486
      %v2489 = vsel %vm296, 0, %v2452
      %v2491 = vsel %vm296, 0, %v2453
      %v2493 = vsel %vm296, 0, %v2454
      %v2495 = vsel %vm296, 0, %v2455
      %v2497 = vsel %vm296, 0, %v2456
      %v2499 = vsel %vm296, 0, %v2457
      %v2501 = vsel %vm296, 0, %v2458
      %v2503 = vsel %vm296, 0, %v2459
      %v2505 = vsel %vm296, 0, %v2460
      %vm2506 = vcmask 310272
      %v2507 = vsel %vm2506, %v2489, 0
      %v2508 = vsel %vm2506, %v2491, 0
      %v2509 = vsel %vm2506, %v2493, 0
      %v2510 = vsel %vm2506, %v2495, 0
      %v2511 = vsel %vm2506, %v2497, 0
      %v2512 = vsel %vm2506, %v2499, 0
      %v2513 = vsel %vm2506, %v2501, 0
      %v2514 = vsel %vm2506, %v2503, 0
      %v2515 = vsel %vm2506, %v2505, 0
      %vm2516 = vcmask 359424
      %v2517 = vsel %vm2516, %v2507, 0
      %v2518 = vsel %vm2516, %v2508, 0
      %v2519 = vsel %vm2516, %v2509, 0
      %v2520 = vsel %vm2516, %v2510, 0
      %v2521 = vsel %vm2516, %v2511, 0
      %v2522 = vsel %vm2516, %v2512, 0
      %v2523 = vsel %vm2516, %v2513, 0
      %v2524 = vsel %vm2516, %v2514, 0
      %v2525 = vsel %vm2516, %v2515, 0
      %vm2526 = vcmask 408576
      %v2528 = vsel %vm2526, %v2517, %v2471
      %v2530 = vsel %vm2526, %v2518, %v2473
      %v2532 = vsel %vm2526, %v2519, %v2475
      %v2534 = vsel %vm2526, %v2520, %v2477
      %v2536 = vsel %vm2526, %v2521, %v2479
      %v2538 = vsel %vm2526, %v2522, %v2481
      %v2540 = vsel %vm2526, %v2523, %v2483
      %v2542 = vsel %vm2526, %v2524, %v2485
      %v2544 = vsel %vm2526, %v2525, %v2487
      %vm2545 = vcmask 670720
      %v2546 = vsel %vm2545, %v2528, 0
      %v2548 = vsel %vm2545, %v2530, 0
      %v2550 = vsel %vm2545, %v2532, 0
      %v2552 = vsel %vm2545, %v2534, 0
      %v2554 = vsel %vm2545, %v2536, 0
      %v2556 = vsel %vm2545, %v2538, 0
      %v2558 = vsel %vm2545, %v2540, 0
      %v2560 = vsel %vm2545, %v2542, 0
      %v2562 = vsel %vm2545, %v2544, 0
      %v2564 = vld [vmem:[%s3] sm:$0xff]
      %v2565 = vld [vmem:[%s3 + $0x8] sm:$0xff]
      %v2566 = vld [vmem:[%s3 + $0x10] sm:$0xff]
      %v2567 = vld [vmem:[%s3 + $0x18] sm:$0xff]
      %v2568 = vld [vmem:[%s3 + $0x20] sm:$0xff]
      %v2569 = vld [vmem:[%s3 + $0x28] sm:$0xff]
      %v2570 = vld [vmem:[%s3 + $0x30] sm:$0xff]
      %v2571 = vld [vmem:[%s3 + $0x38] sm:$0xf]
      %v2572 = vld [vmem:[%s3 + $0x3c] sm:$0xff]
      %v2573 = vld [vmem:[%s3 + $0x44] sm:$0xff]
      %v2574 = vld [vmem:[%s3 + $0x4c] sm:$0xff]
      %v2575 = vld [vmem:[%s3 + $0x54] sm:$0xff]
      %v2576 = vld [vmem:[%s3 + $0x5c] sm:$0xff]
      %v2577 = vld [vmem:[%s3 + $0x64] sm:$0xff]
      %v2578 = vld [vmem:[%s3 + $0x6c] sm:$0xff]
      %v2579 = vld [vmem:[%s3 + $0x74] sm:$0xf]
      %v2580 = vld [vmem:[%s3 + $0x78] sm:$0xff]
      %v2581 = vld [vmem:[%s3 + $0x80] sm:$0xff]
      %v2582 = vld [vmem:[%s3 + $0x88] sm:$0xff]
      %v2583 = vld [vmem:[%s3 + $0x90] sm:$0xff]
      %v2584 = vld [vmem:[%s3 + $0x98] sm:$0xff]
      %v2585 = vld [vmem:[%s3 + $0xa0] sm:$0xff]
      %v2586 = vld [vmem:[%s3 + $0xa8] sm:$0xff]
      %v2587 = vld [vmem:[%s3 + $0xb0] sm:$0xf]
      %v2588 = vld [vmem:[%s3 + $0xb4] sm:$0xff]
      %v2589 = vld [vmem:[%s3 + $0xbc] sm:$0xff]
      %v2590 = vld [vmem:[%s3 + $0xc4] sm:$0xff]
      %v2591 = vld [vmem:[%s3 + $0xcc] sm:$0xff]
      %v2592 = vld [vmem:[%s3 + $0xd4] sm:$0xff]
      %v2593 = vld [vmem:[%s3 + $0xdc] sm:$0xff]
      %v2594 = vld [vmem:[%s3 + $0xe4] sm:$0xff]
      %v2595 = vld [vmem:[%s3 + $0xec] sm:$0xf]
      %v2596 = vld [vmem:[%s3 + $0xf0] sm:$0xff]
      %v2597 = vld [vmem:[%s3 + $0xf8] sm:$0xff]
      %v2598 = vld [vmem:[%s3 + $0x100] sm:$0xff]
      %v2599 = vld [vmem:[%s3 + $0x108] sm:$0xff]
      %v2600 = vld [vmem:[%s3 + $0x110] sm:$0xff]
      %v2601 = vld [vmem:[%s3 + $0x118] sm:$0xff]
      %v2602 = vld [vmem:[%s3 + $0x120] sm:$0xff]
      %v2603 = vld [vmem:[%s3 + $0x128] sm:$0xf]
      %v2604 = vld [vmem:[%s3 + $0x12c] sm:$0xff]
      %v2605 = vld [vmem:[%s3 + $0x134] sm:$0xff]
      %v2606 = vld [vmem:[%s3 + $0x13c] sm:$0xff]
      %v2607 = vld [vmem:[%s3 + $0x144] sm:$0xff]
      %v2608 = vld [vmem:[%s3 + $0x14c] sm:$0xff]
      %v2609 = vld [vmem:[%s3 + $0x154] sm:$0xff]
      %v2610 = vld [vmem:[%s3 + $0x15c] sm:$0xff]
      %v2611 = vld [vmem:[%s3 + $0x164] sm:$0xf]
      %v2612 = vld [vmem:[%s3 + $0x168] sm:$0xff]
      %v2613 = vld [vmem:[%s3 + $0x170] sm:$0xff]
      %v2614 = vld [vmem:[%s3 + $0x178] sm:$0xff]
      %v2615 = vld [vmem:[%s3 + $0x180] sm:$0xff]
      %v2616 = vld [vmem:[%s3 + $0x188] sm:$0xff]
      %v2617 = vld [vmem:[%s3 + $0x190] sm:$0xff]
      %v2618 = vld [vmem:[%s3 + $0x198] sm:$0xff]
      %v2619 = vld [vmem:[%s3 + $0x1a0] sm:$0xf]
      %v2620 = vld [vmem:[%s3 + $0x1a4] sm:$0xff]
      %v2621 = vld [vmem:[%s3 + $0x1ac] sm:$0xff]
      %v2622 = vld [vmem:[%s3 + $0x1b4] sm:$0xff]
      %v2623 = vld [vmem:[%s3 + $0x1bc] sm:$0xff]
      %v2624 = vld [vmem:[%s3 + $0x1c4] sm:$0xff]
      %v2625 = vld [vmem:[%s3 + $0x1cc] sm:$0xff]
      %v2626 = vld [vmem:[%s3 + $0x1d4] sm:$0xff]
      %v2627 = vld [vmem:[%s3 + $0x1dc] sm:$0xf]
      %v2628 = vld [vmem:[%s3 + $0x1e0] sm:$0xff]
      %v2629 = vld [vmem:[%s3 + $0x1e8] sm:$0xff]
      %v2630 = vld [vmem:[%s3 + $0x1f0] sm:$0xff]
      %v2631 = vld [vmem:[%s3 + $0x1f8] sm:$0xff]
      %v2632 = vld [vmem:[%s3 + $0x200] sm:$0xff]
      %v2633 = vld [vmem:[%s3 + $0x208] sm:$0xff]
      %v2634 = vld [vmem:[%s3 + $0x210] sm:$0xff]
      %v2635 = vld [vmem:[%s3 + $0x218] sm:$0xf]
      %v2636 = vld [vmem:[%s3 + $0x21c] sm:$0xff]
      %v2637 = vld [vmem:[%s3 + $0x224] sm:$0xff]
      %v2638 = vld [vmem:[%s3 + $0x22c] sm:$0xff]
      %v2639 = vld [vmem:[%s3 + $0x234] sm:$0xff]
      %v2640 = vld [vmem:[%s3 + $0x23c] sm:$0xff]
      %v2641 = vld [vmem:[%s3 + $0x244] sm:$0xff]
      %v2642 = vld [vmem:[%s3 + $0x24c] sm:$0xff]
      %v2643 = vld [vmem:[%s3 + $0x254] sm:$0xf]
      %v2644 = vld [vmem:[%s3 + $0x258] sm:$0xff]
      %v2645 = vld [vmem:[%s3 + $0x260] sm:$0xff]
      %v2646 = vld [vmem:[%s3 + $0x268] sm:$0xff]
      %v2647 = vld [vmem:[%s3 + $0x270] sm:$0xff]
      %v2648 = vld [vmem:[%s3 + $0x278] sm:$0xff]
      %v2649 = vld [vmem:[%s3 + $0x280] sm:$0xff]
      %v2650 = vld [vmem:[%s3 + $0x288] sm:$0xff]
      %v2651 = vld [vmem:[%s3 + $0x290] sm:$0xf]
      %v2652 = vld [vmem:[%s3 + $0x294] sm:$0xff]
      %v2653 = vld [vmem:[%s3 + $0x29c] sm:$0xff]
      %v2654 = vld [vmem:[%s3 + $0x2a4] sm:$0xff]
      %v2655 = vld [vmem:[%s3 + $0x2ac] sm:$0xff]
      %v2656 = vld [vmem:[%s3 + $0x2b4] sm:$0xff]
      %v2657 = vld [vmem:[%s3 + $0x2bc] sm:$0xff]
      %v2658 = vld [vmem:[%s3 + $0x2c4] sm:$0xff]
      %v2659 = vld [vmem:[%s3 + $0x2cc] sm:$0xf]
      %v2660 = vld [vmem:[%s3 + $0x2d0] sm:$0xff]
      %v2661 = vld [vmem:[%s3 + $0x2d8] sm:$0xff]
      %v2662 = vld [vmem:[%s3 + $0x2e0] sm:$0xff]
      %v2663 = vld [vmem:[%s3 + $0x2e8] sm:$0xff]
      %v2664 = vld [vmem:[%s3 + $0x2f0] sm:$0xff]
      %v2665 = vld [vmem:[%s3 + $0x2f8] sm:$0xff]
      %v2666 = vld [vmem:[%s3 + $0x300] sm:$0xff]
      %v2667 = vld [vmem:[%s3 + $0x308] sm:$0xf]
      %v2668 = vld [vmem:[%s3 + $0x30c] sm:$0xff]
      %v2669 = vld [vmem:[%s3 + $0x314] sm:$0xff]
      %v2670 = vld [vmem:[%s3 + $0x31c] sm:$0xff]
      %v2671 = vld [vmem:[%s3 + $0x324] sm:$0xff]
      %v2672 = vld [vmem:[%s3 + $0x32c] sm:$0xff]
      %v2673 = vld [vmem:[%s3 + $0x334] sm:$0xff]
      %v2674 = vld [vmem:[%s3 + $0x33c] sm:$0xff]
      %v2675 = vld [vmem:[%s3 + $0x344] sm:$0xf]
      %v2676 = vld [vmem:[%s3 + $0x348] sm:$0xff]
      %v2677 = vld [vmem:[%s3 + $0x350] sm:$0xff]
      %v2678 = vld [vmem:[%s3 + $0x358] sm:$0xff]
      %v2679 = vld [vmem:[%s3 + $0x360] sm:$0xff]
      %v2680 = vld [vmem:[%s3 + $0x368] sm:$0xff]
      %v2681 = vld [vmem:[%s3 + $0x370] sm:$0xff]
      %v2682 = vld [vmem:[%s3 + $0x378] sm:$0xff]
      %v2683 = vld [vmem:[%s3 + $0x380] sm:$0xf]
      %v2684 = vld [vmem:[%s3 + $0x384] sm:$0xff]
      %v2685 = vld [vmem:[%s3 + $0x38c] sm:$0xff]
      %v2686 = vld [vmem:[%s3 + $0x394] sm:$0xff]
      %v2687 = vld [vmem:[%s3 + $0x39c] sm:$0xff]
      %v2688 = vld [vmem:[%s3 + $0x3a4] sm:$0xff]
      %v2689 = vld [vmem:[%s3 + $0x3ac] sm:$0xff]
      %v2690 = vld [vmem:[%s3 + $0x3b4] sm:$0xff]
      %v2691 = vld [vmem:[%s3 + $0x3bc] sm:$0xf]
      %v2692 = vld [vmem:[%s3 + $0x3c0] sm:$0xff]
      %v2693 = vld [vmem:[%s3 + $0x3c8] sm:$0xff]
      %v2694 = vld [vmem:[%s3 + $0x3d0] sm:$0xff]
      %v2695 = vld [vmem:[%s3 + $0x3d8] sm:$0xff]
      %v2696 = vld [vmem:[%s3 + $0x3e0] sm:$0xff]
      %v2697 = vld [vmem:[%s3 + $0x3e8] sm:$0xff]
      %v2698 = vld [vmem:[%s3 + $0x3f0] sm:$0xff]
      %v2699 = vld [vmem:[%s3 + $0x3f8] sm:$0xf]
      %v2700 = vld [vmem:[%s3 + $0x3fc] sm:$0xff]
      %v2701 = vld [vmem:[%s3 + $0x404] sm:$0xff]
      %v2702 = vld [vmem:[%s3 + $0x40c] sm:$0xff]
      %v2703 = vld [vmem:[%s3 + $0x414] sm:$0xff]
      %v2704 = vld [vmem:[%s3 + $0x41c] sm:$0xff]
      %v2705 = vld [vmem:[%s3 + $0x424] sm:$0xff]
      %v2706 = vld [vmem:[%s3 + $0x42c] sm:$0xff]
      %v2707 = vld [vmem:[%s3 + $0x434] sm:$0xf]
      %v2708 = vld [vmem:[%s4] sm:$0xff]
      %v2709 = vld [vmem:[%s4 + $0x8] sm:$0xff]
      %v2710 = vld [vmem:[%s4 + $0x10] sm:$0xff]
      %v2711 = vld [vmem:[%s4 + $0x18] sm:$0xff]
      %v2712 = vld [vmem:[%s4 + $0x20] sm:$0xff]
      %v2713 = vld [vmem:[%s4 + $0x28] sm:$0xff]
      %v2714 = vld [vmem:[%s4 + $0x30] sm:$0xff]
      %v2715 = vld [vmem:[%s4 + $0x38] sm:$0xff]
      %v2716 = vld [vmem:[%s4 + $0x40] sm:$0xff]
      %v2717 = vld [vmem:[%s4 + $0x48] sm:$0xff]
      %v2718 = vld [vmem:[%s4 + $0x50] sm:$0xff]
      %v2719 = vld [vmem:[%s4 + $0x58] sm:$0xff]
      %v2720 = vld [vmem:[%s4 + $0x60] sm:$0xff]
      %v2721 = vld [vmem:[%s4 + $0x68] sm:$0xff]
      %v2722 = vld [vmem:[%s4 + $0x70] sm:$0xff]
      %v2723 = vld [vmem:[%s4 + $0x78] sm:$0xff]
      %v2724 = vld [vmem:[%s4 + $0x80] sm:$0xff]
      %v2725 = vld [vmem:[%s4 + $0x88] sm:$0xff]
      %2735 = vrot.lane.b32.xlu0 %v2546, 46
      %v2736 = vpop.permute.xlu0 %2735
      %2737 = vrot.lane.b32.xlu0 %v2548, 46
      %v2738 = vpop.permute.xlu0 %2737
      %2739 = vrot.lane.b32.xlu0 %v2550, 46
      %v2740 = vpop.permute.xlu0 %2739
      %2741 = vrot.lane.b32.xlu0 %v2552, 46
      %v2742 = vpop.permute.xlu0 %2741
      %2743 = vrot.lane.b32.xlu0 %v2554, 46
      %v2744 = vpop.permute.xlu0 %2743
      %2745 = vrot.lane.b32.xlu0 %v2556, 46
      %v2746 = vpop.permute.xlu0 %2745
      %2747 = vrot.lane.b32.xlu0 %v2558, 46
      %v2748 = vpop.permute.xlu0 %2747
      %2749 = vrot.lane.b32.xlu0 %v2560, 46
      %v2750 = vpop.permute.xlu0 %2749
      %2751 = vrot.lane.b32.xlu0 %v2562, 46
      %v2752 = vpop.permute.xlu0 %2751
      %2753 = vrot.lane.b32.xlu0 %v2546, 6
      %v2754 = vpop.permute.xlu0 %2753
      %2755 = vrot.lane.b32.xlu0 %v2548, 6
      %v2756 = vpop.permute.xlu0 %2755
      %2757 = vrot.lane.b32.xlu0 %v2550, 6
      %v2758 = vpop.permute.xlu0 %2757
      %2759 = vrot.lane.b32.xlu0 %v2552, 6
      %v2760 = vpop.permute.xlu0 %2759
      %2761 = vrot.lane.b32.xlu0 %v2554, 6
      %v2762 = vpop.permute.xlu0 %2761
      %2763 = vrot.lane.b32.xlu0 %v2556, 6
      %v2764 = vpop.permute.xlu0 %2763
      %2765 = vrot.lane.b32.xlu0 %v2558, 6
      %v2766 = vpop.permute.xlu0 %2765
      %2767 = vrot.lane.b32.xlu0 %v2560, 6
      %v2768 = vpop.permute.xlu0 %2767
      %2769 = vrot.lane.b32.xlu0 %v2562, 6
      %v2770 = vpop.permute.xlu0 %2769
      %v2773 = vsel %vm296, %v2736, %v2754
      %v2777 = vsel %vm296, %v2738, %v2756
      %v2781 = vsel %vm296, %v2740, %v2758
      %v2785 = vsel %vm296, %v2742, %v2760
      %v2789 = vsel %vm296, %v2744, %v2762
      %v2793 = vsel %vm296, %v2746, %v2764
      %v2797 = vsel %vm296, %v2748, %v2766
      %v2801 = vsel %vm296, %v2750, %v2768
      %v2805 = vsel %vm296, %v2752, %v2770
      %2807 = vrot.lane.b32.xlu0 %v2546, 45
      %v2808 = vpop.permute.xlu0 %2807
      %2809 = vrot.lane.b32.xlu0 %v2548, 45
      %v2810 = vpop.permute.xlu0 %2809
      %2811 = vrot.lane.b32.xlu0 %v2550, 45
      %v2812 = vpop.permute.xlu0 %2811
      %2813 = vrot.lane.b32.xlu0 %v2552, 45
      %v2814 = vpop.permute.xlu0 %2813
      %2815 = vrot.lane.b32.xlu0 %v2554, 45
      %v2816 = vpop.permute.xlu0 %2815
      %2817 = vrot.lane.b32.xlu0 %v2556, 45
      %v2818 = vpop.permute.xlu0 %2817
      %2819 = vrot.lane.b32.xlu0 %v2558, 45
      %v2820 = vpop.permute.xlu0 %2819
      %2821 = vrot.lane.b32.xlu0 %v2560, 45
      %v2822 = vpop.permute.xlu0 %2821
      %2823 = vrot.lane.b32.xlu0 %v2562, 45
      %v2824 = vpop.permute.xlu0 %2823
      %2825 = vrot.lane.b32.xlu0 %v2546, 5
      %v2826 = vpop.permute.xlu0 %2825
      %2827 = vrot.lane.b32.xlu0 %v2548, 5
      %v2828 = vpop.permute.xlu0 %2827
      %2829 = vrot.lane.b32.xlu0 %v2550, 5
      %v2830 = vpop.permute.xlu0 %2829
      %2831 = vrot.lane.b32.xlu0 %v2552, 5
      %v2832 = vpop.permute.xlu0 %2831
      %2833 = vrot.lane.b32.xlu0 %v2554, 5
      %v2834 = vpop.permute.xlu0 %2833
      %2835 = vrot.lane.b32.xlu0 %v2556, 5
      %v2836 = vpop.permute.xlu0 %2835
      %2837 = vrot.lane.b32.xlu0 %v2558, 5
      %v2838 = vpop.permute.xlu0 %2837
      %2839 = vrot.lane.b32.xlu0 %v2560, 5
      %v2840 = vpop.permute.xlu0 %2839
      %2841 = vrot.lane.b32.xlu0 %v2562, 5
      %v2842 = vpop.permute.xlu0 %2841
      %v2845 = vsel %vm385, %v2808, %v2826
      %v2849 = vsel %vm385, %v2810, %v2828
      %v2853 = vsel %vm385, %v2812, %v2830
      %v2857 = vsel %vm385, %v2814, %v2832
      %v2861 = vsel %vm385, %v2816, %v2834
      %v2865 = vsel %vm385, %v2818, %v2836
      %v2869 = vsel %vm385, %v2820, %v2838
      %v2873 = vsel %vm385, %v2822, %v2840
      %v2877 = vsel %vm385, %v2824, %v2842
      %2879 = vrot.lane.b32.xlu0 %v2546, 44
      %v2880 = vpop.permute.xlu0 %2879
      %2881 = vrot.lane.b32.xlu0 %v2548, 44
      %v2882 = vpop.permute.xlu0 %2881
      %2883 = vrot.lane.b32.xlu0 %v2550, 44
      %v2884 = vpop.permute.xlu0 %2883
      %2885 = vrot.lane.b32.xlu0 %v2552, 44
      %v2886 = vpop.permute.xlu0 %2885
      %2887 = vrot.lane.b32.xlu0 %v2554, 44
      %v2888 = vpop.permute.xlu0 %2887
      %2889 = vrot.lane.b32.xlu0 %v2556, 44
      %v2890 = vpop.permute.xlu0 %2889
      %2891 = vrot.lane.b32.xlu0 %v2558, 44
      %v2892 = vpop.permute.xlu0 %2891
      %2893 = vrot.lane.b32.xlu0 %v2560, 44
      %v2894 = vpop.permute.xlu0 %2893
      %2895 = vrot.lane.b32.xlu0 %v2562, 44
      %v2896 = vpop.permute.xlu0 %2895
      %2897 = vrot.lane.b32.xlu0 %v2546, 4
      %v2898 = vpop.permute.xlu0 %2897
      %2899 = vrot.lane.b32.xlu0 %v2548, 4
      %v2900 = vpop.permute.xlu0 %2899
      %2901 = vrot.lane.b32.xlu0 %v2550, 4
      %v2902 = vpop.permute.xlu0 %2901
      %2903 = vrot.lane.b32.xlu0 %v2552, 4
      %v2904 = vpop.permute.xlu0 %2903
      %2905 = vrot.lane.b32.xlu0 %v2554, 4
      %v2906 = vpop.permute.xlu0 %2905
      %2907 = vrot.lane.b32.xlu0 %v2556, 4
      %v2908 = vpop.permute.xlu0 %2907
      %2909 = vrot.lane.b32.xlu0 %v2558, 4
      %v2910 = vpop.permute.xlu0 %2909
      %2911 = vrot.lane.b32.xlu0 %v2560, 4
      %v2912 = vpop.permute.xlu0 %2911
      %2913 = vrot.lane.b32.xlu0 %v2562, 4
      %v2914 = vpop.permute.xlu0 %2913
      %v2917 = vsel %vm397, %v2880, %v2898
      %v2921 = vsel %vm397, %v2882, %v2900
      %v2925 = vsel %vm397, %v2884, %v2902
      %v2929 = vsel %vm397, %v2886, %v2904
      %v2933 = vsel %vm397, %v2888, %v2906
      %v2937 = vsel %vm397, %v2890, %v2908
      %v2941 = vsel %vm397, %v2892, %v2910
      %v2945 = vsel %vm397, %v2894, %v2912
      %v2949 = vsel %vm397, %v2896, %v2914
      %2951 = vrot.lane.b32.xlu0 %v2546, 43
      %v2952 = vpop.permute.xlu0 %2951
      %2953 = vrot.lane.b32.xlu0 %v2548, 43
      %v2954 = vpop.permute.xlu0 %2953
      %2955 = vrot.lane.b32.xlu0 %v2550, 43
      %v2956 = vpop.permute.xlu0 %2955
      %2957 = vrot.lane.b32.xlu0 %v2552, 43
      %v2958 = vpop.permute.xlu0 %2957
      %2959 = vrot.lane.b32.xlu0 %v2554, 43
      %v2960 = vpop.permute.xlu0 %2959
      %2961 = vrot.lane.b32.xlu0 %v2556, 43
      %v2962 = vpop.permute.xlu0 %2961
      %2963 = vrot.lane.b32.xlu0 %v2558, 43
      %v2964 = vpop.permute.xlu0 %2963
      %2965 = vrot.lane.b32.xlu0 %v2560, 43
      %v2966 = vpop.permute.xlu0 %2965
      %2967 = vrot.lane.b32.xlu0 %v2562, 43
      %v2968 = vpop.permute.xlu0 %2967
      %2969 = vrot.lane.b32.xlu0 %v2546, 3
      %v2970 = vpop.permute.xlu0 %2969
      %2971 = vrot.lane.b32.xlu0 %v2548, 3
      %v2972 = vpop.permute.xlu0 %2971
      %2973 = vrot.lane.b32.xlu0 %v2550, 3
      %v2974 = vpop.permute.xlu0 %2973
      %2975 = vrot.lane.b32.xlu0 %v2552, 3
      %v2976 = vpop.permute.xlu0 %2975
      %2977 = vrot.lane.b32.xlu0 %v2554, 3
      %v2978 = vpop.permute.xlu0 %2977
      %2979 = vrot.lane.b32.xlu0 %v2556, 3
      %v2980 = vpop.permute.xlu0 %2979
      %2981 = vrot.lane.b32.xlu0 %v2558, 3
      %v2982 = vpop.permute.xlu0 %2981
      %2983 = vrot.lane.b32.xlu0 %v2560, 3
      %v2984 = vpop.permute.xlu0 %2983
      %2985 = vrot.lane.b32.xlu0 %v2562, 3
      %v2986 = vpop.permute.xlu0 %2985
      %v2989 = vsel %vm409, %v2952, %v2970
      %v2993 = vsel %vm409, %v2954, %v2972
      %v2997 = vsel %vm409, %v2956, %v2974
      %v3001 = vsel %vm409, %v2958, %v2976
      %v3005 = vsel %vm409, %v2960, %v2978
      %v3009 = vsel %vm409, %v2962, %v2980
      %v3013 = vsel %vm409, %v2964, %v2982
      %v3017 = vsel %vm409, %v2966, %v2984
      %v3021 = vsel %vm409, %v2968, %v2986
      %3023 = vrot.lane.b32.xlu0 %v2546, 42
      %v3024 = vpop.permute.xlu0 %3023
      %3025 = vrot.lane.b32.xlu0 %v2548, 42
      %v3026 = vpop.permute.xlu0 %3025
      %3027 = vrot.lane.b32.xlu0 %v2550, 42
      %v3028 = vpop.permute.xlu0 %3027
      %3029 = vrot.lane.b32.xlu0 %v2552, 42
      %v3030 = vpop.permute.xlu0 %3029
      %3031 = vrot.lane.b32.xlu0 %v2554, 42
      %v3032 = vpop.permute.xlu0 %3031
      %3033 = vrot.lane.b32.xlu0 %v2556, 42
      %v3034 = vpop.permute.xlu0 %3033
      %3035 = vrot.lane.b32.xlu0 %v2558, 42
      %v3036 = vpop.permute.xlu0 %3035
      %3037 = vrot.lane.b32.xlu0 %v2560, 42
      %v3038 = vpop.permute.xlu0 %3037
      %3039 = vrot.lane.b32.xlu0 %v2562, 42
      %v3040 = vpop.permute.xlu0 %3039
      %3041 = vrot.lane.b32.xlu0 %v2546, 2
      %v3042 = vpop.permute.xlu0 %3041
      %3043 = vrot.lane.b32.xlu0 %v2548, 2
      %v3044 = vpop.permute.xlu0 %3043
      %3045 = vrot.lane.b32.xlu0 %v2550, 2
      %v3046 = vpop.permute.xlu0 %3045
      %3047 = vrot.lane.b32.xlu0 %v2552, 2
      %v3048 = vpop.permute.xlu0 %3047
      %3049 = vrot.lane.b32.xlu0 %v2554, 2
      %v3050 = vpop.permute.xlu0 %3049
      %3051 = vrot.lane.b32.xlu0 %v2556, 2
      %v3052 = vpop.permute.xlu0 %3051
      %3053 = vrot.lane.b32.xlu0 %v2558, 2
      %v3054 = vpop.permute.xlu0 %3053
      %3055 = vrot.lane.b32.xlu0 %v2560, 2
      %v3056 = vpop.permute.xlu0 %3055
      %3057 = vrot.lane.b32.xlu0 %v2562, 2
      %v3058 = vpop.permute.xlu0 %3057
      %v3061 = vsel %vm307, %v3024, %v3042
      %v3065 = vsel %vm307, %v3026, %v3044
      %v3069 = vsel %vm307, %v3028, %v3046
      %v3073 = vsel %vm307, %v3030, %v3048
      %v3077 = vsel %vm307, %v3032, %v3050
      %v3081 = vsel %vm307, %v3034, %v3052
      %v3085 = vsel %vm307, %v3036, %v3054
      %v3089 = vsel %vm307, %v3038, %v3056
      %v3093 = vsel %vm307, %v3040, %v3058
      %3095 = vrot.lane.b32.xlu0 %v2546, 41
      %v3096 = vpop.permute.xlu0 %3095
      %3097 = vrot.lane.b32.xlu0 %v2548, 41
      %v3098 = vpop.permute.xlu0 %3097
      %3099 = vrot.lane.b32.xlu0 %v2550, 41
      %v3100 = vpop.permute.xlu0 %3099
      %3101 = vrot.lane.b32.xlu0 %v2552, 41
      %v3102 = vpop.permute.xlu0 %3101
      %3103 = vrot.lane.b32.xlu0 %v2554, 41
      %v3104 = vpop.permute.xlu0 %3103
      %3105 = vrot.lane.b32.xlu0 %v2556, 41
      %v3106 = vpop.permute.xlu0 %3105
      %3107 = vrot.lane.b32.xlu0 %v2558, 41
      %v3108 = vpop.permute.xlu0 %3107
      %3109 = vrot.lane.b32.xlu0 %v2560, 41
      %v3110 = vpop.permute.xlu0 %3109
      %3111 = vrot.lane.b32.xlu0 %v2562, 41
      %v3112 = vpop.permute.xlu0 %3111
      %3113 = vrot.lane.b32.xlu0 %v2546, 1
      %v3114 = vpop.permute.xlu0 %3113
      %3115 = vrot.lane.b32.xlu0 %v2548, 1
      %v3116 = vpop.permute.xlu0 %3115
      %3117 = vrot.lane.b32.xlu0 %v2550, 1
      %v3118 = vpop.permute.xlu0 %3117
      %3119 = vrot.lane.b32.xlu0 %v2552, 1
      %v3120 = vpop.permute.xlu0 %3119
      %3121 = vrot.lane.b32.xlu0 %v2554, 1
      %v3122 = vpop.permute.xlu0 %3121
      %3123 = vrot.lane.b32.xlu0 %v2556, 1
      %v3124 = vpop.permute.xlu0 %3123
      %3125 = vrot.lane.b32.xlu0 %v2558, 1
      %v3126 = vpop.permute.xlu0 %3125
      %3127 = vrot.lane.b32.xlu0 %v2560, 1
      %v3128 = vpop.permute.xlu0 %3127
      %3129 = vrot.lane.b32.xlu0 %v2562, 1
      %v3130 = vpop.permute.xlu0 %3129
      %v3133 = vsel %vm432, %v3096, %v3114
      %v3137 = vsel %vm432, %v3098, %v3116
      %v3141 = vsel %vm432, %v3100, %v3118
      %v3145 = vsel %vm432, %v3102, %v3120
      %v3149 = vsel %vm432, %v3104, %v3122
      %v3153 = vsel %vm432, %v3106, %v3124
      %v3157 = vsel %vm432, %v3108, %v3126
      %v3161 = vsel %vm432, %v3110, %v3128
      %v3165 = vsel %vm432, %v3112, %v3130
      %3167 = vrot.lane.b32.xlu0 %v2546, 127
      %v3168 = vpop.permute.xlu0 %3167
      %3169 = vrot.lane.b32.xlu0 %v2548, 127
      %v3170 = vpop.permute.xlu0 %3169
      %3171 = vrot.lane.b32.xlu0 %v2550, 127
      %v3172 = vpop.permute.xlu0 %3171
      %3173 = vrot.lane.b32.xlu0 %v2552, 127
      %v3174 = vpop.permute.xlu0 %3173
      %3175 = vrot.lane.b32.xlu0 %v2554, 127
      %v3176 = vpop.permute.xlu0 %3175
      %3177 = vrot.lane.b32.xlu0 %v2556, 127
      %v3178 = vpop.permute.xlu0 %3177
      %3179 = vrot.lane.b32.xlu0 %v2558, 127
      %v3180 = vpop.permute.xlu0 %3179
      %3181 = vrot.lane.b32.xlu0 %v2560, 127
      %v3182 = vpop.permute.xlu0 %3181
      %3183 = vrot.lane.b32.xlu0 %v2562, 127
      %v3184 = vpop.permute.xlu0 %3183
      %3185 = vrot.lane.b32.xlu0 %v2546, 87
      %v3186 = vpop.permute.xlu0 %3185
      %3187 = vrot.lane.b32.xlu0 %v2548, 87
      %v3188 = vpop.permute.xlu0 %3187
      %3189 = vrot.lane.b32.xlu0 %v2550, 87
      %v3190 = vpop.permute.xlu0 %3189
      %3191 = vrot.lane.b32.xlu0 %v2552, 87
      %v3192 = vpop.permute.xlu0 %3191
      %3193 = vrot.lane.b32.xlu0 %v2554, 87
      %v3194 = vpop.permute.xlu0 %3193
      %3195 = vrot.lane.b32.xlu0 %v2556, 87
      %v3196 = vpop.permute.xlu0 %3195
      %3197 = vrot.lane.b32.xlu0 %v2558, 87
      %v3198 = vpop.permute.xlu0 %3197
      %3199 = vrot.lane.b32.xlu0 %v2560, 87
      %v3200 = vpop.permute.xlu0 %3199
      %3201 = vrot.lane.b32.xlu0 %v2562, 87
      %v3202 = vpop.permute.xlu0 %3201
      %vm3203 = vcmask 711680
      %v3206 = vsel %vm3203, %v3168, %v3186
      %v3210 = vsel %vm3203, %v3170, %v3188
      %v3214 = vsel %vm3203, %v3172, %v3190
      %v3218 = vsel %vm3203, %v3174, %v3192
      %v3222 = vsel %vm3203, %v3176, %v3194
      %v3226 = vsel %vm3203, %v3178, %v3196
      %v3230 = vsel %vm3203, %v3180, %v3198
      %v3234 = vsel %vm3203, %v3182, %v3200
      %v3238 = vsel %vm3203, %v3184, %v3202
      %3240 = vrot.lane.b32.xlu0 %v2546, 126
      %v3241 = vpop.permute.xlu0 %3240
      %3242 = vrot.lane.b32.xlu0 %v2548, 126
      %v3243 = vpop.permute.xlu0 %3242
      %3244 = vrot.lane.b32.xlu0 %v2550, 126
      %v3245 = vpop.permute.xlu0 %3244
      %3246 = vrot.lane.b32.xlu0 %v2552, 126
      %v3247 = vpop.permute.xlu0 %3246
      %3248 = vrot.lane.b32.xlu0 %v2554, 126
      %v3249 = vpop.permute.xlu0 %3248
      %3250 = vrot.lane.b32.xlu0 %v2556, 126
      %v3251 = vpop.permute.xlu0 %3250
      %3252 = vrot.lane.b32.xlu0 %v2558, 126
      %v3253 = vpop.permute.xlu0 %3252
      %3254 = vrot.lane.b32.xlu0 %v2560, 126
      %v3255 = vpop.permute.xlu0 %3254
      %3256 = vrot.lane.b32.xlu0 %v2562, 126
      %v3257 = vpop.permute.xlu0 %3256
      %3258 = vrot.lane.b32.xlu0 %v2546, 86
      %v3259 = vpop.permute.xlu0 %3258
      %3260 = vrot.lane.b32.xlu0 %v2548, 86
      %v3261 = vpop.permute.xlu0 %3260
      %3262 = vrot.lane.b32.xlu0 %v2550, 86
      %v3263 = vpop.permute.xlu0 %3262
      %3264 = vrot.lane.b32.xlu0 %v2552, 86
      %v3265 = vpop.permute.xlu0 %3264
      %3266 = vrot.lane.b32.xlu0 %v2554, 86
      %v3267 = vpop.permute.xlu0 %3266
      %3268 = vrot.lane.b32.xlu0 %v2556, 86
      %v3269 = vpop.permute.xlu0 %3268
      %3270 = vrot.lane.b32.xlu0 %v2558, 86
      %v3271 = vpop.permute.xlu0 %3270
      %3272 = vrot.lane.b32.xlu0 %v2560, 86
      %v3273 = vpop.permute.xlu0 %3272
      %3274 = vrot.lane.b32.xlu0 %v2562, 86
      %v3275 = vpop.permute.xlu0 %3274
      %vm3276 = vcmask 703488
      %v3279 = vsel %vm3276, %v3241, %v3259
      %v3283 = vsel %vm3276, %v3243, %v3261
      %v3287 = vsel %vm3276, %v3245, %v3263
      %v3291 = vsel %vm3276, %v3247, %v3265
      %v3295 = vsel %vm3276, %v3249, %v3267
      %v3299 = vsel %vm3276, %v3251, %v3269
      %v3303 = vsel %vm3276, %v3253, %v3271
      %v3307 = vsel %vm3276, %v3255, %v3273
      %v3311 = vsel %vm3276, %v3257, %v3275
      %3313 = vrot.lane.b32.xlu0 %v2546, 125
      %v3314 = vpop.permute.xlu0 %3313
      %3315 = vrot.lane.b32.xlu0 %v2548, 125
      %v3316 = vpop.permute.xlu0 %3315
      %3317 = vrot.lane.b32.xlu0 %v2550, 125
      %v3318 = vpop.permute.xlu0 %3317
      %3319 = vrot.lane.b32.xlu0 %v2552, 125
      %v3320 = vpop.permute.xlu0 %3319
      %3321 = vrot.lane.b32.xlu0 %v2554, 125
      %v3322 = vpop.permute.xlu0 %3321
      %3323 = vrot.lane.b32.xlu0 %v2556, 125
      %v3324 = vpop.permute.xlu0 %3323
      %3325 = vrot.lane.b32.xlu0 %v2558, 125
      %v3326 = vpop.permute.xlu0 %3325
      %3327 = vrot.lane.b32.xlu0 %v2560, 125
      %v3328 = vpop.permute.xlu0 %3327
      %3329 = vrot.lane.b32.xlu0 %v2562, 125
      %v3330 = vpop.permute.xlu0 %3329
      %3331 = vrot.lane.b32.xlu0 %v2546, 85
      %v3332 = vpop.permute.xlu0 %3331
      %3333 = vrot.lane.b32.xlu0 %v2548, 85
      %v3334 = vpop.permute.xlu0 %3333
      %3335 = vrot.lane.b32.xlu0 %v2550, 85
      %v3336 = vpop.permute.xlu0 %3335
      %3337 = vrot.lane.b32.xlu0 %v2552, 85
      %v3338 = vpop.permute.xlu0 %3337
      %3339 = vrot.lane.b32.xlu0 %v2554, 85
      %v3340 = vpop.permute.xlu0 %3339
      %3341 = vrot.lane.b32.xlu0 %v2556, 85
      %v3342 = vpop.permute.xlu0 %3341
      %3343 = vrot.lane.b32.xlu0 %v2558, 85
      %v3344 = vpop.permute.xlu0 %3343
      %3345 = vrot.lane.b32.xlu0 %v2560, 85
      %v3346 = vpop.permute.xlu0 %3345
      %3347 = vrot.lane.b32.xlu0 %v2562, 85
      %v3348 = vpop.permute.xlu0 %3347
      %vm3349 = vcmask 695296
      %v3352 = vsel %vm3349, %v3314, %v3332
      %v3356 = vsel %vm3349, %v3316, %v3334
      %v3360 = vsel %vm3349, %v3318, %v3336
      %v3364 = vsel %vm3349, %v3320, %v3338
      %v3368 = vsel %vm3349, %v3322, %v3340
      %v3372 = vsel %vm3349, %v3324, %v3342
      %v3376 = vsel %vm3349, %v3326, %v3344
      %v3380 = vsel %vm3349, %v3328, %v3346
      %v3384 = vsel %vm3349, %v3330, %v3348
      %3386 = vrot.lane.b32.xlu0 %v2546, 124
      %v3387 = vpop.permute.xlu0 %3386
      %3388 = vrot.lane.b32.xlu0 %v2548, 124
      %v3389 = vpop.permute.xlu0 %3388
      %3390 = vrot.lane.b32.xlu0 %v2550, 124
      %v3391 = vpop.permute.xlu0 %3390
      %3392 = vrot.lane.b32.xlu0 %v2552, 124
      %v3393 = vpop.permute.xlu0 %3392
      %3394 = vrot.lane.b32.xlu0 %v2554, 124
      %v3395 = vpop.permute.xlu0 %3394
      %3396 = vrot.lane.b32.xlu0 %v2556, 124
      %v3397 = vpop.permute.xlu0 %3396
      %3398 = vrot.lane.b32.xlu0 %v2558, 124
      %v3399 = vpop.permute.xlu0 %3398
      %3400 = vrot.lane.b32.xlu0 %v2560, 124
      %v3401 = vpop.permute.xlu0 %3400
      %3402 = vrot.lane.b32.xlu0 %v2562, 124
      %v3403 = vpop.permute.xlu0 %3402
      %3404 = vrot.lane.b32.xlu0 %v2546, 84
      %v3405 = vpop.permute.xlu0 %3404
      %3406 = vrot.lane.b32.xlu0 %v2548, 84
      %v3407 = vpop.permute.xlu0 %3406
      %3408 = vrot.lane.b32.xlu0 %v2550, 84
      %v3409 = vpop.permute.xlu0 %3408
      %3410 = vrot.lane.b32.xlu0 %v2552, 84
      %v3411 = vpop.permute.xlu0 %3410
      %3412 = vrot.lane.b32.xlu0 %v2554, 84
      %v3413 = vpop.permute.xlu0 %3412
      %3414 = vrot.lane.b32.xlu0 %v2556, 84
      %v3415 = vpop.permute.xlu0 %3414
      %3416 = vrot.lane.b32.xlu0 %v2558, 84
      %v3417 = vpop.permute.xlu0 %3416
      %3418 = vrot.lane.b32.xlu0 %v2560, 84
      %v3419 = vpop.permute.xlu0 %3418
      %3420 = vrot.lane.b32.xlu0 %v2562, 84
      %v3421 = vpop.permute.xlu0 %3420
      %vm3422 = vcmask 687104
      %v3425 = vsel %vm3422, %v3387, %v3405
      %v3429 = vsel %vm3422, %v3389, %v3407
      %v3433 = vsel %vm3422, %v3391, %v3409
      %v3437 = vsel %vm3422, %v3393, %v3411
      %v3441 = vsel %vm3422, %v3395, %v3413
      %v3445 = vsel %vm3422, %v3397, %v3415
      %v3449 = vsel %vm3422, %v3399, %v3417
      %v3453 = vsel %vm3422, %v3401, %v3419
      %v3457 = vsel %vm3422, %v3403, %v3421
      %3459 = vrot.lane.b32.xlu0 %v2546, 123
      %v3460 = vpop.permute.xlu0 %3459
      %3461 = vrot.lane.b32.xlu0 %v2548, 123
      %v3462 = vpop.permute.xlu0 %3461
      %3463 = vrot.lane.b32.xlu0 %v2550, 123
      %v3464 = vpop.permute.xlu0 %3463
      %3465 = vrot.lane.b32.xlu0 %v2552, 123
      %v3466 = vpop.permute.xlu0 %3465
      %3467 = vrot.lane.b32.xlu0 %v2554, 123
      %v3468 = vpop.permute.xlu0 %3467
      %3469 = vrot.lane.b32.xlu0 %v2556, 123
      %v3470 = vpop.permute.xlu0 %3469
      %3471 = vrot.lane.b32.xlu0 %v2558, 123
      %v3472 = vpop.permute.xlu0 %3471
      %3473 = vrot.lane.b32.xlu0 %v2560, 123
      %v3474 = vpop.permute.xlu0 %3473
      %3475 = vrot.lane.b32.xlu0 %v2562, 123
      %v3476 = vpop.permute.xlu0 %3475
      %3477 = vrot.lane.b32.xlu0 %v2546, 83
      %v3478 = vpop.permute.xlu0 %3477
      %3479 = vrot.lane.b32.xlu0 %v2548, 83
      %v3480 = vpop.permute.xlu0 %3479
      %3481 = vrot.lane.b32.xlu0 %v2550, 83
      %v3482 = vpop.permute.xlu0 %3481
      %3483 = vrot.lane.b32.xlu0 %v2552, 83
      %v3484 = vpop.permute.xlu0 %3483
      %3485 = vrot.lane.b32.xlu0 %v2554, 83
      %v3486 = vpop.permute.xlu0 %3485
      %3487 = vrot.lane.b32.xlu0 %v2556, 83
      %v3488 = vpop.permute.xlu0 %3487
      %3489 = vrot.lane.b32.xlu0 %v2558, 83
      %v3490 = vpop.permute.xlu0 %3489
      %3491 = vrot.lane.b32.xlu0 %v2560, 83
      %v3492 = vpop.permute.xlu0 %3491
      %3493 = vrot.lane.b32.xlu0 %v2562, 83
      %v3494 = vpop.permute.xlu0 %3493
      %vm3495 = vcmask 678912
      %v3498 = vsel %vm3495, %v3460, %v3478
      %v3502 = vsel %vm3495, %v3462, %v3480
      %v3506 = vsel %vm3495, %v3464, %v3482
      %v3510 = vsel %vm3495, %v3466, %v3484
      %v3514 = vsel %vm3495, %v3468, %v3486
      %v3518 = vsel %vm3495, %v3470, %v3488
      %v3522 = vsel %vm3495, %v3472, %v3490
      %v3526 = vsel %vm3495, %v3474, %v3492
      %v3530 = vsel %vm3495, %v3476, %v3494
      %3532 = vrot.lane.b32.xlu0 %v2546, 122
      %v3533 = vpop.permute.xlu0 %3532
      %3534 = vrot.lane.b32.xlu0 %v2548, 122
      %v3535 = vpop.permute.xlu0 %3534
      %3536 = vrot.lane.b32.xlu0 %v2550, 122
      %v3537 = vpop.permute.xlu0 %3536
      %3538 = vrot.lane.b32.xlu0 %v2552, 122
      %v3539 = vpop.permute.xlu0 %3538
      %3540 = vrot.lane.b32.xlu0 %v2554, 122
      %v3541 = vpop.permute.xlu0 %3540
      %3542 = vrot.lane.b32.xlu0 %v2556, 122
      %v3543 = vpop.permute.xlu0 %3542
      %3544 = vrot.lane.b32.xlu0 %v2558, 122
      %v3545 = vpop.permute.xlu0 %3544
      %3546 = vrot.lane.b32.xlu0 %v2560, 122
      %v3547 = vpop.permute.xlu0 %3546
      %3548 = vrot.lane.b32.xlu0 %v2562, 122
      %v3549 = vpop.permute.xlu0 %3548
      %3550 = vrot.lane.b32.xlu0 %v2546, 82
      %v3551 = vpop.permute.xlu0 %3550
      %3552 = vrot.lane.b32.xlu0 %v2548, 82
      %v3553 = vpop.permute.xlu0 %3552
      %3554 = vrot.lane.b32.xlu0 %v2550, 82
      %v3555 = vpop.permute.xlu0 %3554
      %3556 = vrot.lane.b32.xlu0 %v2552, 82
      %v3557 = vpop.permute.xlu0 %3556
      %3558 = vrot.lane.b32.xlu0 %v2554, 82
      %v3559 = vpop.permute.xlu0 %3558
      %3560 = vrot.lane.b32.xlu0 %v2556, 82
      %v3561 = vpop.permute.xlu0 %3560
      %3562 = vrot.lane.b32.xlu0 %v2558, 82
      %v3563 = vpop.permute.xlu0 %3562
      %3564 = vrot.lane.b32.xlu0 %v2560, 82
      %v3565 = vpop.permute.xlu0 %3564
      %3566 = vrot.lane.b32.xlu0 %v2562, 82
      %v3567 = vpop.permute.xlu0 %3566
      %v3570 = vsel %vm2545, %v3533, %v3551
      %v3574 = vsel %vm2545, %v3535, %v3553
      %v3578 = vsel %vm2545, %v3537, %v3555
      %v3582 = vsel %vm2545, %v3539, %v3557
      %v3586 = vsel %vm2545, %v3541, %v3559
      %v3590 = vsel %vm2545, %v3543, %v3561
      %v3594 = vsel %vm2545, %v3545, %v3563
      %v3598 = vsel %vm2545, %v3547, %v3565
      %v3602 = vsel %vm2545, %v3549, %v3567
      %3605 = vset.pattern.permute.xlu0 0
      %3606 = vperm.xlu0 %3605, %v2708
      %v3607 = vpop.permute.xlu0 %3606
      %3610 = vset.pattern.permute.xlu0 0
      %3611 = vperm.xlu0 %3610, %v2709
      %v3612 = vpop.permute.xlu0 %3611
      %3615 = vset.pattern.permute.xlu0 0
      %3616 = vperm.xlu0 %3615, %v2710
      %v3617 = vpop.permute.xlu0 %3616
      %3620 = vset.pattern.permute.xlu0 0
      %3621 = vperm.xlu0 %3620, %v2711
      %v3622 = vpop.permute.xlu0 %3621
      %3625 = vset.pattern.permute.xlu0 0
      %3626 = vperm.xlu0 %3625, %v2712
      %v3627 = vpop.permute.xlu0 %3626
      %3630 = vset.pattern.permute.xlu0 0
      %3631 = vperm.xlu0 %3630, %v2713
      %v3632 = vpop.permute.xlu0 %3631
      %3635 = vset.pattern.permute.xlu0 0
      %3636 = vperm.xlu0 %3635, %v2714
      %v3637 = vpop.permute.xlu0 %3636
      %3640 = vset.pattern.permute.xlu0 0
      %3641 = vperm.xlu0 %3640, %v2715
      %v3642 = vpop.permute.xlu0 %3641
      %3645 = vset.pattern.permute.xlu0 0
      %3646 = vperm.xlu0 %3645, %v2716
      %v3647 = vpop.permute.xlu0 %3646
      %3650 = vset.pattern.permute.xlu0 0
      %3651 = vperm.xlu0 %3650, %v2717
      %v3652 = vpop.permute.xlu0 %3651
      %3655 = vset.pattern.permute.xlu0 0
      %3656 = vperm.xlu0 %3655, %v2718
      %v3657 = vpop.permute.xlu0 %3656
      %3660 = vset.pattern.permute.xlu0 0
      %3661 = vperm.xlu0 %3660, %v2719
      %v3662 = vpop.permute.xlu0 %3661
      %3665 = vset.pattern.permute.xlu0 0
      %3666 = vperm.xlu0 %3665, %v2720
      %v3667 = vpop.permute.xlu0 %3666
      %3670 = vset.pattern.permute.xlu0 0
      %3671 = vperm.xlu0 %3670, %v2721
      %v3672 = vpop.permute.xlu0 %3671
      %3675 = vset.pattern.permute.xlu0 0
      %3676 = vperm.xlu0 %3675, %v2722
      %v3677 = vpop.permute.xlu0 %3676
      %3680 = vset.pattern.permute.xlu0 0
      %3681 = vperm.xlu0 %3680, %v2723
      %v3682 = vpop.permute.xlu0 %3681
      %3685 = vset.pattern.permute.xlu0 0
      %3686 = vperm.xlu0 %3685, %v2724
      %v3687 = vpop.permute.xlu0 %3686
      %3690 = vset.pattern.permute.xlu0 0
      %3691 = vperm.xlu0 %3690, %v2725
      %v3692 = vpop.permute.xlu0 %3691
      %v3838 = vunpack.c.l.b16 %v2564
      %v3839 = vunpack.c.h.b16 %v2564
      %v3840 = vunpack.c.l.b16 %v2565
      %v3841 = vunpack.c.h.b16 %v2565
      %v3842 = vunpack.c.l.b16 %v2566
      %v3843 = vunpack.c.h.b16 %v2566
      %v3844 = vunpack.c.l.b16 %v2567
      %v3845 = vunpack.c.h.b16 %v2567
      %v3846 = vunpack.c.l.b16 %v2568
      %v3847 = vunpack.c.h.b16 %v2568
      %v3848 = vunpack.c.l.b16 %v2569
      %v3849 = vunpack.c.h.b16 %v2569
      %v3850 = vunpack.c.l.b16 %v2570
      %v3851 = vunpack.c.h.b16 %v2570
      %v3852 = vunpack.c.l.b16 %v2571
      %v3853 = vunpack.c.l.b16 %v2572
      %v3854 = vunpack.c.h.b16 %v2572
      %v3855 = vunpack.c.l.b16 %v2573
      %v3856 = vunpack.c.h.b16 %v2573
      %v3857 = vunpack.c.l.b16 %v2574
      %v3858 = vunpack.c.h.b16 %v2574
      %v3859 = vunpack.c.l.b16 %v2575
      %v3860 = vunpack.c.h.b16 %v2575
      %v3861 = vunpack.c.l.b16 %v2576
      %v3862 = vunpack.c.h.b16 %v2576
      %v3863 = vunpack.c.l.b16 %v2577
      %v3864 = vunpack.c.h.b16 %v2577
      %v3865 = vunpack.c.l.b16 %v2578
      %v3866 = vunpack.c.h.b16 %v2578
      %v3867 = vunpack.c.l.b16 %v2579
      %v3868 = vunpack.c.l.b16 %v2580
      %v3869 = vunpack.c.h.b16 %v2580
      %v3870 = vunpack.c.l.b16 %v2581
      %v3871 = vunpack.c.h.b16 %v2581
      %v3872 = vunpack.c.l.b16 %v2582
      %v3873 = vunpack.c.h.b16 %v2582
      %v3874 = vunpack.c.l.b16 %v2583
      %v3875 = vunpack.c.h.b16 %v2583
      %v3876 = vunpack.c.l.b16 %v2584
      %v3877 = vunpack.c.h.b16 %v2584
      %v3878 = vunpack.c.l.b16 %v2585
      %v3879 = vunpack.c.h.b16 %v2585
      %v3880 = vunpack.c.l.b16 %v2586
      %v3881 = vunpack.c.h.b16 %v2586
      %v3882 = vunpack.c.l.b16 %v2587
      %v3883 = vunpack.c.l.b16 %v2588
      %v3884 = vunpack.c.h.b16 %v2588
      %v3885 = vunpack.c.l.b16 %v2589
      %v3886 = vunpack.c.h.b16 %v2589
      %v3887 = vunpack.c.l.b16 %v2590
      %v3888 = vunpack.c.h.b16 %v2590
      %v3889 = vunpack.c.l.b16 %v2591
      %v3890 = vunpack.c.h.b16 %v2591
      %v3891 = vunpack.c.l.b16 %v2592
      %v3892 = vunpack.c.h.b16 %v2592
      %v3893 = vunpack.c.l.b16 %v2593
      %v3894 = vunpack.c.h.b16 %v2593
      %v3895 = vunpack.c.l.b16 %v2594
      %v3896 = vunpack.c.h.b16 %v2594
      %v3897 = vunpack.c.l.b16 %v2595
      %v3898 = vunpack.c.l.b16 %v2596
      %v3899 = vunpack.c.h.b16 %v2596
      %v3900 = vunpack.c.l.b16 %v2597
      %v3901 = vunpack.c.h.b16 %v2597
      %v3902 = vunpack.c.l.b16 %v2598
      %v3903 = vunpack.c.h.b16 %v2598
      %v3904 = vunpack.c.l.b16 %v2599
      %v3905 = vunpack.c.h.b16 %v2599
      %v3906 = vunpack.c.l.b16 %v2600
      %v3907 = vunpack.c.h.b16 %v2600
      %v3908 = vunpack.c.l.b16 %v2601
      %v3909 = vunpack.c.h.b16 %v2601
      %v3910 = vunpack.c.l.b16 %v2602
      %v3911 = vunpack.c.h.b16 %v2602
      %v3912 = vunpack.c.l.b16 %v2603
      %v3913 = vunpack.c.l.b16 %v2604
      %v3914 = vunpack.c.h.b16 %v2604
      %v3915 = vunpack.c.l.b16 %v2605
      %v3916 = vunpack.c.h.b16 %v2605
      %v3917 = vunpack.c.l.b16 %v2606
      %v3918 = vunpack.c.h.b16 %v2606
      %v3919 = vunpack.c.l.b16 %v2607
      %v3920 = vunpack.c.h.b16 %v2607
      %v3921 = vunpack.c.l.b16 %v2608
      %v3922 = vunpack.c.h.b16 %v2608
      %v3923 = vunpack.c.l.b16 %v2609
      %v3924 = vunpack.c.h.b16 %v2609
      %v3925 = vunpack.c.l.b16 %v2610
      %v3926 = vunpack.c.h.b16 %v2610
      %v3927 = vunpack.c.l.b16 %v2611
      %v3928 = vunpack.c.l.b16 %v2612
      %v3929 = vunpack.c.h.b16 %v2612
      %v3930 = vunpack.c.l.b16 %v2613
      %v3931 = vunpack.c.h.b16 %v2613
      %v3932 = vunpack.c.l.b16 %v2614
      %v3933 = vunpack.c.h.b16 %v2614
      %v3934 = vunpack.c.l.b16 %v2615
      %v3935 = vunpack.c.h.b16 %v2615
      %v3936 = vunpack.c.l.b16 %v2616
      %v3937 = vunpack.c.h.b16 %v2616
      %v3938 = vunpack.c.l.b16 %v2617
      %v3939 = vunpack.c.h.b16 %v2617
      %v3940 = vunpack.c.l.b16 %v2618
      %v3941 = vunpack.c.h.b16 %v2618
      %v3942 = vunpack.c.l.b16 %v2619
      %v3943 = vunpack.c.l.b16 %v2620
      %v3944 = vunpack.c.h.b16 %v2620
      %v3945 = vunpack.c.l.b16 %v2621
      %v3946 = vunpack.c.h.b16 %v2621
      %v3947 = vunpack.c.l.b16 %v2622
      %v3948 = vunpack.c.h.b16 %v2622
      %v3949 = vunpack.c.l.b16 %v2623
      %v3950 = vunpack.c.h.b16 %v2623
      %v3951 = vunpack.c.l.b16 %v2624
      %v3952 = vunpack.c.h.b16 %v2624
      %v3953 = vunpack.c.l.b16 %v2625
      %v3954 = vunpack.c.h.b16 %v2625
      %v3955 = vunpack.c.l.b16 %v2626
      %v3956 = vunpack.c.h.b16 %v2626
      %v3957 = vunpack.c.l.b16 %v2627
      %v3958 = vunpack.c.l.b16 %v2628
      %v3959 = vunpack.c.h.b16 %v2628
      %v3960 = vunpack.c.l.b16 %v2629
      %v3961 = vunpack.c.h.b16 %v2629
      %v3962 = vunpack.c.l.b16 %v2630
      %v3963 = vunpack.c.h.b16 %v2630
      %v3964 = vunpack.c.l.b16 %v2631
      %v3965 = vunpack.c.h.b16 %v2631
      %v3966 = vunpack.c.l.b16 %v2632
      %v3967 = vunpack.c.h.b16 %v2632
      %v3968 = vunpack.c.l.b16 %v2633
      %v3969 = vunpack.c.h.b16 %v2633
      %v3970 = vunpack.c.l.b16 %v2634
      %v3971 = vunpack.c.h.b16 %v2634
      %v3972 = vunpack.c.l.b16 %v2635
      %v3973 = vunpack.c.l.b16 %v2636
      %v3974 = vunpack.c.h.b16 %v2636
      %v3975 = vunpack.c.l.b16 %v2637
      %v3976 = vunpack.c.h.b16 %v2637
      %v3977 = vunpack.c.l.b16 %v2638
      %v3978 = vunpack.c.h.b16 %v2638
      %v3979 = vunpack.c.l.b16 %v2639
      %v3980 = vunpack.c.h.b16 %v2639
      %v3981 = vunpack.c.l.b16 %v2640
      %v3982 = vunpack.c.h.b16 %v2640
      %v3983 = vunpack.c.l.b16 %v2641
      %v3984 = vunpack.c.h.b16 %v2641
      %v3985 = vunpack.c.l.b16 %v2642
      %v3986 = vunpack.c.h.b16 %v2642
      %v3987 = vunpack.c.l.b16 %v2643
      %v3988 = vunpack.c.l.b16 %v2644
      %v3989 = vunpack.c.h.b16 %v2644
      %v3990 = vunpack.c.l.b16 %v2645
      %v3991 = vunpack.c.h.b16 %v2645
      %v3992 = vunpack.c.l.b16 %v2646
      %v3993 = vunpack.c.h.b16 %v2646
      %v3994 = vunpack.c.l.b16 %v2647
      %v3995 = vunpack.c.h.b16 %v2647
      %v3996 = vunpack.c.l.b16 %v2648
      %v3997 = vunpack.c.h.b16 %v2648
      %v3998 = vunpack.c.l.b16 %v2649
      %v3999 = vunpack.c.h.b16 %v2649
      %v4000 = vunpack.c.l.b16 %v2650
      %v4001 = vunpack.c.h.b16 %v2650
      %v4002 = vunpack.c.l.b16 %v2651
      %v4003 = vunpack.c.l.b16 %v2652
      %v4004 = vunpack.c.h.b16 %v2652
      %v4005 = vunpack.c.l.b16 %v2653
      %v4006 = vunpack.c.h.b16 %v2653
      %v4007 = vunpack.c.l.b16 %v2654
      %v4008 = vunpack.c.h.b16 %v2654
      %v4009 = vunpack.c.l.b16 %v2655
      %v4010 = vunpack.c.h.b16 %v2655
      %v4011 = vunpack.c.l.b16 %v2656
      %v4012 = vunpack.c.h.b16 %v2656
      %v4013 = vunpack.c.l.b16 %v2657
      %v4014 = vunpack.c.h.b16 %v2657
      %v4015 = vunpack.c.l.b16 %v2658
      %v4016 = vunpack.c.h.b16 %v2658
      %v4017 = vunpack.c.l.b16 %v2659
      %v4018 = vunpack.c.l.b16 %v2660
      %v4019 = vunpack.c.h.b16 %v2660
      %v4020 = vunpack.c.l.b16 %v2661
      %v4021 = vunpack.c.h.b16 %v2661
      %v4022 = vunpack.c.l.b16 %v2662
      %v4023 = vunpack.c.h.b16 %v2662
      %v4024 = vunpack.c.l.b16 %v2663
      %v4025 = vunpack.c.h.b16 %v2663
      %v4026 = vunpack.c.l.b16 %v2664
      %v4027 = vunpack.c.h.b16 %v2664
      %v4028 = vunpack.c.l.b16 %v2665
      %v4029 = vunpack.c.h.b16 %v2665
      %v4030 = vunpack.c.l.b16 %v2666
      %v4031 = vunpack.c.h.b16 %v2666
      %v4032 = vunpack.c.l.b16 %v2667
      %v4033 = vunpack.c.l.b16 %v2668
      %v4034 = vunpack.c.h.b16 %v2668
      %v4035 = vunpack.c.l.b16 %v2669
      %v4036 = vunpack.c.h.b16 %v2669
      %v4037 = vunpack.c.l.b16 %v2670
      %v4038 = vunpack.c.h.b16 %v2670
      %v4039 = vunpack.c.l.b16 %v2671
      %v4040 = vunpack.c.h.b16 %v2671
      %v4041 = vunpack.c.l.b16 %v2672
      %v4042 = vunpack.c.h.b16 %v2672
      %v4043 = vunpack.c.l.b16 %v2673
      %v4044 = vunpack.c.h.b16 %v2673
      %v4045 = vunpack.c.l.b16 %v2674
      %v4046 = vunpack.c.h.b16 %v2674
      %v4047 = vunpack.c.l.b16 %v2675
      %v4048 = vunpack.c.l.b16 %v2676
      %v4049 = vunpack.c.h.b16 %v2676
      %v4050 = vunpack.c.l.b16 %v2677
      %v4051 = vunpack.c.h.b16 %v2677
      %v4052 = vunpack.c.l.b16 %v2678
      %v4053 = vunpack.c.h.b16 %v2678
      %v4054 = vunpack.c.l.b16 %v2679
      %v4055 = vunpack.c.h.b16 %v2679
      %v4056 = vunpack.c.l.b16 %v2680
      %v4057 = vunpack.c.h.b16 %v2680
      %v4058 = vunpack.c.l.b16 %v2681
      %v4059 = vunpack.c.h.b16 %v2681
      %v4060 = vunpack.c.l.b16 %v2682
      %v4061 = vunpack.c.h.b16 %v2682
      %v4062 = vunpack.c.l.b16 %v2683
      %v4063 = vunpack.c.l.b16 %v2684
      %v4064 = vunpack.c.h.b16 %v2684
      %v4065 = vunpack.c.l.b16 %v2685
      %v4066 = vunpack.c.h.b16 %v2685
      %v4067 = vunpack.c.l.b16 %v2686
      %v4068 = vunpack.c.h.b16 %v2686
      %v4069 = vunpack.c.l.b16 %v2687
      %v4070 = vunpack.c.h.b16 %v2687
      %v4071 = vunpack.c.l.b16 %v2688
      %v4072 = vunpack.c.h.b16 %v2688
      %v4073 = vunpack.c.l.b16 %v2689
      %v4074 = vunpack.c.h.b16 %v2689
      %v4075 = vunpack.c.l.b16 %v2690
      %v4076 = vunpack.c.h.b16 %v2690
      %v4077 = vunpack.c.l.b16 %v2691
      %v4078 = vunpack.c.l.b16 %v2692
      %v4079 = vunpack.c.h.b16 %v2692
      %v4080 = vunpack.c.l.b16 %v2693
      %v4081 = vunpack.c.h.b16 %v2693
      %v4082 = vunpack.c.l.b16 %v2694
      %v4083 = vunpack.c.h.b16 %v2694
      %v4084 = vunpack.c.l.b16 %v2695
      %v4085 = vunpack.c.h.b16 %v2695
      %v4086 = vunpack.c.l.b16 %v2696
      %v4087 = vunpack.c.h.b16 %v2696
      %v4088 = vunpack.c.l.b16 %v2697
      %v4089 = vunpack.c.h.b16 %v2697
      %v4090 = vunpack.c.l.b16 %v2698
      %v4091 = vunpack.c.h.b16 %v2698
      %v4092 = vunpack.c.l.b16 %v2699
      %v4093 = vunpack.c.l.b16 %v2700
      %v4094 = vunpack.c.h.b16 %v2700
      %v4095 = vunpack.c.l.b16 %v2701
      %v4096 = vunpack.c.h.b16 %v2701
      %v4097 = vunpack.c.l.b16 %v2702
      %v4098 = vunpack.c.h.b16 %v2702
      %v4099 = vunpack.c.l.b16 %v2703
      %v4100 = vunpack.c.h.b16 %v2703
      %v4101 = vunpack.c.l.b16 %v2704
      %v4102 = vunpack.c.h.b16 %v2704
      %v4103 = vunpack.c.l.b16 %v2705
      %v4104 = vunpack.c.h.b16 %v2705
      %v4105 = vunpack.c.l.b16 %v2706
      %v4106 = vunpack.c.h.b16 %v2706
      %v4107 = vunpack.c.l.b16 %v2707
      %v4108 = vpack.c.b16 %v3853, %v3838
      %v4109 = vpack.c.b16 %v3854, %v3839
      %v4110 = vpack.c.b16 %v3855, %v3840
      %v4111 = vpack.c.b16 %v3856, %v3841
      %v4112 = vpack.c.b16 %v3857, %v3842
      %v4113 = vpack.c.b16 %v3858, %v3843
      %v4114 = vpack.c.b16 %v3859, %v3844
      %v4115 = vpack.c.b16 %v3860, %v3845
      %v4116 = vpack.c.b16 %v3861, %v3846
      %v4117 = vpack.c.b16 %v3862, %v3847
      %v4118 = vpack.c.b16 %v3863, %v3848
      %v4119 = vpack.c.b16 %v3864, %v3849
      %v4120 = vpack.c.b16 %v3865, %v3850
      %v4121 = vpack.c.b16 %v3866, %v3851
      %v4122 = vpack.c.b16 %v3867, %v3852
      %v4123 = vpack.c.b16 %v3883, %v3868
      %v4124 = vpack.c.b16 %v3884, %v3869
      %v4125 = vpack.c.b16 %v3885, %v3870
      %v4126 = vpack.c.b16 %v3886, %v3871
      %v4127 = vpack.c.b16 %v3887, %v3872
      %v4128 = vpack.c.b16 %v3888, %v3873
      %v4129 = vpack.c.b16 %v3889, %v3874
      %v4130 = vpack.c.b16 %v3890, %v3875
      %v4131 = vpack.c.b16 %v3891, %v3876
      %v4132 = vpack.c.b16 %v3892, %v3877
      %v4133 = vpack.c.b16 %v3893, %v3878
      %v4134 = vpack.c.b16 %v3894, %v3879
      %v4135 = vpack.c.b16 %v3895, %v3880
      %v4136 = vpack.c.b16 %v3896, %v3881
      %v4137 = vpack.c.b16 %v3897, %v3882
      %v4138 = vpack.c.b16 %v3913, %v3898
      %v4139 = vpack.c.b16 %v3914, %v3899
      %v4140 = vpack.c.b16 %v3915, %v3900
      %v4141 = vpack.c.b16 %v3916, %v3901
      %v4142 = vpack.c.b16 %v3917, %v3902
      %v4143 = vpack.c.b16 %v3918, %v3903
      %v4144 = vpack.c.b16 %v3919, %v3904
      %v4145 = vpack.c.b16 %v3920, %v3905
      %v4146 = vpack.c.b16 %v3921, %v3906
      %v4147 = vpack.c.b16 %v3922, %v3907
      %v4148 = vpack.c.b16 %v3923, %v3908
      %v4149 = vpack.c.b16 %v3924, %v3909
      %v4150 = vpack.c.b16 %v3925, %v3910
      %v4151 = vpack.c.b16 %v3926, %v3911
      %v4152 = vpack.c.b16 %v3927, %v3912
      %v4153 = vpack.c.b16 %v3943, %v3928
      %v4154 = vpack.c.b16 %v3944, %v3929
      %v4155 = vpack.c.b16 %v3945, %v3930
      %v4156 = vpack.c.b16 %v3946, %v3931
      %v4157 = vpack.c.b16 %v3947, %v3932
      %v4158 = vpack.c.b16 %v3948, %v3933
      %v4159 = vpack.c.b16 %v3949, %v3934
      %v4160 = vpack.c.b16 %v3950, %v3935
      %v4161 = vpack.c.b16 %v3951, %v3936
      %v4162 = vpack.c.b16 %v3952, %v3937
      %v4163 = vpack.c.b16 %v3953, %v3938
      %v4164 = vpack.c.b16 %v3954, %v3939
      %v4165 = vpack.c.b16 %v3955, %v3940
      %v4166 = vpack.c.b16 %v3956, %v3941
      %v4167 = vpack.c.b16 %v3957, %v3942
      %v4168 = vpack.c.b16 %v3973, %v3958
      %v4169 = vpack.c.b16 %v3974, %v3959
      %v4170 = vpack.c.b16 %v3975, %v3960
      %v4171 = vpack.c.b16 %v3976, %v3961
      %v4172 = vpack.c.b16 %v3977, %v3962
      %v4173 = vpack.c.b16 %v3978, %v3963
      %v4174 = vpack.c.b16 %v3979, %v3964
      %v4175 = vpack.c.b16 %v3980, %v3965
      %v4176 = vpack.c.b16 %v3981, %v3966
      %v4177 = vpack.c.b16 %v3982, %v3967
      %v4178 = vpack.c.b16 %v3983, %v3968
      %v4179 = vpack.c.b16 %v3984, %v3969
      %v4180 = vpack.c.b16 %v3985, %v3970
      %v4181 = vpack.c.b16 %v3986, %v3971
      %v4182 = vpack.c.b16 %v3987, %v3972
      %v4183 = vpack.c.b16 %v4003, %v3988
      %v4184 = vpack.c.b16 %v4004, %v3989
      %v4185 = vpack.c.b16 %v4005, %v3990
      %v4186 = vpack.c.b16 %v4006, %v3991
      %v4187 = vpack.c.b16 %v4007, %v3992
      %v4188 = vpack.c.b16 %v4008, %v3993
      %v4189 = vpack.c.b16 %v4009, %v3994
      %v4190 = vpack.c.b16 %v4010, %v3995
      %v4191 = vpack.c.b16 %v4011, %v3996
      %v4192 = vpack.c.b16 %v4012, %v3997
      %v4193 = vpack.c.b16 %v4013, %v3998
      %v4194 = vpack.c.b16 %v4014, %v3999
      %v4195 = vpack.c.b16 %v4015, %v4000
      %v4196 = vpack.c.b16 %v4016, %v4001
      %v4197 = vpack.c.b16 %v4017, %v4002
      %v4198 = vpack.c.b16 %v4033, %v4018
      %v4199 = vpack.c.b16 %v4034, %v4019
      %v4200 = vpack.c.b16 %v4035, %v4020
      %v4201 = vpack.c.b16 %v4036, %v4021
      %v4202 = vpack.c.b16 %v4037, %v4022
      %v4203 = vpack.c.b16 %v4038, %v4023
      %v4204 = vpack.c.b16 %v4039, %v4024
      %v4205 = vpack.c.b16 %v4040, %v4025
      %v4206 = vpack.c.b16 %v4041, %v4026
      %v4207 = vpack.c.b16 %v4042, %v4027
      %v4208 = vpack.c.b16 %v4043, %v4028
      %v4209 = vpack.c.b16 %v4044, %v4029
      %v4210 = vpack.c.b16 %v4045, %v4030
      %v4211 = vpack.c.b16 %v4046, %v4031
      %v4212 = vpack.c.b16 %v4047, %v4032
      %v4213 = vpack.c.b16 %v4063, %v4048
      %v4214 = vpack.c.b16 %v4064, %v4049
      %v4215 = vpack.c.b16 %v4065, %v4050
      %v4216 = vpack.c.b16 %v4066, %v4051
      %v4217 = vpack.c.b16 %v4067, %v4052
      %v4218 = vpack.c.b16 %v4068, %v4053
      %v4219 = vpack.c.b16 %v4069, %v4054
      %v4220 = vpack.c.b16 %v4070, %v4055
      %v4221 = vpack.c.b16 %v4071, %v4056
      %v4222 = vpack.c.b16 %v4072, %v4057
      %v4223 = vpack.c.b16 %v4073, %v4058
      %v4224 = vpack.c.b16 %v4074, %v4059
      %v4225 = vpack.c.b16 %v4075, %v4060
      %v4226 = vpack.c.b16 %v4076, %v4061
      %v4227 = vpack.c.b16 %v4077, %v4062
      %v4228 = vpack.c.b16 %v4093, %v4078
      %v4229 = vpack.c.b16 %v4094, %v4079
      %v4230 = vpack.c.b16 %v4095, %v4080
      %v4231 = vpack.c.b16 %v4096, %v4081
      %v4232 = vpack.c.b16 %v4097, %v4082
      %v4233 = vpack.c.b16 %v4098, %v4083
      %v4234 = vpack.c.b16 %v4099, %v4084
      %v4235 = vpack.c.b16 %v4100, %v4085
      %v4236 = vpack.c.b16 %v4101, %v4086
      %v4237 = vpack.c.b16 %v4102, %v4087
      %v4238 = vpack.c.b16 %v4103, %v4088
      %v4239 = vpack.c.b16 %v4104, %v4089
      %v4240 = vpack.c.b16 %v4105, %v4090
      %v4241 = vpack.c.b16 %v4106, %v4091
      %v4242 = vpack.c.b16 %v4107, %v4092
      %vm4369 = vcmask 654336
      %v4371 = vsel %vm4369, %v4122, 0
      %v4374 = vsel %vm4369, %v4137, 0
      %v4377 = vsel %vm4369, %v4152, 0
      %v4380 = vsel %vm4369, %v4167, 0
      %v4383 = vsel %vm4369, %v4182, 0
      %v4386 = vsel %vm4369, %v4197, 0
      %v4389 = vsel %vm4369, %v4212, 0
      %v4392 = vsel %vm4369, %v4227, 0
      %v4395 = vsel %vm4369, %v4242, 0
      %4397 = vmatprep.subr.bf16.mxu0 0
      %4398 = vmatpush1.bf16.msra.mxu0 %v2773
      %4399 = vmatprep.subr.bf16.mxu0 0
      %4400 = vmatpush1.bf16.msra.mxu0 %v2777
      %4401 = vmatprep.subr.bf16.mxu0 0
      %4402 = vmatpush1.bf16.msra.mxu0 %v2781
      %4403 = vmatprep.subr.bf16.mxu0 0
      %4404 = vmatpush1.bf16.msra.mxu0 %v2785
      %4405 = vmatprep.subr.bf16.mxu0 0
      %4406 = vmatpush1.bf16.msra.mxu0 %v2789
      %4407 = vmatprep.subr.bf16.mxu0 0
      %4408 = vmatpush1.bf16.msra.mxu0 %v2793
      %4409 = vmatprep.subr.bf16.mxu0 0
      %4410 = vmatpush1.bf16.msra.mxu0 %v2797
      %4411 = vmatprep.subr.bf16.mxu0 0
      %4412 = vmatpush1.bf16.msra.mxu0 %v2801
      %4413 = vmatprep.subr.bf16.mxu0 0
      %4414 = vmatpush1.bf16.msra.mxu0 %v2805
      %4415 = vmatprep.subr.bf16.mxu0 0
      %4416 = vmatpush1.bf16.msra.mxu0 %v2845
      %4417 = vmatprep.subr.bf16.mxu0 0
      %4418 = vmatpush1.bf16.msra.mxu0 %v2849
      %4419 = vmatprep.subr.bf16.mxu0 0
      %4420 = vmatpush1.bf16.msra.mxu0 %v2853
      %4421 = vmatprep.subr.bf16.mxu0 0
      %4422 = vmatpush1.bf16.msra.mxu0 %v2857
      %4423 = vmatprep.subr.bf16.mxu0 0
      %4424 = vmatpush1.bf16.msra.mxu0 %v2861
      %4425 = vmatprep.subr.bf16.mxu0 0
      %4426 = vmatpush1.bf16.msra.mxu0 %v2865
      %4427 = vmatprep.subr.bf16.mxu0 0
      %4428 = vmatpush1.bf16.msra.mxu0 %v2869
      %4429 = vmatprep.mubr.bf16.mxu0 %v4109
      %4430 = vmatmul.mubr.bf16.gmra.mrb[0].mxu0 %v4108
      %v4431 = vpop.f32.mrb[0].mxu0
      %v4432 = vadd.f32 %v3607, %v4431
      %v4433 = vpop.f32.mrb[0].mxu0
      %v4434 = vpop.f32.mrb[0].mxu0
      %v4435 = vadd.f32 %v3612, %v4434
      %v4436 = vpop.f32.mrb[0].mxu0
      %4437 = vmatprep.mubr.bf16.mxu0 %v4124
      %4438 = vmatmul.mubr.bf16.gmra.mrb[0].mxu0 %v4123
      %v4439 = vpop.f32.mrb[0].mxu0
      %v4440 = vadd.f32 %v3617, %v4439
      %v4441 = vpop.f32.mrb[0].mxu0
      %v4442 = vpop.f32.mrb[0].mxu0
      %v4443 = vadd.f32 %v3622, %v4442
      %v4444 = vpop.f32.mrb[0].mxu0
      %4445 = vmatprep.mubr.bf16.mxu0 %v4139
      %4446 = vmatmul.mubr.bf16.gmra.mrb[0].mxu0 %v4138
      %v4447 = vpop.f32.mrb[0].mxu0
      %v4448 = vadd.f32 %v3627, %v4447
      %v4449 = vpop.f32.mrb[0].mxu0
      %v4450 = vpop.f32.mrb[0].mxu0
      %v4451 = vadd.f32 %v3632, %v4450
      %v4452 = vpop.f32.mrb[0].mxu0
      %4453 = vmatprep.mubr.bf16.mxu0 %v4154
      %4454 = vmatmul.mubr.bf16.gmra.mrb[0].mxu0 %v4153
      %v4455 = vpop.f32.mrb[0].mxu0
      %v4456 = vadd.f32 %v3637, %v4455
      %v4457 = vpop.f32.mrb[0].mxu0
      %v4458 = vpop.f32.mrb[0].mxu0
      %v4459 = vadd.f32 %v3642, %v4458
      %v4460 = vpop.f32.mrb[0].mxu0
      %4461 = vmatprep.mubr.bf16.mxu0 %v4169
      %4462 = vmatmul.mubr.bf16.gmra.mrb[0].mxu0 %v4168
      %v4463 = vpop.f32.mrb[0].mxu0
      %v4464 = vadd.f32 %v3647, %v4463
      %v4465 = vpop.f32.mrb[0].mxu0
      %v4466 = vpop.f32.mrb[0].mxu0
      %v4467 = vadd.f32 %v3652, %v4466
      %v4468 = vpop.f32.mrb[0].mxu0
      %4469 = vmatprep.mubr.bf16.mxu0 %v4184
      %4470 = vmatmul.mubr.bf16.gmra.mrb[0].mxu0 %v4183
      %v4471 = vpop.f32.mrb[0].mxu0
      %v4472 = vadd.f32 %v3657, %v4471
      %v4473 = vpop.f32.mrb[0].mxu0
      %v4474 = vpop.f32.mrb[0].mxu0
      %v4475 = vadd.f32 %v3662, %v4474
      %v4476 = vpop.f32.mrb[0].mxu0
      %4477 = vmatprep.mubr.bf16.mxu0 %v4199
      %4478 = vmatmul.mubr.bf16.gmra.mrb[0].mxu0 %v4198
      %v4479 = vpop.f32.mrb[0].mxu0
      %v4480 = vadd.f32 %v3667, %v4479
      %v4481 = vpop.f32.mrb[0].mxu0
      %v4482 = vpop.f32.mrb[0].mxu0
      %v4483 = vadd.f32 %v3672, %v4482
      %v4484 = vpop.f32.mrb[0].mxu0
      %4485 = vmatprep.mubr.bf16.mxu0 %v4214
      %4486 = vmatmul.mubr.bf16.gmra.mrb[0].mxu0 %v4213
      %v4487 = vpop.f32.mrb[0].mxu0
      %v4488 = vadd.f32 %v3677, %v4487
      %v4489 = vpop.f32.mrb[0].mxu0
      %v4490 = vpop.f32.mrb[0].mxu0
      %v4491 = vadd.f32 %v3682, %v4490
      %v4492 = vpop.f32.mrb[0].mxu0
      %4493 = vmatprep.mubr.bf16.mxu0 %v4229
      %4494 = vmatmul.mubr.bf16.gmra.mrb[0].mxu0 %v4228
      %v4495 = vpop.f32.mrb[0].mxu0
      %v4496 = vadd.f32 %v3687, %v4495
      %v4497 = vpop.f32.mrb[0].mxu0
      %v4498 = vpop.f32.mrb[0].mxu0
      %v4499 = vadd.f32 %v3692, %v4498
      %v4500 = vpop.f32.mrb[0].mxu0
      %4501 = vdwg.mxu0
      %4502 = vmatprep.subr.bf16.mxu0 0
      %4503 = vmatpush1.bf16.msra.mxu0 %v2873
      %4504 = vmatprep.subr.bf16.mxu0 0
      %4505 = vmatpush1.bf16.msra.mxu0 %v2877
      %4506 = vmatprep.subr.bf16.mxu0 0
      %4507 = vmatpush1.bf16.msra.mxu0 %v2917
      %4508 = vmatprep.subr.bf16.mxu0 0
      %4509 = vmatpush1.bf16.msra.mxu0 %v2921
      %4510 = vmatprep.subr.bf16.mxu0 0
      %4511 = vmatpush1.bf16.msra.mxu0 %v2925
      %4512 = vmatprep.subr.bf16.mxu0 0
      %4513 = vmatpush1.bf16.msra.mxu0 %v2929
      %4514 = vmatprep.subr.bf16.mxu0 0
      %4515 = vmatpush1.bf16.msra.mxu0 %v2933
      %4516 = vmatprep.subr.bf16.mxu0 0
      %4517 = vmatpush1.bf16.msra.mxu0 %v2937
      %4518 = vmatprep.subr.bf16.mxu0 0
      %4519 = vmatpush1.bf16.msra.mxu0 %v2941
      %4520 = vmatprep.subr.bf16.mxu0 0
      %4521 = vmatpush1.bf16.msra.mxu0 %v2945
      %4522 = vmatprep.subr.bf16.mxu0 0
      %4523 = vmatpush1.bf16.msra.mxu0 %v2949
      %4524 = vmatprep.subr.bf16.mxu0 0
      %4525 = vmatpush1.bf16.msra.mxu0 %v2989
      %4526 = vmatprep.subr.bf16.mxu0 0
      %4527 = vmatpush1.bf16.msra.mxu0 %v2993
      %4528 = vmatprep.subr.bf16.mxu0 0
      %4529 = vmatpush1.bf16.msra.mxu0 %v2997
      %4530 = vmatprep.subr.bf16.mxu0 0
      %4531 = vmatpush1.bf16.msra.mxu0 %v3001
      %4532 = vmatprep.subr.bf16.mxu0 0
      %4533 = vmatpush1.bf16.msra.mxu0 %v3005
      %4534 = vmatprep.mubr.bf16.mxu0 %v4111
      %4535 = vmatmul.mubr.bf16.gmra.mrb[0].mxu0 %v4110
      %v4536 = vpop.f32.mrb[0].mxu0
      %v4537 = vadd.f32 %v4432, %v4536
      %v4538 = vpop.f32.mrb[0].mxu0
      %v4539 = vpop.f32.mrb[0].mxu0
      %v4540 = vadd.f32 %v4435, %v4539
      %v4541 = vpop.f32.mrb[0].mxu0
      %4542 = vmatprep.mubr.bf16.mxu0 %v4126
      %4543 = vmatmul.mubr.bf16.gmra.mrb[0].mxu0 %v4125
      %v4544 = vpop.f32.mrb[0].mxu0
      %v4545 = vadd.f32 %v4440, %v4544
      %v4546 = vpop.f32.mrb[0].mxu0
      %v4547 = vpop.f32.mrb[0].mxu0
      %v4548 = vadd.f32 %v4443, %v4547
      %v4549 = vpop.f32.mrb[0].mxu0
      %4550 = vmatprep.mubr.bf16.mxu0 %v4141
      %4551 = vmatmul.mubr.bf16.gmra.mrb[0].mxu0 %v4140
      %v4552 = vpop.f32.mrb[0].mxu0
      %v4553 = vadd.f32 %v4448, %v4552
      %v4554 = vpop.f32.mrb[0].mxu0
      %v4555 = vpop.f32.mrb[0].mxu0
      %v4556 = vadd.f32 %v4451, %v4555
      %v4557 = vpop.f32.mrb[0].mxu0
      %4558 = vmatprep.mubr.bf16.mxu0 %v4156
      %4559 = vmatmul.mubr.bf16.gmra.mrb[0].mxu0 %v4155
      %v4560 = vpop.f32.mrb[0].mxu0
      %v4561 = vadd.f32 %v4456, %v4560
      %v4562 = vpop.f32.mrb[0].mxu0
      %v4563 = vpop.f32.mrb[0].mxu0
      %v4564 = vadd.f32 %v4459, %v4563
      %v4565 = vpop.f32.mrb[0].mxu0
      %4566 = vmatprep.mubr.bf16.mxu0 %v4171
      %4567 = vmatmul.mubr.bf16.gmra.mrb[0].mxu0 %v4170
      %v4568 = vpop.f32.mrb[0].mxu0
      %v4569 = vadd.f32 %v4464, %v4568
      %v4570 = vpop.f32.mrb[0].mxu0
      %v4571 = vpop.f32.mrb[0].mxu0
      %v4572 = vadd.f32 %v4467, %v4571
      %v4573 = vpop.f32.mrb[0].mxu0
      %4574 = vmatprep.mubr.bf16.mxu0 %v4186
      %4575 = vmatmul.mubr.bf16.gmra.mrb[0].mxu0 %v4185
      %v4576 = vpop.f32.mrb[0].mxu0
      %v4577 = vadd.f32 %v4472, %v4576
      %v4578 = vpop.f32.mrb[0].mxu0
      %v4579 = vpop.f32.mrb[0].mxu0
      %v4580 = vadd.f32 %v4475, %v4579
      %v4581 = vpop.f32.mrb[0].mxu0
      %4582 = vmatprep.mubr.bf16.mxu0 %v4201
      %4583 = vmatmul.mubr.bf16.gmra.mrb[0].mxu0 %v4200
      %v4584 = vpop.f32.mrb[0].mxu0
      %v4585 = vadd.f32 %v4480, %v4584
      %v4586 = vpop.f32.mrb[0].mxu0
      %v4587 = vpop.f32.mrb[0].mxu0
      %v4588 = vadd.f32 %v4483, %v4587
      %v4589 = vpop.f32.mrb[0].mxu0
      %4590 = vmatprep.mubr.bf16.mxu0 %v4216
      %4591 = vmatmul.mubr.bf16.gmra.mrb[0].mxu0 %v4215
      %v4592 = vpop.f32.mrb[0].mxu0
      %v4593 = vadd.f32 %v4488, %v4592
      %v4594 = vpop.f32.mrb[0].mxu0
      %v4595 = vpop.f32.mrb[0].mxu0
      %v4596 = vadd.f32 %v4491, %v4595
      %v4597 = vpop.f32.mrb[0].mxu0
      %4598 = vmatprep.mubr.bf16.mxu0 %v4231
      %4599 = vmatmul.mubr.bf16.gmra.mrb[0].mxu0 %v4230
      %v4600 = vpop.f32.mrb[0].mxu0
      %v4601 = vadd.f32 %v4496, %v4600
      %v4602 = vpop.f32.mrb[0].mxu0
      %v4603 = vpop.f32.mrb[0].mxu0
      %v4604 = vadd.f32 %v4499, %v4603
      %v4605 = vpop.f32.mrb[0].mxu0
      %4606 = vdwg.mxu0
      %4607 = vmatprep.subr.bf16.mxu0 0
      %4608 = vmatpush1.bf16.msra.mxu0 %v3009
      %4609 = vmatprep.subr.bf16.mxu0 0
      %4610 = vmatpush1.bf16.msra.mxu0 %v3013
      %4611 = vmatprep.subr.bf16.mxu0 0
      %4612 = vmatpush1.bf16.msra.mxu0 %v3017
      %4613 = vmatprep.subr.bf16.mxu0 0
      %4614 = vmatpush1.bf16.msra.mxu0 %v3021
      %4615 = vmatprep.subr.bf16.mxu0 0
      %4616 = vmatpush1.bf16.msra.mxu0 %v3061
      %4617 = vmatprep.subr.bf16.mxu0 0
      %4618 = vmatpush1.bf16.msra.mxu0 %v3065
      %4619 = vmatprep.subr.bf16.mxu0 0
      %4620 = vmatpush1.bf16.msra.mxu0 %v3069
      %4621 = vmatprep.subr.bf16.mxu0 0
      %4622 = vmatpush1.bf16.msra.mxu0 %v3073
      %4623 = vmatprep.subr.bf16.mxu0 0
      %4624 = vmatpush1.bf16.msra.mxu0 %v3077
      %4625 = vmatprep.subr.bf16.mxu0 0
      %4626 = vmatpush1.bf16.msra.mxu0 %v3081
      %4627 = vmatprep.subr.bf16.mxu0 0
      %4628 = vmatpush1.bf16.msra.mxu0 %v3085
      %4629 = vmatprep.subr.bf16.mxu0 0
      %4630 = vmatpush1.bf16.msra.mxu0 %v3089
      %4631 = vmatprep.subr.bf16.mxu0 0
      %4632 = vmatpush1.bf16.msra.mxu0 %v3093
      %4633 = vmatprep.subr.bf16.mxu0 0
      %4634 = vmatpush1.bf16.msra.mxu0 %v3133
      %4635 = vmatprep.subr.bf16.mxu0 0
      %4636 = vmatpush1.bf16.msra.mxu0 %v3137
      %4637 = vmatprep.subr.bf16.mxu0 0
      %4638 = vmatpush1.bf16.msra.mxu0 %v3141
      %4639 = vmatprep.mubr.bf16.mxu0 %v4113
      %4640 = vmatmul.mubr.bf16.gmra.mrb[0].mxu0 %v4112
      %v4641 = vpop.f32.mrb[0].mxu0
      %v4642 = vadd.f32 %v4537, %v4641
      %v4643 = vpop.f32.mrb[0].mxu0
      %v4644 = vpop.f32.mrb[0].mxu0
      %v4645 = vadd.f32 %v4540, %v4644
      %v4646 = vpop.f32.mrb[0].mxu0
      %4647 = vmatprep.mubr.bf16.mxu0 %v4128
      %4648 = vmatmul.mubr.bf16.gmra.mrb[0].mxu0 %v4127
      %v4649 = vpop.f32.mrb[0].mxu0
      %v4650 = vadd.f32 %v4545, %v4649
      %v4651 = vpop.f32.mrb[0].mxu0
      %v4652 = vpop.f32.mrb[0].mxu0
      %v4653 = vadd.f32 %v4548, %v4652
      %v4654 = vpop.f32.mrb[0].mxu0
      %4655 = vmatprep.mubr.bf16.mxu0 %v4143
      %4656 = vmatmul.mubr.bf16.gmra.mrb[0].mxu0 %v4142
      %v4657 = vpop.f32.mrb[0].mxu0
      %v4658 = vadd.f32 %v4553, %v4657
      %v4659 = vpop.f32.mrb[0].mxu0
      %v4660 = vpop.f32.mrb[0].mxu0
      %v4661 = vadd.f32 %v4556, %v4660
      %v4662 = vpop.f32.mrb[0].mxu0
      %4663 = vmatprep.mubr.bf16.mxu0 %v4158
      %4664 = vmatmul.mubr.bf16.gmra.mrb[0].mxu0 %v4157
      %v4665 = vpop.f32.mrb[0].mxu0
      %v4666 = vadd.f32 %v4561, %v4665
      %v4667 = vpop.f32.mrb[0].mxu0
      %v4668 = vpop.f32.mrb[0].mxu0
      %v4669 = vadd.f32 %v4564, %v4668
      %v4670 = vpop.f32.mrb[0].mxu0
      %4671 = vmatprep.mubr.bf16.mxu0 %v4173
      %4672 = vmatmul.mubr.bf16.gmra.mrb[0].mxu0 %v4172
      %v4673 = vpop.f32.mrb[0].mxu0
      %v4674 = vadd.f32 %v4569, %v4673
      %v4675 = vpop.f32.mrb[0].mxu0
      %v4676 = vpop.f32.mrb[0].mxu0
      %v4677 = vadd.f32 %v4572, %v4676
      %v4678 = vpop.f32.mrb[0].mxu0
      %4679 = vmatprep.mubr.bf16.mxu0 %v4188
      %4680 = vmatmul.mubr.bf16.gmra.mrb[0].mxu0 %v4187
      %v4681 = vpop.f32.mrb[0].mxu0
      %v4682 = vadd.f32 %v4577, %v4681
      %v4683 = vpop.f32.mrb[0].mxu0
      %v4684 = vpop.f32.mrb[0].mxu0
      %v4685 = vadd.f32 %v4580, %v4684
      %v4686 = vpop.f32.mrb[0].mxu0
      %4687 = vmatprep.mubr.bf16.mxu0 %v4203
      %4688 = vmatmul.mubr.bf16.gmra.mrb[0].mxu0 %v4202
      %v4689 = vpop.f32.mrb[0].mxu0
      %v4690 = vadd.f32 %v4585, %v4689
      %v4691 = vpop.f32.mrb[0].mxu0
      %v4692 = vpop.f32.mrb[0].mxu0
      %v4693 = vadd.f32 %v4588, %v4692
      %v4694 = vpop.f32.mrb[0].mxu0
      %4695 = vmatprep.mubr.bf16.mxu0 %v4218
      %4696 = vmatmul.mubr.bf16.gmra.mrb[0].mxu0 %v4217
      %v4697 = vpop.f32.mrb[0].mxu0
      %v4698 = vadd.f32 %v4593, %v4697
      %v4699 = vpop.f32.mrb[0].mxu0
      %v4700 = vpop.f32.mrb[0].mxu0
      %v4701 = vadd.f32 %v4596, %v4700
      %v4702 = vpop.f32.mrb[0].mxu0
      %4703 = vmatprep.mubr.bf16.mxu0 %v4233
      %4704 = vmatmul.mubr.bf16.gmra.mrb[0].mxu0 %v4232
      %v4705 = vpop.f32.mrb[0].mxu0
      %v4706 = vadd.f32 %v4601, %v4705
      %v4707 = vpop.f32.mrb[0].mxu0
      %v4708 = vpop.f32.mrb[0].mxu0
      %v4709 = vadd.f32 %v4604, %v4708
      %v4710 = vpop.f32.mrb[0].mxu0
      %4711 = vdwg.mxu0
      %4712 = vmatprep.subr.bf16.mxu0 0
      %4713 = vmatpush1.bf16.msra.mxu0 %v3145
      %4714 = vmatprep.subr.bf16.mxu0 0
      %4715 = vmatpush1.bf16.msra.mxu0 %v3149
      %4716 = vmatprep.subr.bf16.mxu0 0
      %4717 = vmatpush1.bf16.msra.mxu0 %v3153
      %4718 = vmatprep.subr.bf16.mxu0 0
      %4719 = vmatpush1.bf16.msra.mxu0 %v3157
      %4720 = vmatprep.subr.bf16.mxu0 0
      %4721 = vmatpush1.bf16.msra.mxu0 %v3161
      %4722 = vmatprep.subr.bf16.mxu0 0
      %4723 = vmatpush1.bf16.msra.mxu0 %v3165
      %4724 = vmatprep.subr.bf16.mxu0 0
      %4725 = vmatpush1.bf16.msra.mxu0 %v2546
      %4726 = vmatprep.subr.bf16.mxu0 0
      %4727 = vmatpush1.bf16.msra.mxu0 %v2548
      %4728 = vmatprep.subr.bf16.mxu0 0
      %4729 = vmatpush1.bf16.msra.mxu0 %v2550
      %4730 = vmatprep.subr.bf16.mxu0 0
      %4731 = vmatpush1.bf16.msra.mxu0 %v2552
      %4732 = vmatprep.subr.bf16.mxu0 0
      %4733 = vmatpush1.bf16.msra.mxu0 %v2554
      %4734 = vmatprep.subr.bf16.mxu0 0
      %4735 = vmatpush1.bf16.msra.mxu0 %v2556
      %4736 = vmatprep.subr.bf16.mxu0 0
      %4737 = vmatpush1.bf16.msra.mxu0 %v2558
      %4738 = vmatprep.subr.bf16.mxu0 0
      %4739 = vmatpush1.bf16.msra.mxu0 %v2560
      %4740 = vmatprep.subr.bf16.mxu0 0
      %4741 = vmatpush1.bf16.msra.mxu0 %v2562
      %4742 = vmatprep.subr.bf16.mxu0 0
      %4743 = vmatpush1.bf16.msra.mxu0 %v3206
      %4744 = vmatprep.mubr.bf16.mxu0 %v4115
      %4745 = vmatmul.mubr.bf16.gmra.mrb[0].mxu0 %v4114
      %v4746 = vpop.f32.mrb[0].mxu0
      %v4747 = vadd.f32 %v4642, %v4746
      %v4748 = vpop.f32.mrb[0].mxu0
      %v4749 = vpop.f32.mrb[0].mxu0
      %v4750 = vadd.f32 %v4645, %v4749
      %v4751 = vpop.f32.mrb[0].mxu0
      %4752 = vmatprep.mubr.bf16.mxu0 %v4130
      %4753 = vmatmul.mubr.bf16.gmra.mrb[0].mxu0 %v4129
      %v4754 = vpop.f32.mrb[0].mxu0
      %v4755 = vadd.f32 %v4650, %v4754
      %v4756 = vpop.f32.mrb[0].mxu0
      %v4757 = vpop.f32.mrb[0].mxu0
      %v4758 = vadd.f32 %v4653, %v4757
      %v4759 = vpop.f32.mrb[0].mxu0
      %4760 = vmatprep.mubr.bf16.mxu0 %v4145
      %4761 = vmatmul.mubr.bf16.gmra.mrb[0].mxu0 %v4144
      %v4762 = vpop.f32.mrb[0].mxu0
      %v4763 = vadd.f32 %v4658, %v4762
      %v4764 = vpop.f32.mrb[0].mxu0
      %v4765 = vpop.f32.mrb[0].mxu0
      %v4766 = vadd.f32 %v4661, %v4765
      %v4767 = vpop.f32.mrb[0].mxu0
      %4768 = vmatprep.mubr.bf16.mxu0 %v4160
      %4769 = vmatmul.mubr.bf16.gmra.mrb[0].mxu0 %v4159
      %v4770 = vpop.f32.mrb[0].mxu0
      %v4771 = vadd.f32 %v4666, %v4770
      %v4772 = vpop.f32.mrb[0].mxu0
      %v4773 = vpop.f32.mrb[0].mxu0
      %v4774 = vadd.f32 %v4669, %v4773
      %v4775 = vpop.f32.mrb[0].mxu0
      %4776 = vmatprep.mubr.bf16.mxu0 %v4175
      %4777 = vmatmul.mubr.bf16.gmra.mrb[0].mxu0 %v4174
      %v4778 = vpop.f32.mrb[0].mxu0
      %v4779 = vadd.f32 %v4674, %v4778
      %v4780 = vpop.f32.mrb[0].mxu0
      %v4781 = vpop.f32.mrb[0].mxu0
      %v4782 = vadd.f32 %v4677, %v4781
      %v4783 = vpop.f32.mrb[0].mxu0
      %4784 = vmatprep.mubr.bf16.mxu0 %v4190
      %4785 = vmatmul.mubr.bf16.gmra.mrb[0].mxu0 %v4189
      %v4786 = vpop.f32.mrb[0].mxu0
      %v4787 = vadd.f32 %v4682, %v4786
      %v4788 = vpop.f32.mrb[0].mxu0
      %v4789 = vpop.f32.mrb[0].mxu0
      %v4790 = vadd.f32 %v4685, %v4789
      %v4791 = vpop.f32.mrb[0].mxu0
      %4792 = vmatprep.mubr.bf16.mxu0 %v4205
      %4793 = vmatmul.mubr.bf16.gmra.mrb[0].mxu0 %v4204
      %v4794 = vpop.f32.mrb[0].mxu0
      %v4795 = vadd.f32 %v4690, %v4794
      %v4796 = vpop.f32.mrb[0].mxu0
      %v4797 = vpop.f32.mrb[0].mxu0
      %v4798 = vadd.f32 %v4693, %v4797
      %v4799 = vpop.f32.mrb[0].mxu0
      %4800 = vmatprep.mubr.bf16.mxu0 %v4220
      %4801 = vmatmul.mubr.bf16.gmra.mrb[0].mxu0 %v4219
      %v4802 = vpop.f32.mrb[0].mxu0
      %v4803 = vadd.f32 %v4698, %v4802
      %v4804 = vpop.f32.mrb[0].mxu0
      %v4805 = vpop.f32.mrb[0].mxu0
      %v4806 = vadd.f32 %v4701, %v4805
      %v4807 = vpop.f32.mrb[0].mxu0
      %4808 = vmatprep.mubr.bf16.mxu0 %v4235
      %4809 = vmatmul.mubr.bf16.gmra.mrb[0].mxu0 %v4234
      %v4810 = vpop.f32.mrb[0].mxu0
      %v4811 = vadd.f32 %v4706, %v4810
      %v4812 = vpop.f32.mrb[0].mxu0
      %v4813 = vpop.f32.mrb[0].mxu0
      %v4814 = vadd.f32 %v4709, %v4813
      %v4815 = vpop.f32.mrb[0].mxu0
      %4816 = vdwg.mxu0
      %4817 = vmatprep.subr.bf16.mxu0 0
      %4818 = vmatpush1.bf16.msra.mxu0 %v3210
      %4819 = vmatprep.subr.bf16.mxu0 0
      %4820 = vmatpush1.bf16.msra.mxu0 %v3214
      %4821 = vmatprep.subr.bf16.mxu0 0
      %4822 = vmatpush1.bf16.msra.mxu0 %v3218
      %4823 = vmatprep.subr.bf16.mxu0 0
      %4824 = vmatpush1.bf16.msra.mxu0 %v3222
      %4825 = vmatprep.subr.bf16.mxu0 0
      %4826 = vmatpush1.bf16.msra.mxu0 %v3226
      %4827 = vmatprep.subr.bf16.mxu0 0
      %4828 = vmatpush1.bf16.msra.mxu0 %v3230
      %4829 = vmatprep.subr.bf16.mxu0 0
      %4830 = vmatpush1.bf16.msra.mxu0 %v3234
      %4831 = vmatprep.subr.bf16.mxu0 0
      %4832 = vmatpush1.bf16.msra.mxu0 %v3238
      %4833 = vmatprep.subr.bf16.mxu0 0
      %4834 = vmatpush1.bf16.msra.mxu0 %v3279
      %4835 = vmatprep.subr.bf16.mxu0 0
      %4836 = vmatpush1.bf16.msra.mxu0 %v3283
      %4837 = vmatprep.subr.bf16.mxu0 0
      %4838 = vmatpush1.bf16.msra.mxu0 %v3287
      %4839 = vmatprep.subr.bf16.mxu0 0
      %4840 = vmatpush1.bf16.msra.mxu0 %v3291
      %4841 = vmatprep.subr.bf16.mxu0 0
      %4842 = vmatpush1.bf16.msra.mxu0 %v3295
      %4843 = vmatprep.subr.bf16.mxu0 0
      %4844 = vmatpush1.bf16.msra.mxu0 %v3299
      %4845 = vmatprep.subr.bf16.mxu0 0
      %4846 = vmatpush1.bf16.msra.mxu0 %v3303
      %4847 = vmatprep.subr.bf16.mxu0 0
      %4848 = vmatpush1.bf16.msra.mxu0 %v3307
      %4849 = vmatprep.mubr.bf16.mxu0 %v4117
      %4850 = vmatmul.mubr.bf16.gmra.mrb[0].mxu0 %v4116
      %v4851 = vpop.f32.mrb[0].mxu0
      %v4852 = vadd.f32 %v4747, %v4851
      %v4853 = vpop.f32.mrb[0].mxu0
      %v4854 = vpop.f32.mrb[0].mxu0
      %v4855 = vadd.f32 %v4750, %v4854
      %v4856 = vpop.f32.mrb[0].mxu0
      %4857 = vmatprep.mubr.bf16.mxu0 %v4132
      %4858 = vmatmul.mubr.bf16.gmra.mrb[0].mxu0 %v4131
      %v4859 = vpop.f32.mrb[0].mxu0
      %v4860 = vadd.f32 %v4755, %v4859
      %v4861 = vpop.f32.mrb[0].mxu0
      %v4862 = vpop.f32.mrb[0].mxu0
      %v4863 = vadd.f32 %v4758, %v4862
      %v4864 = vpop.f32.mrb[0].mxu0
      %4865 = vmatprep.mubr.bf16.mxu0 %v4147
      %4866 = vmatmul.mubr.bf16.gmra.mrb[0].mxu0 %v4146
      %v4867 = vpop.f32.mrb[0].mxu0
      %v4868 = vadd.f32 %v4763, %v4867
      %v4869 = vpop.f32.mrb[0].mxu0
      %v4870 = vpop.f32.mrb[0].mxu0
      %v4871 = vadd.f32 %v4766, %v4870
      %v4872 = vpop.f32.mrb[0].mxu0
      %4873 = vmatprep.mubr.bf16.mxu0 %v4162
      %4874 = vmatmul.mubr.bf16.gmra.mrb[0].mxu0 %v4161
      %v4875 = vpop.f32.mrb[0].mxu0
      %v4876 = vadd.f32 %v4771, %v4875
      %v4877 = vpop.f32.mrb[0].mxu0
      %v4878 = vpop.f32.mrb[0].mxu0
      %v4879 = vadd.f32 %v4774, %v4878
      %v4880 = vpop.f32.mrb[0].mxu0
      %4881 = vmatprep.mubr.bf16.mxu0 %v4177
      %4882 = vmatmul.mubr.bf16.gmra.mrb[0].mxu0 %v4176
      %v4883 = vpop.f32.mrb[0].mxu0
      %v4884 = vadd.f32 %v4779, %v4883
      %v4885 = vpop.f32.mrb[0].mxu0
      %v4886 = vpop.f32.mrb[0].mxu0
      %v4887 = vadd.f32 %v4782, %v4886
      %v4888 = vpop.f32.mrb[0].mxu0
      %4889 = vmatprep.mubr.bf16.mxu0 %v4192
      %4890 = vmatmul.mubr.bf16.gmra.mrb[0].mxu0 %v4191
      %v4891 = vpop.f32.mrb[0].mxu0
      %v4892 = vadd.f32 %v4787, %v4891
      %v4893 = vpop.f32.mrb[0].mxu0
      %v4894 = vpop.f32.mrb[0].mxu0
      %v4895 = vadd.f32 %v4790, %v4894
      %v4896 = vpop.f32.mrb[0].mxu0
      %4897 = vmatprep.mubr.bf16.mxu0 %v4207
      %4898 = vmatmul.mubr.bf16.gmra.mrb[0].mxu0 %v4206
      %v4899 = vpop.f32.mrb[0].mxu0
      %v4900 = vadd.f32 %v4795, %v4899
      %v4901 = vpop.f32.mrb[0].mxu0
      %v4902 = vpop.f32.mrb[0].mxu0
      %v4903 = vadd.f32 %v4798, %v4902
      %v4904 = vpop.f32.mrb[0].mxu0
      %4905 = vmatprep.mubr.bf16.mxu0 %v4222
      %4906 = vmatmul.mubr.bf16.gmra.mrb[0].mxu0 %v4221
      %v4907 = vpop.f32.mrb[0].mxu0
      %v4908 = vadd.f32 %v4803, %v4907
      %v4909 = vpop.f32.mrb[0].mxu0
      %v4910 = vpop.f32.mrb[0].mxu0
      %v4911 = vadd.f32 %v4806, %v4910
      %v4912 = vpop.f32.mrb[0].mxu0
      %4913 = vmatprep.mubr.bf16.mxu0 %v4237
      %4914 = vmatmul.mubr.bf16.gmra.mrb[0].mxu0 %v4236
      %v4915 = vpop.f32.mrb[0].mxu0
      %v4916 = vadd.f32 %v4811, %v4915
      %v4917 = vpop.f32.mrb[0].mxu0
      %v4918 = vpop.f32.mrb[0].mxu0
      %v4919 = vadd.f32 %v4814, %v4918
      %v4920 = vpop.f32.mrb[0].mxu0
      %4921 = vdwg.mxu0
      %4922 = vmatprep.subr.bf16.mxu0 0
      %4923 = vmatpush1.bf16.msra.mxu0 %v3311
      %4924 = vmatprep.subr.bf16.mxu0 0
      %4925 = vmatpush1.bf16.msra.mxu0 %v3352
      %4926 = vmatprep.subr.bf16.mxu0 0
      %4927 = vmatpush1.bf16.msra.mxu0 %v3356
      %4928 = vmatprep.subr.bf16.mxu0 0
      %4929 = vmatpush1.bf16.msra.mxu0 %v3360
      %4930 = vmatprep.subr.bf16.mxu0 0
      %4931 = vmatpush1.bf16.msra.mxu0 %v3364
      %4932 = vmatprep.subr.bf16.mxu0 0
      %4933 = vmatpush1.bf16.msra.mxu0 %v3368
      %4934 = vmatprep.subr.bf16.mxu0 0
      %4935 = vmatpush1.bf16.msra.mxu0 %v3372
      %4936 = vmatprep.subr.bf16.mxu0 0
      %4937 = vmatpush1.bf16.msra.mxu0 %v3376
      %4938 = vmatprep.subr.bf16.mxu0 0
      %4939 = vmatpush1.bf16.msra.mxu0 %v3380
      %4940 = vmatprep.subr.bf16.mxu0 0
      %4941 = vmatpush1.bf16.msra.mxu0 %v3384
      %4942 = vmatprep.subr.bf16.mxu0 0
      %4943 = vmatpush1.bf16.msra.mxu0 %v3425
      %4944 = vmatprep.subr.bf16.mxu0 0
      %4945 = vmatpush1.bf16.msra.mxu0 %v3429
      %4946 = vmatprep.subr.bf16.mxu0 0
      %4947 = vmatpush1.bf16.msra.mxu0 %v3433
      %4948 = vmatprep.subr.bf16.mxu0 0
      %4949 = vmatpush1.bf16.msra.mxu0 %v3437
      %4950 = vmatprep.subr.bf16.mxu0 0
      %4951 = vmatpush1.bf16.msra.mxu0 %v3441
      %4952 = vmatprep.subr.bf16.mxu0 0
      %4953 = vmatpush1.bf16.msra.mxu0 %v3445
      %4954 = vmatprep.mubr.bf16.mxu0 %v4119
      %4955 = vmatmul.mubr.bf16.gmra.mrb[0].mxu0 %v4118
      %v4956 = vpop.f32.mrb[0].mxu0
      %v4957 = vadd.f32 %v4852, %v4956
      %v4958 = vpop.f32.mrb[0].mxu0
      %v4959 = vpop.f32.mrb[0].mxu0
      %v4960 = vadd.f32 %v4855, %v4959
      %v4961 = vpop.f32.mrb[0].mxu0
      %4962 = vmatprep.mubr.bf16.mxu0 %v4134
      %4963 = vmatmul.mubr.bf16.gmra.mrb[0].mxu0 %v4133
      %v4964 = vpop.f32.mrb[0].mxu0
      %v4965 = vadd.f32 %v4860, %v4964
      %v4966 = vpop.f32.mrb[0].mxu0
      %v4967 = vpop.f32.mrb[0].mxu0
      %v4968 = vadd.f32 %v4863, %v4967
      %v4969 = vpop.f32.mrb[0].mxu0
      %4970 = vmatprep.mubr.bf16.mxu0 %v4149
      %4971 = vmatmul.mubr.bf16.gmra.mrb[0].mxu0 %v4148
      %v4972 = vpop.f32.mrb[0].mxu0
      %v4973 = vadd.f32 %v4868, %v4972
      %v4974 = vpop.f32.mrb[0].mxu0
      %v4975 = vpop.f32.mrb[0].mxu0
      %v4976 = vadd.f32 %v4871, %v4975
      %v4977 = vpop.f32.mrb[0].mxu0
      %4978 = vmatprep.mubr.bf16.mxu0 %v4164
      %4979 = vmatmul.mubr.bf16.gmra.mrb[0].mxu0 %v4163
      %v4980 = vpop.f32.mrb[0].mxu0
      %v4981 = vadd.f32 %v4876, %v4980
      %v4982 = vpop.f32.mrb[0].mxu0
      %v4983 = vpop.f32.mrb[0].mxu0
      %v4984 = vadd.f32 %v4879, %v4983
      %v4985 = vpop.f32.mrb[0].mxu0
      %4986 = vmatprep.mubr.bf16.mxu0 %v4179
      %4987 = vmatmul.mubr.bf16.gmra.mrb[0].mxu0 %v4178
      %v4988 = vpop.f32.mrb[0].mxu0
      %v4989 = vadd.f32 %v4884, %v4988
      %v4990 = vpop.f32.mrb[0].mxu0
      %v4991 = vpop.f32.mrb[0].mxu0
      %v4992 = vadd.f32 %v4887, %v4991
      %v4993 = vpop.f32.mrb[0].mxu0
      %4994 = vmatprep.mubr.bf16.mxu0 %v4194
      %4995 = vmatmul.mubr.bf16.gmra.mrb[0].mxu0 %v4193
      %v4996 = vpop.f32.mrb[0].mxu0
      %v4997 = vadd.f32 %v4892, %v4996
      %v4998 = vpop.f32.mrb[0].mxu0
      %v4999 = vpop.f32.mrb[0].mxu0
      %v5000 = vadd.f32 %v4895, %v4999
      %v5001 = vpop.f32.mrb[0].mxu0
      %5002 = vmatprep.mubr.bf16.mxu0 %v4209
      %5003 = vmatmul.mubr.bf16.gmra.mrb[0].mxu0 %v4208
      %v5004 = vpop.f32.mrb[0].mxu0
      %v5005 = vadd.f32 %v4900, %v5004
      %v5006 = vpop.f32.mrb[0].mxu0
      %v5007 = vpop.f32.mrb[0].mxu0
      %v5008 = vadd.f32 %v4903, %v5007
      %v5009 = vpop.f32.mrb[0].mxu0
      %5010 = vmatprep.mubr.bf16.mxu0 %v4224
      %5011 = vmatmul.mubr.bf16.gmra.mrb[0].mxu0 %v4223
      %v5012 = vpop.f32.mrb[0].mxu0
      %v5013 = vadd.f32 %v4908, %v5012
      %v5014 = vpop.f32.mrb[0].mxu0
      %v5015 = vpop.f32.mrb[0].mxu0
      %v5016 = vadd.f32 %v4911, %v5015
      %v5017 = vpop.f32.mrb[0].mxu0
      %5018 = vmatprep.mubr.bf16.mxu0 %v4239
      %5019 = vmatmul.mubr.bf16.gmra.mrb[0].mxu0 %v4238
      %v5020 = vpop.f32.mrb[0].mxu0
      %v5021 = vadd.f32 %v4916, %v5020
      %v5022 = vpop.f32.mrb[0].mxu0
      %v5023 = vpop.f32.mrb[0].mxu0
      %v5024 = vadd.f32 %v4919, %v5023
      %v5025 = vpop.f32.mrb[0].mxu0
      %5026 = vdwg.mxu0
      %5027 = vmatprep.subr.bf16.mxu0 0
      %5028 = vmatpush1.bf16.msra.mxu0 %v3449
      %5029 = vmatprep.subr.bf16.mxu0 0
      %5030 = vmatpush1.bf16.msra.mxu0 %v3453
      %5031 = vmatprep.subr.bf16.mxu0 0
      %5032 = vmatpush1.bf16.msra.mxu0 %v3457
      %5033 = vmatprep.subr.bf16.mxu0 0
      %5034 = vmatpush1.bf16.msra.mxu0 %v3498
      %5035 = vmatprep.subr.bf16.mxu0 0
      %5036 = vmatpush1.bf16.msra.mxu0 %v3502
      %5037 = vmatprep.subr.bf16.mxu0 0
      %5038 = vmatpush1.bf16.msra.mxu0 %v3506
      %5039 = vmatprep.subr.bf16.mxu0 0
      %5040 = vmatpush1.bf16.msra.mxu0 %v3510
      %5041 = vmatprep.subr.bf16.mxu0 0
      %5042 = vmatpush1.bf16.msra.mxu0 %v3514
      %5043 = vmatprep.subr.bf16.mxu0 0
      %5044 = vmatpush1.bf16.msra.mxu0 %v3518
      %5045 = vmatprep.subr.bf16.mxu0 0
      %5046 = vmatpush1.bf16.msra.mxu0 %v3522
      %5047 = vmatprep.subr.bf16.mxu0 0
      %5048 = vmatpush1.bf16.msra.mxu0 %v3526
      %5049 = vmatprep.subr.bf16.mxu0 0
      %5050 = vmatpush1.bf16.msra.mxu0 %v3530
      %5051 = vmatprep.subr.bf16.mxu0 0
      %5052 = vmatpush1.bf16.msra.mxu0 %v3570
      %5053 = vmatprep.subr.bf16.mxu0 0
      %5054 = vmatpush1.bf16.msra.mxu0 %v3574
      %5055 = vmatprep.subr.bf16.mxu0 0
      %5056 = vmatpush1.bf16.msra.mxu0 %v3578
      %5057 = vmatprep.subr.bf16.mxu0 0
      %5058 = vmatpush1.bf16.msra.mxu0 %v3582
      %5059 = vmatprep.mubr.bf16.mxu0 %v4121
      %5060 = vmatmul.mubr.bf16.gmra.mrb[0].mxu0 %v4120
      %v5061 = vpop.f32.mrb[0].mxu0
      %v5062 = vadd.f32 %v4957, %v5061
      %v5063 = vpop.f32.mrb[0].mxu0
      %v5064 = vpop.f32.mrb[0].mxu0
      %v5065 = vadd.f32 %v4960, %v5064
      %v5066 = vpop.f32.mrb[0].mxu0
      %5067 = vmatprep.mubr.bf16.mxu0 %v4136
      %5068 = vmatmul.mubr.bf16.gmra.mrb[0].mxu0 %v4135
      %v5069 = vpop.f32.mrb[0].mxu0
      %v5070 = vadd.f32 %v4965, %v5069
      %v5071 = vpop.f32.mrb[0].mxu0
      %v5072 = vpop.f32.mrb[0].mxu0
      %v5073 = vadd.f32 %v4968, %v5072
      %v5074 = vpop.f32.mrb[0].mxu0
      %5075 = vmatprep.mubr.bf16.mxu0 %v4151
      %5076 = vmatmul.mubr.bf16.gmra.mrb[0].mxu0 %v4150
      %v5077 = vpop.f32.mrb[0].mxu0
      %v5078 = vadd.f32 %v4973, %v5077
      %v5079 = vpop.f32.mrb[0].mxu0
      %v5080 = vpop.f32.mrb[0].mxu0
      %v5081 = vadd.f32 %v4976, %v5080
      %v5082 = vpop.f32.mrb[0].mxu0
      %5083 = vmatprep.mubr.bf16.mxu0 %v4166
      %5084 = vmatmul.mubr.bf16.gmra.mrb[0].mxu0 %v4165
      %v5085 = vpop.f32.mrb[0].mxu0
      %v5086 = vadd.f32 %v4981, %v5085
      %v5087 = vpop.f32.mrb[0].mxu0
      %v5088 = vpop.f32.mrb[0].mxu0
      %v5089 = vadd.f32 %v4984, %v5088
      %v5090 = vpop.f32.mrb[0].mxu0
      %5091 = vmatprep.mubr.bf16.mxu0 %v4181
      %5092 = vmatmul.mubr.bf16.gmra.mrb[0].mxu0 %v4180
      %v5093 = vpop.f32.mrb[0].mxu0
      %v5094 = vadd.f32 %v4989, %v5093
      %v5095 = vpop.f32.mrb[0].mxu0
      %v5096 = vpop.f32.mrb[0].mxu0
      %v5097 = vadd.f32 %v4992, %v5096
      %v5098 = vpop.f32.mrb[0].mxu0
      %5099 = vmatprep.mubr.bf16.mxu0 %v4196
      %5100 = vmatmul.mubr.bf16.gmra.mrb[0].mxu0 %v4195
      %v5101 = vpop.f32.mrb[0].mxu0
      %v5102 = vadd.f32 %v4997, %v5101
      %v5103 = vpop.f32.mrb[0].mxu0
      %v5104 = vpop.f32.mrb[0].mxu0
      %v5105 = vadd.f32 %v5000, %v5104
      %v5106 = vpop.f32.mrb[0].mxu0
      %5107 = vmatprep.mubr.bf16.mxu0 %v4211
      %5108 = vmatmul.mubr.bf16.gmra.mrb[0].mxu0 %v4210
      %v5109 = vpop.f32.mrb[0].mxu0
      %v5110 = vadd.f32 %v5005, %v5109
      %v5111 = vpop.f32.mrb[0].mxu0
      %v5112 = vpop.f32.mrb[0].mxu0
      %v5113 = vadd.f32 %v5008, %v5112
      %v5114 = vpop.f32.mrb[0].mxu0
      %5115 = vmatprep.mubr.bf16.mxu0 %v4226
      %5116 = vmatmul.mubr.bf16.gmra.mrb[0].mxu0 %v4225
      %v5117 = vpop.f32.mrb[0].mxu0
      %v5118 = vadd.f32 %v5013, %v5117
      %v5119 = vpop.f32.mrb[0].mxu0
      %v5120 = vpop.f32.mrb[0].mxu0
      %v5121 = vadd.f32 %v5016, %v5120
      %v5122 = vpop.f32.mrb[0].mxu0
      %5123 = vmatprep.mubr.bf16.mxu0 %v4241
      %5124 = vmatmul.mubr.bf16.gmra.mrb[0].mxu0 %v4240
      %v5125 = vpop.f32.mrb[0].mxu0
      %v5126 = vadd.f32 %v5021, %v5125
      %v5127 = vpop.f32.mrb[0].mxu0
      %v5128 = vpop.f32.mrb[0].mxu0
      %v5129 = vadd.f32 %v5024, %v5128
      %v5130 = vpop.f32.mrb[0].mxu0
      %5131 = vdwg.mxu0
      %5132 = vmatprep.subr.bf16.mxu0 0
      %5133 = vmatpush1.bf16.msra.mxu0 %v3586
      %5134 = vmatprep.subr.bf16.mxu0 0
      %5135 = vmatpush1.bf16.msra.mxu0 %v3590
      %5136 = vmatprep.subr.bf16.mxu0 0
      %5137 = vmatpush1.bf16.msra.mxu0 %v3594
      %5138 = vmatprep.subr.bf16.mxu0 0
      %5139 = vmatpush1.bf16.msra.mxu0 %v3598
      %5140 = vmatprep.subr.bf16.mxu0 0
      %5141 = vmatpush1.bf16.msra.mxu0 %v3602
      %5142 = vmatprep.subr.bf16.mxu0 0
      %5143 = vmatpush1.bf16.msra.mxu0 0
      %5144 = vmatprep.subr.bf16.mxu0 0
      %5145 = vmatpush1.bf16.msra.mxu0 0
      %5146 = vmatprep.subr.bf16.mxu0 0
      %5147 = vmatpush1.bf16.msra.mxu0 0
      %5148 = vmatprep.subr.bf16.mxu0 0
      %5149 = vmatpush1.bf16.msra.mxu0 0
      %5150 = vmatprep.subr.bf16.mxu0 0
      %5151 = vmatpush1.bf16.msra.mxu0 0
      %5152 = vmatprep.subr.bf16.mxu0 0
      %5153 = vmatpush1.bf16.msra.mxu0 0
      %5154 = vmatprep.subr.bf16.mxu0 0
      %5155 = vmatpush1.bf16.msra.mxu0 0
      %5156 = vmatprep.subr.bf16.mxu0 0
      %5157 = vmatpush1.bf16.msra.mxu0 0
      %5158 = vmatprep.subr.bf16.mxu0 0
      %5159 = vmatpush1.bf16.msra.mxu0 0
      %5160 = vmatprep.subr.bf16.mxu0 0
      %5161 = vmatpush1.bf16.msra.mxu0 0
      %5162 = vmatprep.subr.bf16.mxu0 0
      %5163 = vmatpush1.bf16.msra.mxu0 0
      %5164 = vmatprep.mubr.bf16.mxu0 0
      %5165 = vmatmul.mubr.bf16.gmra.mrb[0].mxu0 %v4371
      %v5166 = vpop.f32.mrb[0].mxu0
      %v5167 = vadd.f32 %v5062, %v5166
      %v5168 = vpop.f32.mrb[0].mxu0
      %v5169 = vpop.f32.mrb[0].mxu0
      %v5170 = vadd.f32 %v5065, %v5169
      %v5171 = vpop.f32.mrb[0].mxu0
      %5172 = vmatprep.mubr.bf16.mxu0 0
      %5173 = vmatmul.mubr.bf16.gmra.mrb[0].mxu0 %v4374
      %v5174 = vpop.f32.mrb[0].mxu0
      %v5175 = vadd.f32 %v5070, %v5174
      %v5176 = vpop.f32.mrb[0].mxu0
      %v5177 = vpop.f32.mrb[0].mxu0
      %v5178 = vadd.f32 %v5073, %v5177
      %v5179 = vpop.f32.mrb[0].mxu0
      %5180 = vmatprep.mubr.bf16.mxu0 0
      %5181 = vmatmul.mubr.bf16.gmra.mrb[0].mxu0 %v4377
      %v5182 = vpop.f32.mrb[0].mxu0
      %v5183 = vadd.f32 %v5078, %v5182
      %v5184 = vpop.f32.mrb[0].mxu0
      %v5185 = vpop.f32.mrb[0].mxu0
      %v5186 = vadd.f32 %v5081, %v5185
      %v5187 = vpop.f32.mrb[0].mxu0
      %5188 = vmatprep.mubr.bf16.mxu0 0
      %5189 = vmatmul.mubr.bf16.gmra.mrb[0].mxu0 %v4380
      %v5190 = vpop.f32.mrb[0].mxu0
      %v5191 = vadd.f32 %v5086, %v5190
      %v5192 = vpop.f32.mrb[0].mxu0
      %v5193 = vpop.f32.mrb[0].mxu0
      %v5194 = vadd.f32 %v5089, %v5193
      %v5195 = vpop.f32.mrb[0].mxu0
      %5196 = vmatprep.mubr.bf16.mxu0 0
      %5197 = vmatmul.mubr.bf16.gmra.mrb[0].mxu0 %v4383
      %v5198 = vpop.f32.mrb[0].mxu0
      %v5199 = vadd.f32 %v5094, %v5198
      %v5200 = vpop.f32.mrb[0].mxu0
      %v5201 = vpop.f32.mrb[0].mxu0
      %v5202 = vadd.f32 %v5097, %v5201
      %v5203 = vpop.f32.mrb[0].mxu0
      %5204 = vmatprep.mubr.bf16.mxu0 0
      %5205 = vmatmul.mubr.bf16.gmra.mrb[0].mxu0 %v4386
      %v5206 = vpop.f32.mrb[0].mxu0
      %v5207 = vadd.f32 %v5102, %v5206
      %v5208 = vpop.f32.mrb[0].mxu0
      %v5209 = vpop.f32.mrb[0].mxu0
      %v5210 = vadd.f32 %v5105, %v5209
      %v5211 = vpop.f32.mrb[0].mxu0
      %5212 = vmatprep.mubr.bf16.mxu0 0
      %5213 = vmatmul.mubr.bf16.gmra.mrb[0].mxu0 %v4389
      %v5214 = vpop.f32.mrb[0].mxu0
      %v5215 = vadd.f32 %v5110, %v5214
      %v5216 = vpop.f32.mrb[0].mxu0
      %v5217 = vpop.f32.mrb[0].mxu0
      %v5218 = vadd.f32 %v5113, %v5217
      %v5219 = vpop.f32.mrb[0].mxu0
      %5220 = vmatprep.mubr.bf16.mxu0 0
      %5221 = vmatmul.mubr.bf16.gmra.mrb[0].mxu0 %v4392
      %v5222 = vpop.f32.mrb[0].mxu0
      %v5223 = vadd.f32 %v5118, %v5222
      %v5224 = vpop.f32.mrb[0].mxu0
      %v5225 = vpop.f32.mrb[0].mxu0
      %v5226 = vadd.f32 %v5121, %v5225
      %v5227 = vpop.f32.mrb[0].mxu0
      %5228 = vmatprep.mubr.bf16.mxu0 0
      %5229 = vmatmul.mubr.bf16.gmra.mrb[0].mxu0 %v4395
      %v5230 = vpop.f32.mrb[0].mxu0
      %v5231 = vadd.f32 %v5126, %v5230
      %v5232 = vpop.f32.mrb[0].mxu0
      %v5233 = vpop.f32.mrb[0].mxu0
      %v5234 = vadd.f32 %v5129, %v5233
      %v5235 = vpop.f32.mrb[0].mxu0
      %5236 = vdwg.mxu0
      %v5237 = vmax.f32 %v5167, 0.0
      %v5238 = vmax.f32 %v5170, 0.0
      %v5239 = vmax.f32 %v5175, 0.0
      %v5240 = vmax.f32 %v5178, 0.0
      %v5241 = vmax.f32 %v5183, 0.0
      %v5242 = vmax.f32 %v5186, 0.0
      %v5243 = vmax.f32 %v5191, 0.0
      %v5244 = vmax.f32 %v5194, 0.0
      %v5245 = vmax.f32 %v5199, 0.0
      %v5246 = vmax.f32 %v5202, 0.0
      %v5247 = vmax.f32 %v5207, 0.0
      %v5248 = vmax.f32 %v5210, 0.0
      %v5249 = vmax.f32 %v5215, 0.0
      %v5250 = vmax.f32 %v5218, 0.0
      %v5251 = vmax.f32 %v5223, 0.0
      %v5252 = vmax.f32 %v5226, 0.0
      %v5253 = vmax.f32 %v5231, 0.0
      %v5254 = vmax.f32 %v5234, 0.0
      %5273 = vrot.lane.b32.xlu0 %v5237, 127
      %v5274 = vpop.permute.xlu0 %5273
      %5275 = vrot.lane.b32.xlu0 %v5238, 127
      %v5276 = vpop.permute.xlu0 %5275
      %5277 = vrot.lane.b32.xlu0 %v5239, 127
      %v5278 = vpop.permute.xlu0 %5277
      %5279 = vrot.lane.b32.xlu0 %v5240, 127
      %v5280 = vpop.permute.xlu0 %5279
      %5281 = vrot.lane.b32.xlu0 %v5241, 127
      %v5282 = vpop.permute.xlu0 %5281
      %5283 = vrot.lane.b32.xlu0 %v5242, 127
      %v5284 = vpop.permute.xlu0 %5283
      %5285 = vrot.lane.b32.xlu0 %v5243, 127
      %v5286 = vpop.permute.xlu0 %5285
      %5287 = vrot.lane.b32.xlu0 %v5244, 127
      %v5288 = vpop.permute.xlu0 %5287
      %5289 = vrot.lane.b32.xlu0 %v5245, 127
      %v5290 = vpop.permute.xlu0 %5289
      %5291 = vrot.lane.b32.xlu0 %v5246, 127
      %v5292 = vpop.permute.xlu0 %5291
      %5293 = vrot.lane.b32.xlu0 %v5247, 127
      %v5294 = vpop.permute.xlu0 %5293
      %5295 = vrot.lane.b32.xlu0 %v5248, 127
      %v5296 = vpop.permute.xlu0 %5295
      %5297 = vrot.lane.b32.xlu0 %v5249, 127
      %v5298 = vpop.permute.xlu0 %5297
      %5299 = vrot.lane.b32.xlu0 %v5250, 127
      %v5300 = vpop.permute.xlu0 %5299
      %5301 = vrot.lane.b32.xlu0 %v5251, 127
      %v5302 = vpop.permute.xlu0 %5301
      %5303 = vrot.lane.b32.xlu0 %v5252, 127
      %v5304 = vpop.permute.xlu0 %5303
      %5305 = vrot.lane.b32.xlu0 %v5253, 127
      %v5306 = vpop.permute.xlu0 %5305
      %5307 = vrot.lane.b32.xlu0 %v5254, 127
      %v5308 = vpop.permute.xlu0 %5307
      %5327 = vrot.lane.b32.xlu0 %v5237, 87
      %v5328 = vpop.permute.xlu0 %5327
      %5329 = vrot.lane.b32.xlu0 %v5238, 87
      %v5330 = vpop.permute.xlu0 %5329
      %5331 = vrot.lane.b32.xlu0 %v5239, 87
      %v5332 = vpop.permute.xlu0 %5331
      %5333 = vrot.lane.b32.xlu0 %v5240, 87
      %v5334 = vpop.permute.xlu0 %5333
      %5335 = vrot.lane.b32.xlu0 %v5241, 87
      %v5336 = vpop.permute.xlu0 %5335
      %5337 = vrot.lane.b32.xlu0 %v5242, 87
      %v5338 = vpop.permute.xlu0 %5337
      %5339 = vrot.lane.b32.xlu0 %v5243, 87
      %v5340 = vpop.permute.xlu0 %5339
      %5341 = vrot.lane.b32.xlu0 %v5244, 87
      %v5342 = vpop.permute.xlu0 %5341
      %5343 = vrot.lane.b32.xlu0 %v5245, 87
      %v5344 = vpop.permute.xlu0 %5343
      %5345 = vrot.lane.b32.xlu0 %v5246, 87
      %v5346 = vpop.permute.xlu0 %5345
      %5347 = vrot.lane.b32.xlu0 %v5247, 87
      %v5348 = vpop.permute.xlu0 %5347
      %5349 = vrot.lane.b32.xlu0 %v5248, 87
      %v5350 = vpop.permute.xlu0 %5349
      %5351 = vrot.lane.b32.xlu0 %v5249, 87
      %v5352 = vpop.permute.xlu0 %5351
      %5353 = vrot.lane.b32.xlu0 %v5250, 87
      %v5354 = vpop.permute.xlu0 %5353
      %5355 = vrot.lane.b32.xlu0 %v5251, 87
      %v5356 = vpop.permute.xlu0 %5355
      %5357 = vrot.lane.b32.xlu0 %v5252, 87
      %v5358 = vpop.permute.xlu0 %5357
      %5359 = vrot.lane.b32.xlu0 %v5253, 87
      %v5360 = vpop.permute.xlu0 %5359
      %5361 = vrot.lane.b32.xlu0 %v5254, 87
      %v5362 = vpop.permute.xlu0 %5361
      %v5381 = vsel %vm3203, %v5274, %v5328
      %v5382 = vsel %vm3203, %v5276, %v5330
      %v5383 = vsel %vm3203, %v5278, %v5332
      %v5384 = vsel %vm3203, %v5280, %v5334
      %v5385 = vsel %vm3203, %v5282, %v5336
      %v5386 = vsel %vm3203, %v5284, %v5338
      %v5387 = vsel %vm3203, %v5286, %v5340
      %v5388 = vsel %vm3203, %v5288, %v5342
      %v5389 = vsel %vm3203, %v5290, %v5344
      %v5390 = vsel %vm3203, %v5292, %v5346
      %v5391 = vsel %vm3203, %v5294, %v5348
      %v5392 = vsel %vm3203, %v5296, %v5350
      %v5393 = vsel %vm3203, %v5298, %v5352
      %v5394 = vsel %vm3203, %v5300, %v5354
      %v5395 = vsel %vm3203, %v5302, %v5356
      %v5396 = vsel %vm3203, %v5304, %v5358
      %v5397 = vsel %vm3203, %v5306, %v5360
      %v5398 = vsel %vm3203, %v5308, %v5362
      %v5399 = vmax.f32 %v5237, %v5381
      %v5400 = vmax.f32 %v5238, %v5382
      %v5401 = vmax.f32 %v5239, %v5383
      %v5402 = vmax.f32 %v5240, %v5384
      %v5403 = vmax.f32 %v5241, %v5385
      %v5404 = vmax.f32 %v5242, %v5386
      %v5405 = vmax.f32 %v5243, %v5387
      %v5406 = vmax.f32 %v5244, %v5388
      %v5407 = vmax.f32 %v5245, %v5389
      %v5408 = vmax.f32 %v5246, %v5390
      %v5409 = vmax.f32 %v5247, %v5391
      %v5410 = vmax.f32 %v5248, %v5392
      %v5411 = vmax.f32 %v5249, %v5393
      %v5412 = vmax.f32 %v5250, %v5394
      %v5413 = vmax.f32 %v5251, %v5395
      %v5414 = vmax.f32 %v5252, %v5396
      %v5415 = vmax.f32 %v5253, %v5397
      %v5416 = vmax.f32 %v5254, %v5398
      %5435 = vrot.lane.b32.xlu0 %v5399, 126
      %v5436 = vpop.permute.xlu0 %5435
      %5437 = vrot.lane.b32.xlu0 %v5400, 126
      %v5438 = vpop.permute.xlu0 %5437
      %5439 = vrot.lane.b32.xlu0 %v5401, 126
      %v5440 = vpop.permute.xlu0 %5439
      %5441 = vrot.lane.b32.xlu0 %v5402, 126
      %v5442 = vpop.permute.xlu0 %5441
      %5443 = vrot.lane.b32.xlu0 %v5403, 126
      %v5444 = vpop.permute.xlu0 %5443
      %5445 = vrot.lane.b32.xlu0 %v5404, 126
      %v5446 = vpop.permute.xlu0 %5445
      %5447 = vrot.lane.b32.xlu0 %v5405, 126
      %v5448 = vpop.permute.xlu0 %5447
      %5449 = vrot.lane.b32.xlu0 %v5406, 126
      %v5450 = vpop.permute.xlu0 %5449
      %5451 = vrot.lane.b32.xlu0 %v5407, 126
      %v5452 = vpop.permute.xlu0 %5451
      %5453 = vrot.lane.b32.xlu0 %v5408, 126
      %v5454 = vpop.permute.xlu0 %5453
      %5455 = vrot.lane.b32.xlu0 %v5409, 126
      %v5456 = vpop.permute.xlu0 %5455
      %5457 = vrot.lane.b32.xlu0 %v5410, 126
      %v5458 = vpop.permute.xlu0 %5457
      %5459 = vrot.lane.b32.xlu0 %v5411, 126
      %v5460 = vpop.permute.xlu0 %5459
      %5461 = vrot.lane.b32.xlu0 %v5412, 126
      %v5462 = vpop.permute.xlu0 %5461
      %5463 = vrot.lane.b32.xlu0 %v5413, 126
      %v5464 = vpop.permute.xlu0 %5463
      %5465 = vrot.lane.b32.xlu0 %v5414, 126
      %v5466 = vpop.permute.xlu0 %5465
      %5467 = vrot.lane.b32.xlu0 %v5415, 126
      %v5468 = vpop.permute.xlu0 %5467
      %5469 = vrot.lane.b32.xlu0 %v5416, 126
      %v5470 = vpop.permute.xlu0 %5469
      %5489 = vrot.lane.b32.xlu0 %v5399, 86
      %v5490 = vpop.permute.xlu0 %5489
      %5491 = vrot.lane.b32.xlu0 %v5400, 86
      %v5492 = vpop.permute.xlu0 %5491
      %5493 = vrot.lane.b32.xlu0 %v5401, 86
      %v5494 = vpop.permute.xlu0 %5493
      %5495 = vrot.lane.b32.xlu0 %v5402, 86
      %v5496 = vpop.permute.xlu0 %5495
      %5497 = vrot.lane.b32.xlu0 %v5403, 86
      %v5498 = vpop.permute.xlu0 %5497
      %5499 = vrot.lane.b32.xlu0 %v5404, 86
      %v5500 = vpop.permute.xlu0 %5499
      %5501 = vrot.lane.b32.xlu0 %v5405, 86
      %v5502 = vpop.permute.xlu0 %5501
      %5503 = vrot.lane.b32.xlu0 %v5406, 86
      %v5504 = vpop.permute.xlu0 %5503
      %5505 = vrot.lane.b32.xlu0 %v5407, 86
      %v5506 = vpop.permute.xlu0 %5505
      %5507 = vrot.lane.b32.xlu0 %v5408, 86
      %v5508 = vpop.permute.xlu0 %5507
      %5509 = vrot.lane.b32.xlu0 %v5409, 86
      %v5510 = vpop.permute.xlu0 %5509
      %5511 = vrot.lane.b32.xlu0 %v5410, 86
      %v5512 = vpop.permute.xlu0 %5511
      %5513 = vrot.lane.b32.xlu0 %v5411, 86
      %v5514 = vpop.permute.xlu0 %5513
      %5515 = vrot.lane.b32.xlu0 %v5412, 86
      %v5516 = vpop.permute.xlu0 %5515
      %5517 = vrot.lane.b32.xlu0 %v5413, 86
      %v5518 = vpop.permute.xlu0 %5517
      %5519 = vrot.lane.b32.xlu0 %v5414, 86
      %v5520 = vpop.permute.xlu0 %5519
      %5521 = vrot.lane.b32.xlu0 %v5415, 86
      %v5522 = vpop.permute.xlu0 %5521
      %5523 = vrot.lane.b32.xlu0 %v5416, 86
      %v5524 = vpop.permute.xlu0 %5523
      %v5543 = vsel %vm3276, %v5436, %v5490
      %v5544 = vsel %vm3276, %v5438, %v5492
      %v5545 = vsel %vm3276, %v5440, %v5494
      %v5546 = vsel %vm3276, %v5442, %v5496
      %v5547 = vsel %vm3276, %v5444, %v5498
      %v5548 = vsel %vm3276, %v5446, %v5500
      %v5549 = vsel %vm3276, %v5448, %v5502
      %v5550 = vsel %vm3276, %v5450, %v5504
      %v5551 = vsel %vm3276, %v5452, %v5506
      %v5552 = vsel %vm3276, %v5454, %v5508
      %v5553 = vsel %vm3276, %v5456, %v5510
      %v5554 = vsel %vm3276, %v5458, %v5512
      %v5555 = vsel %vm3276, %v5460, %v5514
      %v5556 = vsel %vm3276, %v5462, %v5516
      %v5557 = vsel %vm3276, %v5464, %v5518
      %v5558 = vsel %vm3276, %v5466, %v5520
      %v5559 = vsel %vm3276, %v5468, %v5522
      %v5560 = vsel %vm3276, %v5470, %v5524
      %v5561 = vmax.f32 %v5399, %v5543
      %v5562 = vmax.f32 %v5400, %v5544
      %v5563 = vmax.f32 %v5401, %v5545
      %v5564 = vmax.f32 %v5402, %v5546
      %v5565 = vmax.f32 %v5403, %v5547
      %v5566 = vmax.f32 %v5404, %v5548
      %v5567 = vmax.f32 %v5405, %v5549
      %v5568 = vmax.f32 %v5406, %v5550
      %v5569 = vmax.f32 %v5407, %v5551
      %v5570 = vmax.f32 %v5408, %v5552
      %v5571 = vmax.f32 %v5409, %v5553
      %v5572 = vmax.f32 %v5410, %v5554
      %v5573 = vmax.f32 %v5411, %v5555
      %v5574 = vmax.f32 %v5412, %v5556
      %v5575 = vmax.f32 %v5413, %v5557
      %v5576 = vmax.f32 %v5414, %v5558
      %v5577 = vmax.f32 %v5415, %v5559
      %v5578 = vmax.f32 %v5416, %v5560
      %5597 = vrot.lane.b32.xlu0 %v5561, 124
      %v5598 = vpop.permute.xlu0 %5597
      %5599 = vrot.lane.b32.xlu0 %v5562, 124
      %v5600 = vpop.permute.xlu0 %5599
      %5601 = vrot.lane.b32.xlu0 %v5563, 124
      %v5602 = vpop.permute.xlu0 %5601
      %5603 = vrot.lane.b32.xlu0 %v5564, 124
      %v5604 = vpop.permute.xlu0 %5603
      %5605 = vrot.lane.b32.xlu0 %v5565, 124
      %v5606 = vpop.permute.xlu0 %5605
      %5607 = vrot.lane.b32.xlu0 %v5566, 124
      %v5608 = vpop.permute.xlu0 %5607
      %5609 = vrot.lane.b32.xlu0 %v5567, 124
      %v5610 = vpop.permute.xlu0 %5609
      %5611 = vrot.lane.b32.xlu0 %v5568, 124
      %v5612 = vpop.permute.xlu0 %5611
      %5613 = vrot.lane.b32.xlu0 %v5569, 124
      %v5614 = vpop.permute.xlu0 %5613
      %5615 = vrot.lane.b32.xlu0 %v5570, 124
      %v5616 = vpop.permute.xlu0 %5615
      %5617 = vrot.lane.b32.xlu0 %v5571, 124
      %v5618 = vpop.permute.xlu0 %5617
      %5619 = vrot.lane.b32.xlu0 %v5572, 124
      %v5620 = vpop.permute.xlu0 %5619
      %5621 = vrot.lane.b32.xlu0 %v5573, 124
      %v5622 = vpop.permute.xlu0 %5621
      %5623 = vrot.lane.b32.xlu0 %v5574, 124
      %v5624 = vpop.permute.xlu0 %5623
      %5625 = vrot.lane.b32.xlu0 %v5575, 124
      %v5626 = vpop.permute.xlu0 %5625
      %5627 = vrot.lane.b32.xlu0 %v5576, 124
      %v5628 = vpop.permute.xlu0 %5627
      %5629 = vrot.lane.b32.xlu0 %v5577, 124
      %v5630 = vpop.permute.xlu0 %5629
      %5631 = vrot.lane.b32.xlu0 %v5578, 124
      %v5632 = vpop.permute.xlu0 %5631
      %5651 = vrot.lane.b32.xlu0 %v5561, 84
      %v5652 = vpop.permute.xlu0 %5651
      %5653 = vrot.lane.b32.xlu0 %v5562, 84
      %v5654 = vpop.permute.xlu0 %5653
      %5655 = vrot.lane.b32.xlu0 %v5563, 84
      %v5656 = vpop.permute.xlu0 %5655
      %5657 = vrot.lane.b32.xlu0 %v5564, 84
      %v5658 = vpop.permute.xlu0 %5657
      %5659 = vrot.lane.b32.xlu0 %v5565, 84
      %v5660 = vpop.permute.xlu0 %5659
      %5661 = vrot.lane.b32.xlu0 %v5566, 84
      %v5662 = vpop.permute.xlu0 %5661
      %5663 = vrot.lane.b32.xlu0 %v5567, 84
      %v5664 = vpop.permute.xlu0 %5663
      %5665 = vrot.lane.b32.xlu0 %v5568, 84
      %v5666 = vpop.permute.xlu0 %5665
      %5667 = vrot.lane.b32.xlu0 %v5569, 84
      %v5668 = vpop.permute.xlu0 %5667
      %5669 = vrot.lane.b32.xlu0 %v5570, 84
      %v5670 = vpop.permute.xlu0 %5669
      %5671 = vrot.lane.b32.xlu0 %v5571, 84
      %v5672 = vpop.permute.xlu0 %5671
      %5673 = vrot.lane.b32.xlu0 %v5572, 84
      %v5674 = vpop.permute.xlu0 %5673
      %5675 = vrot.lane.b32.xlu0 %v5573, 84
      %v5676 = vpop.permute.xlu0 %5675
      %5677 = vrot.lane.b32.xlu0 %v5574, 84
      %v5678 = vpop.permute.xlu0 %5677
      %5679 = vrot.lane.b32.xlu0 %v5575, 84
      %v5680 = vpop.permute.xlu0 %5679
      %5681 = vrot.lane.b32.xlu0 %v5576, 84
      %v5682 = vpop.permute.xlu0 %5681
      %5683 = vrot.lane.b32.xlu0 %v5577, 84
      %v5684 = vpop.permute.xlu0 %5683
      %5685 = vrot.lane.b32.xlu0 %v5578, 84
      %v5686 = vpop.permute.xlu0 %5685
      %v5705 = vsel %vm3422, %v5598, %v5652
      %v5706 = vsel %vm3422, %v5600, %v5654
      %v5707 = vsel %vm3422, %v5602, %v5656
      %v5708 = vsel %vm3422, %v5604, %v5658
      %v5709 = vsel %vm3422, %v5606, %v5660
      %v5710 = vsel %vm3422, %v5608, %v5662
      %v5711 = vsel %vm3422, %v5610, %v5664
      %v5712 = vsel %vm3422, %v5612, %v5666
      %v5713 = vsel %vm3422, %v5614, %v5668
      %v5714 = vsel %vm3422, %v5616, %v5670
      %v5715 = vsel %vm3422, %v5618, %v5672
      %v5716 = vsel %vm3422, %v5620, %v5674
      %v5717 = vsel %vm3422, %v5622, %v5676
      %v5718 = vsel %vm3422, %v5624, %v5678
      %v5719 = vsel %vm3422, %v5626, %v5680
      %v5720 = vsel %vm3422, %v5628, %v5682
      %v5721 = vsel %vm3422, %v5630, %v5684
      %v5722 = vsel %vm3422, %v5632, %v5686
      %v5723 = vmax.f32 %v5561, %v5705
      %v5724 = vmax.f32 %v5562, %v5706
      %v5725 = vmax.f32 %v5563, %v5707
      %v5726 = vmax.f32 %v5564, %v5708
      %v5727 = vmax.f32 %v5565, %v5709
      %v5728 = vmax.f32 %v5566, %v5710
      %v5729 = vmax.f32 %v5567, %v5711
      %v5730 = vmax.f32 %v5568, %v5712
      %v5731 = vmax.f32 %v5569, %v5713
      %v5732 = vmax.f32 %v5570, %v5714
      %v5733 = vmax.f32 %v5571, %v5715
      %v5734 = vmax.f32 %v5572, %v5716
      %v5735 = vmax.f32 %v5573, %v5717
      %v5736 = vmax.f32 %v5574, %v5718
      %v5737 = vmax.f32 %v5575, %v5719
      %v5738 = vmax.f32 %v5576, %v5720
      %v5739 = vmax.f32 %v5577, %v5721
      %v5740 = vmax.f32 %v5578, %v5722
      %5759 = vrot.lane.b32.xlu0 %v5723, 120
      %v5760 = vpop.permute.xlu0 %5759
      %5761 = vrot.lane.b32.xlu0 %v5724, 120
      %v5762 = vpop.permute.xlu0 %5761
      %5763 = vrot.lane.b32.xlu0 %v5725, 120
      %v5764 = vpop.permute.xlu0 %5763
      %5765 = vrot.lane.b32.xlu0 %v5726, 120
      %v5766 = vpop.permute.xlu0 %5765
      %5767 = vrot.lane.b32.xlu0 %v5727, 120
      %v5768 = vpop.permute.xlu0 %5767
      %5769 = vrot.lane.b32.xlu0 %v5728, 120
      %v5770 = vpop.permute.xlu0 %5769
      %5771 = vrot.lane.b32.xlu0 %v5729, 120
      %v5772 = vpop.permute.xlu0 %5771
      %5773 = vrot.lane.b32.xlu0 %v5730, 120
      %v5774 = vpop.permute.xlu0 %5773
      %5775 = vrot.lane.b32.xlu0 %v5731, 120
      %v5776 = vpop.permute.xlu0 %5775
      %5777 = vrot.lane.b32.xlu0 %v5732, 120
      %v5778 = vpop.permute.xlu0 %5777
      %5779 = vrot.lane.b32.xlu0 %v5733, 120
      %v5780 = vpop.permute.xlu0 %5779
      %5781 = vrot.lane.b32.xlu0 %v5734, 120
      %v5782 = vpop.permute.xlu0 %5781
      %5783 = vrot.lane.b32.xlu0 %v5735, 120
      %v5784 = vpop.permute.xlu0 %5783
      %5785 = vrot.lane.b32.xlu0 %v5736, 120
      %v5786 = vpop.permute.xlu0 %5785
      %5787 = vrot.lane.b32.xlu0 %v5737, 120
      %v5788 = vpop.permute.xlu0 %5787
      %5789 = vrot.lane.b32.xlu0 %v5738, 120
      %v5790 = vpop.permute.xlu0 %5789
      %5791 = vrot.lane.b32.xlu0 %v5739, 120
      %v5792 = vpop.permute.xlu0 %5791
      %5793 = vrot.lane.b32.xlu0 %v5740, 120
      %v5794 = vpop.permute.xlu0 %5793
      %5813 = vrot.lane.b32.xlu0 %v5723, 80
      %v5814 = vpop.permute.xlu0 %5813
      %5815 = vrot.lane.b32.xlu0 %v5724, 80
      %v5816 = vpop.permute.xlu0 %5815
      %5817 = vrot.lane.b32.xlu0 %v5725, 80
      %v5818 = vpop.permute.xlu0 %5817
      %5819 = vrot.lane.b32.xlu0 %v5726, 80
      %v5820 = vpop.permute.xlu0 %5819
      %5821 = vrot.lane.b32.xlu0 %v5727, 80
      %v5822 = vpop.permute.xlu0 %5821
      %5823 = vrot.lane.b32.xlu0 %v5728, 80
      %v5824 = vpop.permute.xlu0 %5823
      %5825 = vrot.lane.b32.xlu0 %v5729, 80
      %v5826 = vpop.permute.xlu0 %5825
      %5827 = vrot.lane.b32.xlu0 %v5730, 80
      %v5828 = vpop.permute.xlu0 %5827
      %5829 = vrot.lane.b32.xlu0 %v5731, 80
      %v5830 = vpop.permute.xlu0 %5829
      %5831 = vrot.lane.b32.xlu0 %v5732, 80
      %v5832 = vpop.permute.xlu0 %5831
      %5833 = vrot.lane.b32.xlu0 %v5733, 80
      %v5834 = vpop.permute.xlu0 %5833
      %5835 = vrot.lane.b32.xlu0 %v5734, 80
      %v5836 = vpop.permute.xlu0 %5835
      %5837 = vrot.lane.b32.xlu0 %v5735, 80
      %v5838 = vpop.permute.xlu0 %5837
      %5839 = vrot.lane.b32.xlu0 %v5736, 80
      %v5840 = vpop.permute.xlu0 %5839
      %5841 = vrot.lane.b32.xlu0 %v5737, 80
      %v5842 = vpop.permute.xlu0 %5841
      %5843 = vrot.lane.b32.xlu0 %v5738, 80
      %v5844 = vpop.permute.xlu0 %5843
      %5845 = vrot.lane.b32.xlu0 %v5739, 80
      %v5846 = vpop.permute.xlu0 %5845
      %5847 = vrot.lane.b32.xlu0 %v5740, 80
      %v5848 = vpop.permute.xlu0 %5847
      %v5867 = vsel %vm4369, %v5760, %v5814
      %v5868 = vsel %vm4369, %v5762, %v5816
      %v5869 = vsel %vm4369, %v5764, %v5818
      %v5870 = vsel %vm4369, %v5766, %v5820
      %v5871 = vsel %vm4369, %v5768, %v5822
      %v5872 = vsel %vm4369, %v5770, %v5824
      %v5873 = vsel %vm4369, %v5772, %v5826
      %v5874 = vsel %vm4369, %v5774, %v5828
      %v5875 = vsel %vm4369, %v5776, %v5830
      %v5876 = vsel %vm4369, %v5778, %v5832
      %v5877 = vsel %vm4369, %v5780, %v5834
      %v5878 = vsel %vm4369, %v5782, %v5836
      %v5879 = vsel %vm4369, %v5784, %v5838
      %v5880 = vsel %vm4369, %v5786, %v5840
      %v5881 = vsel %vm4369, %v5788, %v5842
      %v5882 = vsel %vm4369, %v5790, %v5844
      %v5883 = vsel %vm4369, %v5792, %v5846
      %v5884 = vsel %vm4369, %v5794, %v5848
      %v5885 = vmax.f32 %v5723, %v5867
      %v5886 = vmax.f32 %v5724, %v5868
      %v5887 = vmax.f32 %v5725, %v5869
      %v5888 = vmax.f32 %v5726, %v5870
      %v5889 = vmax.f32 %v5727, %v5871
      %v5890 = vmax.f32 %v5728, %v5872
      %v5891 = vmax.f32 %v5729, %v5873
      %v5892 = vmax.f32 %v5730, %v5874
      %v5893 = vmax.f32 %v5731, %v5875
      %v5894 = vmax.f32 %v5732, %v5876
      %v5895 = vmax.f32 %v5733, %v5877
      %v5896 = vmax.f32 %v5734, %v5878
      %v5897 = vmax.f32 %v5735, %v5879
      %v5898 = vmax.f32 %v5736, %v5880
      %v5899 = vmax.f32 %v5737, %v5881
      %v5900 = vmax.f32 %v5738, %v5882
      %v5901 = vmax.f32 %v5739, %v5883
      %v5902 = vmax.f32 %v5740, %v5884
      %5921 = vrot.lane.b32.xlu0 %v5885, 119
      %v5922 = vpop.permute.xlu0 %5921
      %5923 = vrot.lane.b32.xlu0 %v5886, 119
      %v5924 = vpop.permute.xlu0 %5923
      %5925 = vrot.lane.b32.xlu0 %v5887, 119
      %v5926 = vpop.permute.xlu0 %5925
      %5927 = vrot.lane.b32.xlu0 %v5888, 119
      %v5928 = vpop.permute.xlu0 %5927
      %5929 = vrot.lane.b32.xlu0 %v5889, 119
      %v5930 = vpop.permute.xlu0 %5929
      %5931 = vrot.lane.b32.xlu0 %v5890, 119
      %v5932 = vpop.permute.xlu0 %5931
      %5933 = vrot.lane.b32.xlu0 %v5891, 119
      %v5934 = vpop.permute.xlu0 %5933
      %5935 = vrot.lane.b32.xlu0 %v5892, 119
      %v5936 = vpop.permute.xlu0 %5935
      %5937 = vrot.lane.b32.xlu0 %v5893, 119
      %v5938 = vpop.permute.xlu0 %5937
      %5939 = vrot.lane.b32.xlu0 %v5894, 119
      %v5940 = vpop.permute.xlu0 %5939
      %5941 = vrot.lane.b32.xlu0 %v5895, 119
      %v5942 = vpop.permute.xlu0 %5941
      %5943 = vrot.lane.b32.xlu0 %v5896, 119
      %v5944 = vpop.permute.xlu0 %5943
      %5945 = vrot.lane.b32.xlu0 %v5897, 119
      %v5946 = vpop.permute.xlu0 %5945
      %5947 = vrot.lane.b32.xlu0 %v5898, 119
      %v5948 = vpop.permute.xlu0 %5947
      %5949 = vrot.lane.b32.xlu0 %v5899, 119
      %v5950 = vpop.permute.xlu0 %5949
      %5951 = vrot.lane.b32.xlu0 %v5900, 119
      %v5952 = vpop.permute.xlu0 %5951
      %5953 = vrot.lane.b32.xlu0 %v5901, 119
      %v5954 = vpop.permute.xlu0 %5953
      %5955 = vrot.lane.b32.xlu0 %v5902, 119
      %v5956 = vpop.permute.xlu0 %5955
      %5975 = vrot.lane.b32.xlu0 %v5885, 79
      %v5976 = vpop.permute.xlu0 %5975
      %5977 = vrot.lane.b32.xlu0 %v5886, 79
      %v5978 = vpop.permute.xlu0 %5977
      %5979 = vrot.lane.b32.xlu0 %v5887, 79
      %v5980 = vpop.permute.xlu0 %5979
      %5981 = vrot.lane.b32.xlu0 %v5888, 79
      %v5982 = vpop.permute.xlu0 %5981
      %5983 = vrot.lane.b32.xlu0 %v5889, 79
      %v5984 = vpop.permute.xlu0 %5983
      %5985 = vrot.lane.b32.xlu0 %v5890, 79
      %v5986 = vpop.permute.xlu0 %5985
      %5987 = vrot.lane.b32.xlu0 %v5891, 79
      %v5988 = vpop.permute.xlu0 %5987
      %5989 = vrot.lane.b32.xlu0 %v5892, 79
      %v5990 = vpop.permute.xlu0 %5989
      %5991 = vrot.lane.b32.xlu0 %v5893, 79
      %v5992 = vpop.permute.xlu0 %5991
      %5993 = vrot.lane.b32.xlu0 %v5894, 79
      %v5994 = vpop.permute.xlu0 %5993
      %5995 = vrot.lane.b32.xlu0 %v5895, 79
      %v5996 = vpop.permute.xlu0 %5995
      %5997 = vrot.lane.b32.xlu0 %v5896, 79
      %v5998 = vpop.permute.xlu0 %5997
      %5999 = vrot.lane.b32.xlu0 %v5897, 79
      %v6000 = vpop.permute.xlu0 %5999
      %6001 = vrot.lane.b32.xlu0 %v5898, 79
      %v6002 = vpop.permute.xlu0 %6001
      %6003 = vrot.lane.b32.xlu0 %v5899, 79
      %v6004 = vpop.permute.xlu0 %6003
      %6005 = vrot.lane.b32.xlu0 %v5900, 79
      %v6006 = vpop.permute.xlu0 %6005
      %6007 = vrot.lane.b32.xlu0 %v5901, 79
      %v6008 = vpop.permute.xlu0 %6007
      %6009 = vrot.lane.b32.xlu0 %v5902, 79
      %v6010 = vpop.permute.xlu0 %6009
      %vm6029 = vcmask 646144
      %v6030 = vsel %vm6029, %v5922, %v5976
      %v6031 = vsel %vm6029, %v5924, %v5978
      %v6032 = vsel %vm6029, %v5926, %v5980
      %v6033 = vsel %vm6029, %v5928, %v5982
      %v6034 = vsel %vm6029, %v5930, %v5984
      %v6035 = vsel %vm6029, %v5932, %v5986
      %v6036 = vsel %vm6029, %v5934, %v5988
      %v6037 = vsel %vm6029, %v5936, %v5990
      %v6038 = vsel %vm6029, %v5938, %v5992
      %v6039 = vsel %vm6029, %v5940, %v5994
      %v6040 = vsel %vm6029, %v5942, %v5996
      %v6041 = vsel %vm6029, %v5944, %v5998
      %v6042 = vsel %vm6029, %v5946, %v6000
      %v6043 = vsel %vm6029, %v5948, %v6002
      %v6044 = vsel %vm6029, %v5950, %v6004
      %v6045 = vsel %vm6029, %v5952, %v6006
      %v6046 = vsel %vm6029, %v5954, %v6008
      %v6047 = vsel %vm6029, %v5956, %v6010
      %v6048 = vmax.f32 %v5885, %v6030
      %v6049 = vmax.f32 %v5886, %v6031
      %v6050 = vmax.f32 %v5887, %v6032
      %v6051 = vmax.f32 %v5888, %v6033
      %v6052 = vmax.f32 %v5889, %v6034
      %v6053 = vmax.f32 %v5890, %v6035
      %v6054 = vmax.f32 %v5891, %v6036
      %v6055 = vmax.f32 %v5892, %v6037
      %v6056 = vmax.f32 %v5893, %v6038
      %v6057 = vmax.f32 %v5894, %v6039
      %v6058 = vmax.f32 %v5895, %v6040
      %v6059 = vmax.f32 %v5896, %v6041
      %v6060 = vmax.f32 %v5897, %v6042
      %v6061 = vmax.f32 %v5898, %v6043
      %v6062 = vmax.f32 %v5899, %v6044
      %v6063 = vmax.f32 %v5900, %v6045
      %v6064 = vmax.f32 %v5901, %v6046
      %v6065 = vmax.f32 %v5902, %v6047
      %v6066 = vmul.f32 %v6048, %v6048
      %v6067 = vmul.f32 %v6049, %v6049
      %v6068 = vmul.f32 %v6050, %v6050
      %v6069 = vmul.f32 %v6051, %v6051
      %v6070 = vmul.f32 %v6052, %v6052
      %v6071 = vmul.f32 %v6053, %v6053
      %v6072 = vmul.f32 %v6054, %v6054
      %v6073 = vmul.f32 %v6055, %v6055
      %v6074 = vmul.f32 %v6056, %v6056
      %v6075 = vmul.f32 %v6057, %v6057
      %v6076 = vmul.f32 %v6058, %v6058
      %v6077 = vmul.f32 %v6059, %v6059
      %v6078 = vmul.f32 %v6060, %v6060
      %v6079 = vmul.f32 %v6061, %v6061
      %v6080 = vmul.f32 %v6062, %v6062
      %v6081 = vmul.f32 %v6063, %v6063
      %v6082 = vmul.f32 %v6064, %v6064
      %v6083 = vmul.f32 %v6065, %v6065
      %6084 = vmatprep.subr.mxu0 0.0
      %6085 = vmatpush1.msra.mxu0 %v6066
      %6086 = vmatprep.subr.mxu0 0.0
      %6087 = vmatpush1.msra.mxu0 %v6067
      %6088 = vmatprep.subr.mxu0 0.0
      %6089 = vmatpush1.msra.mxu0 %v6068
      %6090 = vmatprep.subr.mxu0 0.0
      %6091 = vmatpush1.msra.mxu0 %v6069
      %6092 = vmatprep.subr.mxu0 0.0
      %6093 = vmatpush1.msra.mxu0 %v6070
      %6094 = vmatprep.subr.mxu0 0.0
      %6095 = vmatpush1.msra.mxu0 %v6071
      %6096 = vmatprep.subr.mxu0 0.0
      %6097 = vmatpush1.msra.mxu0 %v6072
      %6098 = vmatprep.subr.mxu0 0.0
      %6099 = vmatpush1.msra.mxu0 %v6073
      %6100 = vmatprep.subr.mxu0 0.0
      %6101 = vmatpush1.msra.mxu0 %v6074
      %6102 = vmatprep.subr.mxu0 0.0
      %6103 = vmatpush1.msra.mxu0 %v6075
      %6104 = vmatprep.subr.mxu0 0.0
      %6105 = vmatpush1.msra.mxu0 %v6076
      %6106 = vmatprep.subr.mxu0 0.0
      %6107 = vmatpush1.msra.mxu0 %v6077
      %6108 = vmatprep.subr.mxu0 0.0
      %6109 = vmatpush1.msra.mxu0 %v6078
      %6110 = vmatprep.subr.mxu0 0.0
      %6111 = vmatpush1.msra.mxu0 %v6079
      %6112 = vmatprep.subr.mxu0 0.0
      %6113 = vmatpush1.msra.mxu0 %v6080
      %6114 = vmatprep.subr.mxu0 0.0
      %6115 = vmatpush1.msra.mxu0 %v6081
      %6116 = vmatprep.subr.mxu0 0.0
      %6117 = vmatpush1.msra.mxu0 %v6082
      %6118 = vmatprep.subr.mxu0 0.0
      %6119 = vmatpush1.msra.mxu0 %v6083
      %6120 = vmatprep.subr.mxu0 0.0
      %6121 = vmatpush1.msra.mxu0 0.0
      %6122 = vmatprep.subr.mxu0 0.0
      %6123 = vmatpush1.msra.mxu0 0.0
      %6124 = vmatprep.subr.mxu0 0.0
      %6125 = vmatpush1.msra.mxu0 0.0
      %6126 = vmatprep.subr.mxu0 0.0
      %6127 = vmatpush1.msra.mxu0 0.0
      %6128 = vmatprep.subr.mxu0 0.0
      %6129 = vmatpush1.msra.mxu0 0.0
      %6130 = vmatprep.subr.mxu0 0.0
      %6131 = vmatpush1.msra.mxu0 0.0
      %6132 = vmatprep.subr.mxu0 0.0
      %6133 = vmatpush1.msra.mxu0 0.0
      %6134 = vmatprep.subr.mxu0 0.0
      %6135 = vmatpush1.msra.mxu0 0.0
      %6136 = vmatprep.subr.mxu0 0.0
      %6137 = vmatpush1.msra.mxu0 0.0
      %6138 = vmatprep.subr.mxu0 0.0
      %6139 = vmatpush1.msra.mxu0 0.0
      %6140 = vmatprep.subr.mxu0 0.0
      %6141 = vmatpush1.msra.mxu0 0.0
      %6142 = vmatprep.subr.mxu0 0.0
      %6143 = vmatpush1.msra.mxu0 0.0
      %6144 = vmatprep.subr.mxu0 0.0
      %6145 = vmatpush1.msra.mxu0 0.0
      %6146 = vmatprep.subr.mxu0 0.0
      %6147 = vmatpush1.msra.mxu0 0.0
      %6148 = vmatprep.mubr.f32.mxu0 %v2142
      %6149 = vmatmul.mubr.f32.gmra.mrb[0].mxu0 %v345
      %v6150 = vpop.f32.mrb[0].mxu0
      %v6151 = vadd.f32 0.0, %v6150
      %v6152 = vpop.f32.mrb[0].mxu0
      %6153 = vdwg.mxu0
      %v6154 = vmax.f32 %v6151, 1e-24
      %v6155 = vrsqrt.pop %v6154
      %v6157 = vsel %vm494, %v6155, 0
      %6159 = vmatprep.subr.mxu0 0.0
      %6160 = vmatpush1.msra.mxu0 %v6157
      %6161 = vmatprep.subr.mxu0 0.0
      %6162 = vmatpush1.msra.mxu0 0.0
      %6163 = vmatprep.subr.mxu0 0.0
      %6164 = vmatpush1.msra.mxu0 0.0
      %6165 = vmatprep.subr.mxu0 0.0
      %6166 = vmatpush1.msra.mxu0 0.0
      %6167 = vmatprep.subr.mxu0 0.0
      %6168 = vmatpush1.msra.mxu0 0.0
      %6169 = vmatprep.subr.mxu0 0.0
      %6170 = vmatpush1.msra.mxu0 0.0
      %6171 = vmatprep.subr.mxu0 0.0
      %6172 = vmatpush1.msra.mxu0 0.0
      %6173 = vmatprep.subr.mxu0 0.0
      %6174 = vmatpush1.msra.mxu0 0.0
      %6175 = vmatprep.subr.mxu0 0.0
      %6176 = vmatpush1.msra.mxu0 0.0
      %6177 = vmatprep.subr.mxu0 0.0
      %6178 = vmatpush1.msra.mxu0 0.0
      %6179 = vmatprep.subr.mxu0 0.0
      %6180 = vmatpush1.msra.mxu0 0.0
      %6181 = vmatprep.subr.mxu0 0.0
      %6182 = vmatpush1.msra.mxu0 0.0
      %6183 = vmatprep.subr.mxu0 0.0
      %6184 = vmatpush1.msra.mxu0 0.0
      %6185 = vmatprep.subr.mxu0 0.0
      %6186 = vmatpush1.msra.mxu0 0.0
      %6187 = vmatprep.subr.mxu0 0.0
      %6188 = vmatpush1.msra.mxu0 0.0
      %6189 = vmatprep.subr.mxu0 0.0
      %6190 = vmatpush1.msra.mxu0 0.0
      %6191 = vmatprep.subr.mxu0 0.0
      %6192 = vmatpush1.msra.mxu0 0.0
      %6193 = vmatprep.subr.mxu0 0.0
      %6194 = vmatpush1.msra.mxu0 0.0
      %6195 = vmatprep.subr.mxu0 0.0
      %6196 = vmatpush1.msra.mxu0 0.0
      %6197 = vmatprep.subr.mxu0 0.0
      %6198 = vmatpush1.msra.mxu0 0.0
      %6199 = vmatprep.subr.mxu0 0.0
      %6200 = vmatpush1.msra.mxu0 0.0
      %6201 = vmatprep.subr.mxu0 0.0
      %6202 = vmatpush1.msra.mxu0 0.0
      %6203 = vmatprep.subr.mxu0 0.0
      %6204 = vmatpush1.msra.mxu0 0.0
      %6205 = vmatprep.subr.mxu0 0.0
      %6206 = vmatpush1.msra.mxu0 0.0
      %6207 = vmatprep.subr.mxu0 0.0
      %6208 = vmatpush1.msra.mxu0 0.0
      %6209 = vmatprep.subr.mxu0 0.0
      %6210 = vmatpush1.msra.mxu0 0.0
      %6211 = vmatprep.subr.mxu0 0.0
      %6212 = vmatpush1.msra.mxu0 0.0
      %6213 = vmatprep.subr.mxu0 0.0
      %6214 = vmatpush1.msra.mxu0 0.0
      %6215 = vmatprep.subr.mxu0 0.0
      %6216 = vmatpush1.msra.mxu0 0.0
      %6217 = vmatprep.subr.mxu0 0.0
      %6218 = vmatpush1.msra.mxu0 0.0
      %6219 = vmatprep.subr.mxu0 0.0
      %6220 = vmatpush1.msra.mxu0 0.0
      %6221 = vmatprep.subr.mxu0 0.0
      %6222 = vmatpush1.msra.mxu0 0.0
      %6223 = vmatprep.mubr.f32.mxu0 0.0
      %6224 = vmatmul.mubr.f32.gmra.mrb[0].mxu0 %v2220
      %v6225 = vpop.f32.mrb[0].mxu0
      %v6226 = vadd.f32 0.0, %v6225
      %v6227 = vpop.f32.mrb[0].mxu0
      %6228 = vmatprep.mubr.f32.mxu0 0.0
      %6229 = vmatmul.mubr.f32.gmra.mrb[0].mxu0 %v2223
      %v6230 = vpop.f32.mrb[0].mxu0
      %v6231 = vadd.f32 0.0, %v6230
      %v6232 = vpop.f32.mrb[0].mxu0
      %6233 = vmatprep.mubr.f32.mxu0 0.0
      %6234 = vmatmul.mubr.f32.gmra.mrb[0].mxu0 %v2226
      %v6235 = vpop.f32.mrb[0].mxu0
      %v6236 = vadd.f32 0.0, %v6235
      %v6237 = vpop.f32.mrb[0].mxu0
      %6238 = vmatprep.mubr.f32.mxu0 0.0
      %6239 = vmatmul.mubr.f32.gmra.mrb[0].mxu0 %v2229
      %v6240 = vpop.f32.mrb[0].mxu0
      %v6241 = vadd.f32 0.0, %v6240
      %v6242 = vpop.f32.mrb[0].mxu0
      %6243 = vmatprep.mubr.f32.mxu0 0.0
      %6244 = vmatmul.mubr.f32.gmra.mrb[0].mxu0 %v2232
      %v6245 = vpop.f32.mrb[0].mxu0
      %v6246 = vadd.f32 0.0, %v6245
      %v6247 = vpop.f32.mrb[0].mxu0
      %6248 = vmatprep.mubr.f32.mxu0 0.0
      %6249 = vmatmul.mubr.f32.gmra.mrb[0].mxu0 %v2235
      %v6250 = vpop.f32.mrb[0].mxu0
      %v6251 = vadd.f32 0.0, %v6250
      %v6252 = vpop.f32.mrb[0].mxu0
      %6253 = vmatprep.mubr.f32.mxu0 0.0
      %6254 = vmatmul.mubr.f32.gmra.mrb[0].mxu0 %v2238
      %v6255 = vpop.f32.mrb[0].mxu0
      %v6256 = vadd.f32 0.0, %v6255
      %v6257 = vpop.f32.mrb[0].mxu0
      %6258 = vmatprep.mubr.f32.mxu0 0.0
      %6259 = vmatmul.mubr.f32.gmra.mrb[0].mxu0 %v2241
      %v6260 = vpop.f32.mrb[0].mxu0
      %v6261 = vadd.f32 0.0, %v6260
      %v6262 = vpop.f32.mrb[0].mxu0
      %6263 = vmatprep.mubr.f32.mxu0 0.0
      %6264 = vmatmul.mubr.f32.gmra.mrb[0].mxu0 %v2244
      %v6265 = vpop.f32.mrb[0].mxu0
      %v6266 = vadd.f32 0.0, %v6265
      %v6267 = vpop.f32.mrb[0].mxu0
      %6268 = vmatprep.mubr.f32.mxu0 0.0
      %6269 = vmatmul.mubr.f32.gmra.mrb[0].mxu0 %v2247
      %v6270 = vpop.f32.mrb[0].mxu0
      %v6271 = vadd.f32 0.0, %v6270
      %v6272 = vpop.f32.mrb[0].mxu0
      %6273 = vmatprep.mubr.f32.mxu0 0.0
      %6274 = vmatmul.mubr.f32.gmra.mrb[0].mxu0 %v2250
      %v6275 = vpop.f32.mrb[0].mxu0
      %v6276 = vadd.f32 0.0, %v6275
      %v6277 = vpop.f32.mrb[0].mxu0
      %6278 = vmatprep.mubr.f32.mxu0 0.0
      %6279 = vmatmul.mubr.f32.gmra.mrb[0].mxu0 %v2253
      %v6280 = vpop.f32.mrb[0].mxu0
      %v6281 = vadd.f32 0.0, %v6280
      %v6282 = vpop.f32.mrb[0].mxu0
      %6283 = vmatprep.mubr.f32.mxu0 0.0
      %6284 = vmatmul.mubr.f32.gmra.mrb[0].mxu0 %v2256
      %v6285 = vpop.f32.mrb[0].mxu0
      %v6286 = vadd.f32 0.0, %v6285
      %v6287 = vpop.f32.mrb[0].mxu0
      %6288 = vmatprep.mubr.f32.mxu0 0.0
      %6289 = vmatmul.mubr.f32.gmra.mrb[0].mxu0 %v2259
      %v6290 = vpop.f32.mrb[0].mxu0
      %v6291 = vadd.f32 0.0, %v6290
      %v6292 = vpop.f32.mrb[0].mxu0
      %6293 = vmatprep.mubr.f32.mxu0 0.0
      %6294 = vmatmul.mubr.f32.gmra.mrb[0].mxu0 %v2262
      %v6295 = vpop.f32.mrb[0].mxu0
      %v6296 = vadd.f32 0.0, %v6295
      %v6297 = vpop.f32.mrb[0].mxu0
      %6298 = vmatprep.mubr.f32.mxu0 0.0
      %6299 = vmatmul.mubr.f32.gmra.mrb[0].mxu0 %v2265
      %v6300 = vpop.f32.mrb[0].mxu0
      %v6301 = vadd.f32 0.0, %v6300
      %v6302 = vpop.f32.mrb[0].mxu0
      %6303 = vmatprep.mubr.f32.mxu0 0.0
      %6304 = vmatmul.mubr.f32.gmra.mrb[0].mxu0 %v2268
      %v6305 = vpop.f32.mrb[0].mxu0
      %v6306 = vadd.f32 0.0, %v6305
      %v6307 = vpop.f32.mrb[0].mxu0
      %6308 = vmatprep.mubr.f32.mxu0 0.0
      %6309 = vmatmul.mubr.f32.gmra.mrb[0].mxu0 %v2271
      %v6310 = vpop.f32.mrb[0].mxu0
      %v6311 = vadd.f32 0.0, %v6310
      %v6312 = vpop.f32.mrb[0].mxu0
      %6313 = vdwg.mxu0
      %v6314 = vmul.f32 %v6048, %v6226
      %v6315 = vmul.f32 %v6049, %v6231
      %v6316 = vmul.f32 %v6050, %v6236
      %v6317 = vmul.f32 %v6051, %v6241
      %v6318 = vmul.f32 %v6052, %v6246
      %v6319 = vmul.f32 %v6053, %v6251
      %v6320 = vmul.f32 %v6054, %v6256
      %v6321 = vmul.f32 %v6055, %v6261
      %v6322 = vmul.f32 %v6056, %v6266
      %v6323 = vmul.f32 %v6057, %v6271
      %v6324 = vmul.f32 %v6058, %v6276
      %v6325 = vmul.f32 %v6059, %v6281
      %v6326 = vmul.f32 %v6060, %v6286
      %v6327 = vmul.f32 %v6061, %v6291
      %v6328 = vmul.f32 %v6062, %v6296
      %v6329 = vmul.f32 %v6063, %v6301
      %v6330 = vmul.f32 %v6064, %v6306
      %v6331 = vmul.f32 %v6065, %v6311
      %6350 = vrot.lane.b32.xlu0 %v6314, 122
      %v6351 = vpop.permute.xlu0 %6350
      %6352 = vrot.lane.b32.xlu0 %v6315, 122
      %v6353 = vpop.permute.xlu0 %6352
      %6354 = vrot.lane.b32.xlu0 %v6316, 122
      %v6355 = vpop.permute.xlu0 %6354
      %6356 = vrot.lane.b32.xlu0 %v6317, 122
      %v6357 = vpop.permute.xlu0 %6356
      %6358 = vrot.lane.b32.xlu0 %v6318, 122
      %v6359 = vpop.permute.xlu0 %6358
      %6360 = vrot.lane.b32.xlu0 %v6319, 122
      %v6361 = vpop.permute.xlu0 %6360
      %6362 = vrot.lane.b32.xlu0 %v6320, 122
      %v6363 = vpop.permute.xlu0 %6362
      %6364 = vrot.lane.b32.xlu0 %v6321, 122
      %v6365 = vpop.permute.xlu0 %6364
      %6366 = vrot.lane.b32.xlu0 %v6322, 122
      %v6367 = vpop.permute.xlu0 %6366
      %6368 = vrot.lane.b32.xlu0 %v6323, 122
      %v6369 = vpop.permute.xlu0 %6368
      %6370 = vrot.lane.b32.xlu0 %v6324, 122
      %v6371 = vpop.permute.xlu0 %6370
      %6372 = vrot.lane.b32.xlu0 %v6325, 122
      %v6373 = vpop.permute.xlu0 %6372
      %6374 = vrot.lane.b32.xlu0 %v6326, 122
      %v6375 = vpop.permute.xlu0 %6374
      %6376 = vrot.lane.b32.xlu0 %v6327, 122
      %v6377 = vpop.permute.xlu0 %6376
      %6378 = vrot.lane.b32.xlu0 %v6328, 122
      %v6379 = vpop.permute.xlu0 %6378
      %6380 = vrot.lane.b32.xlu0 %v6329, 122
      %v6381 = vpop.permute.xlu0 %6380
      %6382 = vrot.lane.b32.xlu0 %v6330, 122
      %v6383 = vpop.permute.xlu0 %6382
      %6384 = vrot.lane.b32.xlu0 %v6331, 122
      %v6385 = vpop.permute.xlu0 %6384
      %vm6404 = vcmask 64512
      %6405 = vst.msk [vmem:[%s282] sm:$0xff] %vm6404, %v6351
      %6406 = vst.msk [vmem:[%s282 + $0x8] sm:$0xff] %vm6404, %v6353
      %6407 = vst.msk [vmem:[%s282 + $0x10] sm:$0xff] %vm6404, %v6355
      %6408 = vst.msk [vmem:[%s282 + $0x18] sm:$0xff] %vm6404, %v6357
      %6409 = vst.msk [vmem:[%s282 + $0x20] sm:$0xff] %vm6404, %v6359
      %6410 = vst.msk [vmem:[%s282 + $0x28] sm:$0xff] %vm6404, %v6361
      %6411 = vst.msk [vmem:[%s282 + $0x30] sm:$0xff] %vm6404, %v6363
      %6412 = vst.msk [vmem:[%s282 + $0x38] sm:$0xff] %vm6404, %v6365
      %6413 = vst.msk [vmem:[%s282 + $0x40] sm:$0xff] %vm6404, %v6367
      %6414 = vst.msk [vmem:[%s282 + $0x48] sm:$0xff] %vm6404, %v6369
      %6415 = vst.msk [vmem:[%s282 + $0x50] sm:$0xff] %vm6404, %v6371
      %6416 = vst.msk [vmem:[%s282 + $0x58] sm:$0xff] %vm6404, %v6373
      %6417 = vst.msk [vmem:[%s282 + $0x60] sm:$0xff] %vm6404, %v6375
      %6418 = vst.msk [vmem:[%s282 + $0x68] sm:$0xff] %vm6404, %v6377
      %6419 = vst.msk [vmem:[%s282 + $0x70] sm:$0xff] %vm6404, %v6379
      %6420 = vst.msk [vmem:[%s282 + $0x78] sm:$0xff] %vm6404, %v6381
      %6421 = vst.msk [vmem:[%s282 + $0x80] sm:$0xff] %vm6404, %v6383
      %6422 = vst.msk [vmem:[%s282 + $0x88] sm:$0xff] %vm6404, %v6385
      %6423 = vrot.lane.b32.xlu0 %v6314, 78
      %v6424 = vpop.permute.xlu0 %6423
      %6425 = vrot.lane.b32.xlu0 %v6315, 78
      %v6426 = vpop.permute.xlu0 %6425
      %6427 = vrot.lane.b32.xlu0 %v6316, 78
      %v6428 = vpop.permute.xlu0 %6427
      %6429 = vrot.lane.b32.xlu0 %v6317, 78
      %v6430 = vpop.permute.xlu0 %6429
      %6431 = vrot.lane.b32.xlu0 %v6318, 78
      %v6432 = vpop.permute.xlu0 %6431
      %6433 = vrot.lane.b32.xlu0 %v6319, 78
      %v6434 = vpop.permute.xlu0 %6433
      %6435 = vrot.lane.b32.xlu0 %v6320, 78
      %v6436 = vpop.permute.xlu0 %6435
      %6437 = vrot.lane.b32.xlu0 %v6321, 78
      %v6438 = vpop.permute.xlu0 %6437
      %6439 = vrot.lane.b32.xlu0 %v6322, 78
      %v6440 = vpop.permute.xlu0 %6439
      %6441 = vrot.lane.b32.xlu0 %v6323, 78
      %v6442 = vpop.permute.xlu0 %6441
      %6443 = vrot.lane.b32.xlu0 %v6324, 78
      %v6444 = vpop.permute.xlu0 %6443
      %6445 = vrot.lane.b32.xlu0 %v6325, 78
      %v6446 = vpop.permute.xlu0 %6445
      %6447 = vrot.lane.b32.xlu0 %v6326, 78
      %v6448 = vpop.permute.xlu0 %6447
      %6449 = vrot.lane.b32.xlu0 %v6327, 78
      %v6450 = vpop.permute.xlu0 %6449
      %6451 = vrot.lane.b32.xlu0 %v6328, 78
      %v6452 = vpop.permute.xlu0 %6451
      %6453 = vrot.lane.b32.xlu0 %v6329, 78
      %v6454 = vpop.permute.xlu0 %6453
      %6455 = vrot.lane.b32.xlu0 %v6330, 78
      %v6456 = vpop.permute.xlu0 %6455
      %6457 = vrot.lane.b32.xlu0 %v6331, 78
      %v6458 = vpop.permute.xlu0 %6457
      %s6477 = scalar_lea.vmem %s282, 144
      %6478 = vst.msk [vmem:[%s6477] sm:$0xff] %vm6404, %v6424
      %6479 = vst.msk [vmem:[%s6477 + $0x8] sm:$0xff] %vm6404, %v6426
      %6480 = vst.msk [vmem:[%s6477 + $0x10] sm:$0xff] %vm6404, %v6428
      %6481 = vst.msk [vmem:[%s6477 + $0x18] sm:$0xff] %vm6404, %v6430
      %6482 = vst.msk [vmem:[%s6477 + $0x20] sm:$0xff] %vm6404, %v6432
      %6483 = vst.msk [vmem:[%s6477 + $0x28] sm:$0xff] %vm6404, %v6434
      %6484 = vst.msk [vmem:[%s6477 + $0x30] sm:$0xff] %vm6404, %v6436
      %6485 = vst.msk [vmem:[%s6477 + $0x38] sm:$0xff] %vm6404, %v6438
      %6486 = vst.msk [vmem:[%s6477 + $0x40] sm:$0xff] %vm6404, %v6440
      %6487 = vst.msk [vmem:[%s6477 + $0x48] sm:$0xff] %vm6404, %v6442
      %6488 = vst.msk [vmem:[%s6477 + $0x50] sm:$0xff] %vm6404, %v6444
      %6489 = vst.msk [vmem:[%s6477 + $0x58] sm:$0xff] %vm6404, %v6446
      %6490 = vst.msk [vmem:[%s6477 + $0x60] sm:$0xff] %vm6404, %v6448
      %6491 = vst.msk [vmem:[%s6477 + $0x68] sm:$0xff] %vm6404, %v6450
      %6492 = vst.msk [vmem:[%s6477 + $0x70] sm:$0xff] %vm6404, %v6452
      %6493 = vst.msk [vmem:[%s6477 + $0x78] sm:$0xff] %vm6404, %v6454
      %6494 = vst.msk [vmem:[%s6477 + $0x80] sm:$0xff] %vm6404, %v6456
      %6495 = vst.msk [vmem:[%s6477 + $0x88] sm:$0xff] %vm6404, %v6458
      %s6496 = smul.u32 2, %s18
      %p6497 = scmp.lt.s32.totalorder %s6496, 3
      %s6498 = scalar_select %p6497, %s6496, 3
      %s6499 = smul.addr %s6498, 18
      %s6500 = smul.addr %s6499, 8
      %s6501 = scalar_lea.vmem %s7, %s6500
      // Predicated region
      $region49: #{inp_model_2.1} parent=47 // pred_check
        %p6502 = pneg %p188
      $region50: #{inp_model_2.1} parent=47 // pred_check_branch
        %6504 = sbr.rel (%p6502) target = $region52
      $region51: #{inp_model_2.1} parent=47 // pred_region
        %s6505 = smul.u32 2, %s18
      $region52: #{inp_model_2.1} parent=47 // pred_fallthru
        _
    $region48: #{inp_model_2.1} parent=5 // pred_fallthru
      _
    %p6506 = scmp.le.s32.totalorder 2, %s13
    // Predicated region
    $region53: #{inp_model_2.1} parent=5 // pred_check
      %p6507 = pneg %p6506
    $region54: #{inp_model_2.1} parent=5 // pred_check_branch
      %6509 = sbr.rel (%p6507) target = $region56
    $region55: #{inp_model_2.1} parent=5 // pred_region
      %s6510 = ssub.s32 %s13, 2
      // Predicated region
      $region57: #{inp_model_2.1} parent=55 // pred_check
        %p6511 = pneg %p194
      $region58: #{inp_model_2.1} parent=55 // pred_check_branch
        %6513 = sbr.rel (%p6511) target = $region60
      $region59: #{inp_model_2.1} parent=55 // pred_region
        %s6514 = smul.u32 2, %s19
        %p6515 = scmp.lt.s32.totalorder %s6514, 3
        %s6516 = scalar_select %p6515, %s6514, 3
        %s6517 = smul.addr %s6516, 18
        %s6518 = smul.addr %s6517, 8
        %s6519 = scalar_lea.vmem %s7, %s6518
      $region60: #{inp_model_2.1} parent=55 // pred_fallthru
        _
    $region56: #{inp_model_2.1} parent=5 // pred_fallthru
      _
  $region6: #{inp_model_2.1} parent=0 // loop_footer
    %s17 = sadd.s32 1, %s13
  $region7: #{inp_model_2.1} parent=0 // loop_footer_branch
    %12 = sbr.rel target = $region3
  $region8: #{inp_model_2.1} parent=0 // loop_exit
    _

</llo_original>
